<compile_context>
chip_gen: v6e
topology: v6e:2x2x1
jax: 0.10.0
libtpu: 0.0.40
codegen_flags: <defaults>
</compile_context>

<pallas_src>
import jax
import jax.numpy as jnp
from jax.experimental import pallas as pl
from jax.experimental.pallas import tpu as pltpu


# ----------------------------------------------------------------------------
# Single fused kernel: conv1+BN1+ReLU+MaxPool -> conv2+BN2+ReLU -> flatten ->
#                      dense0_bn+linear1+ReLU -> dense1_bn+linear2
# Activation layout: [channels, position*N + batch]  (batch folded into lanes).
# ----------------------------------------------------------------------------
def _fused_kernel(xcol_ref, xlast_ref, w1_ref, b1_ref, w2_ref, b2_ref,
                  w1d_ref, w1db_ref, b1d_ref, w2d_ref, b2d_ref, o_ref):
    N = xlast_ref.shape[1]          # batch
    NL = xcol_ref.shape[1]          # N * L
    L = NL // N
    L2 = L // 2
    NL2 = L2 * N
    K = w2_ref.shape[0]             # conv kernel size (5)

    # ---- conv1 (BN1 folded) + ReLU: one batch-wide MXU matmul ----
    y1 = jnp.dot(w1_ref[...], xcol_ref[...],
                 preferred_element_type=jnp.float32)          # [10, N*L]
    y1 = jnp.maximum(y1 + b1_ref[...], 0.0)

    # ---- MaxPool1d(2) + conv2 halo padding, fused into one lane-concat ----
    # Lanes are position-major, so each pooling pair is two adjacent N-wide
    # lane blocks: a plain VPU max on static lane slices (no MXU, no iota).
    zpad = jnp.zeros((y1.shape[0], 2 * N), jnp.float32)
    pieces = [zpad]
    for j in range(L2):
        a = y1[:, (2 * j) * N:(2 * j + 1) * N]
        b = y1[:, (2 * j + 1) * N:(2 * j + 2) * N]
        pieces.append(jnp.maximum(a, b))
    pieces.append(zpad)
    ypp = jnp.concatenate(pieces, axis=-1)                    # [10, (L2+4)*N]

    # ---- conv2 (BN2 folded) + ReLU: K batch-wide tap matmuls, f32 accumulate ----
    y2 = jnp.dot(w2_ref[0], ypp[:, :NL2],
                 preferred_element_type=jnp.float32)
    for k in range(1, K):
        y2 = y2 + jnp.dot(w2_ref[k], ypp[:, k * N:k * N + NL2],
                          preferred_element_type=jnp.float32)
    y2 = jnp.maximum(y2 + b2_ref[...], 0.0)                   # [20, N*L2]

    # ---- dense0_bn + linear1 + ReLU (BN folded into the weights/bias) ----
    # The torch flatten/transpose is folded into the contraction: per-position
    # weight slabs [256, 20] hit contiguous batch-lane slices of y2.
    h = w1db_ref[...] * xlast_ref[...] + b1d_ref[...]         # x[:, -1] term + bias
    for l in range(L2):
        h = h + jnp.dot(w1d_ref[l], y2[:, l * N:(l + 1) * N],
                        preferred_element_type=jnp.float32)   # [256, N]
    h = jnp.maximum(h, 0.0)

    # ---- dense1_bn folded into linear2; lin_drop (p=0.02) = identity (eval) ----
    o_ref[...] = (jnp.dot(w2d_ref[...], h, preferred_element_type=jnp.float32)
                  + b2d_ref[...])                             # [n_out, N]


# ----------------------------------------------------------------------------
# Wrapper: plain-JAX layout plumbing (im2col, padding) + one fused pallas_call.
# ----------------------------------------------------------------------------
def net_cnn_3_channels_forward(x, kp, n_in, n_out):
    N = x.shape[0]
    L = (n_in - 1) // 3
    K = 5

    x_conv = x[:, :3 * L].reshape(N, 3, L)                    # [N, 3, L]
    x_last = x[:, -1].reshape(1, N)                           # [1, N]

    # conv1 im2col with position-major / batch-minor lane order (l*N + n):
    xpad = jnp.pad(x_conv, ((0, 0), (0, 0), (2, 2)))          # [N, 3, L+4]
    cols = jnp.stack([xpad[:, :, k:k + L] for k in range(K)], axis=0)  # [K,N,3,L]
    xcol = jnp.transpose(cols, (2, 0, 3, 1)).reshape(3 * K, L * N)     # [15, N*L]

    vmem = pltpu.MemorySpace.VMEM
    out_t = pl.pallas_call(
        _fused_kernel,
        out_shape=jax.ShapeDtypeStruct((n_out, N), jnp.float32),
        in_specs=[pl.BlockSpec(memory_space=vmem)] * 11,
        out_specs=pl.BlockSpec(memory_space=vmem),
    )(xcol, x_last, kp["w1"], kp["b1"], kp["w2"], kp["b2"],
      kp["w1d"], kp["w1db"], kp["b1d"], kp["w2d"], kp["b2d"])

    return out_t.T                                            # [N, n_out]


# ----------------------------------------------------------------------------
# Parameter preparation: fold eval-mode BatchNorm into adjacent conv / linear
# weights and rearrange for the kernel's layouts (done once, outside the kernel).
# ----------------------------------------------------------------------------
def fold_params(p, n_in, n_out):
    L = (n_in - 1) // 3
    L2 = L // 2
    eps = 1e-5

    def bn_affine(bn):
        s = bn["gamma"] / jnp.sqrt(bn["var"] + eps)
        t = bn["beta"] - bn["mean"] * s
        return s, t

    s1, t1 = bn_affine(p["bn1"])
    s2, t2 = bn_affine(p["bn2"])
    s0, t0 = bn_affine(p["bn0"])        # width F = 20*L2 + 1
    sd, td = bn_affine(p["bnd1"])       # width 256

    # conv1 + BN1
    w1 = p["conv1_w"] * s1[:, None, None]                     # [10, 3, 5]
    b1 = s1 * p["conv1_b"] + t1
    # conv2 + BN2, tap-major for the kernel: [5, 20, 10]
    w2 = p["conv2_w"] * s2[:, None, None]                     # [20, 10, 5]
    b2 = s2 * p["conv2_b"] + t2
    w2k = jnp.transpose(w2, (2, 0, 1))

    # linear1 + dense0_bn: W1' = W1*s0 (per column), b1' = b1 + W1 @ t0
    W1 = p["lin1_w"]                                          # [256, F]
    W1s = W1 * s0[None, :]
    b1_eff = p["lin1_b"] + W1 @ t0
    # conv-feature part, rearranged per spatial position: [L2, 256, 20]
    w1d3 = jnp.transpose(W1s[:, :20 * L2].reshape(256, 20, L2), (2, 0, 1))
    w1db = W1s[:, -1].reshape(256, 1)                         # x[:, -1] column

    # linear2 + dense1_bn
    W2e = p["lin2_w"] * sd[None, :]
    b2_eff = p["lin2_b"] + p["lin2_w"] @ td

    return dict(
        w1=w1.reshape(10, 15), b1=b1.reshape(10, 1),
        w2=w2k, b2=b2.reshape(20, 1),
        w1d=w1d3, w1db=w1db, b1d=b1_eff.reshape(256, 1),
        w2d=W2e, b2d=b2_eff.reshape(n_out, 1),
    )


# ----------------------------------------------------------------------------
# Deterministic synthetic parameters (torch-like raw params, eval-mode BN stats)
# ----------------------------------------------------------------------------
def init_params(key, n_in, n_out):
    L2 = (n_in - 1) // 3 // 2
    F = 20 * L2 + 1
    ks = jax.random.split(key, 12)

    def bn_params(k, c):
        kg, kb, km, kv = jax.random.split(k, 4)
        return dict(
            gamma=1.0 + 0.1 * jax.random.normal(kg, (c,), jnp.float32),
            beta=0.1 * jax.random.normal(kb, (c,), jnp.float32),
            mean=0.1 * jax.random.normal(km, (c,), jnp.float32),
            var=jax.random.uniform(kv, (c,), jnp.float32, 0.5, 1.5),
        )

    return dict(
        conv1_w=0.2 * jax.random.normal(ks[0], (10, 3, 5), jnp.float32),
        conv1_b=0.1 * jax.random.normal(ks[1], (10,), jnp.float32),
        bn1=bn_params(ks[2], 10),
        conv2_w=0.2 * jax.random.normal(ks[3], (20, 10, 5), jnp.float32),
        conv2_b=0.1 * jax.random.normal(ks[4], (20,), jnp.float32),
        bn2=bn_params(ks[5], 20),
        bn0=bn_params(ks[6], F),
        lin1_w=0.05 * jax.random.normal(ks[7], (256, F), jnp.float32),
        lin1_b=0.05 * jax.random.normal(ks[8], (256,), jnp.float32),
        bnd1=bn_params(ks[9], 256),
        lin2_w=0.05 * jax.random.normal(ks[10], (n_out, 256), jnp.float32),
        lin2_b=0.05 * jax.random.normal(ks[11], (n_out,), jnp.float32),
    )


# ----------------------------------------------------------------------------
# Pure-JAX reference of the PyTorch forward (eval mode) for validation
# ----------------------------------------------------------------------------
def reference_forward(x, p, n_in, n_out):
    eps = 1e-5
    N = x.shape[0]
    L = (n_in - 1) // 3
    L2 = L // 2
    hp = jax.lax.Precision.HIGHEST

    def bn(y, bnp, axis):
        shape = [1] * y.ndim
        shape[axis] = -1
        s = (bnp["gamma"] / jnp.sqrt(bnp["var"] + eps)).reshape(shape)
        t = (bnp["beta"] - bnp["mean"] * bnp["gamma"]
             / jnp.sqrt(bnp["var"] + eps)).reshape(shape)
        return y * s + t

    x1 = x[:, :3 * L].reshape(N, 3, L)
    y = jax.lax.conv_general_dilated(
        x1, p["conv1_w"], window_strides=(1,), padding=[(2, 2)],
        dimension_numbers=("NCH", "OIH", "NCH"), precision=hp)
    y = jnp.maximum(bn(y + p["conv1_b"][None, :, None], p["bn1"], 1), 0.0)
    y = jnp.max(y.reshape(N, 10, L2, 2), axis=-1)             # MaxPool1d(2)
    y = jax.lax.conv_general_dilated(
        y, p["conv2_w"], window_strides=(1,), padding=[(2, 2)],
        dimension_numbers=("NCH", "OIH", "NCH"), precision=hp)
    y = jnp.maximum(bn(y + p["conv2_b"][None, :, None], p["bn2"], 1), 0.0)
    feat = jnp.concatenate([y.reshape(N, 20 * L2), x[:, -1:]], axis=1)
    feat = bn(feat, p["bn0"], 1)
    h = jnp.maximum(jnp.dot(feat, p["lin1_w"].T, precision=hp) + p["lin1_b"], 0.0)
    h = bn(h, p["bnd1"], 1)
    # lin_drop (p=0.02): identity in eval mode
    return jnp.dot(h, p["lin2_w"].T, precision=hp) + p["lin2_b"]


if __name__ == "__main__":
    n_in = 49            # (n_in - 1)/3 = 16, /2 = 8 -> integer check passes
    n_out = 4
    N = 8                # batch*L = 128 lanes -> one full vreg row in the conv matmuls

    key = jax.random.PRNGKey(0)
    kx, kp = jax.random.split(key)
    x = jax.random.normal(kx, (N, n_in), dtype=jnp.float32)
    params = init_params(kp, n_in, n_out)
    kparams = fold_params(params, n_in, n_out)

    fwd = jax.jit(net_cnn_3_channels_forward, static_argnums=(2, 3))
    y = jax.block_until_ready(fwd(x, kparams, n_in, n_out))
    assert y.shape == (N, n_out)
    assert bool(jnp.all(jnp.isfinite(y)))

    y_ref = reference_forward(x, params, n_in, n_out)
    max_err = float(jnp.max(jnp.abs(y - y_ref)))
    assert jnp.allclose(y, y_ref, atol=5e-3, rtol=5e-3), max_err

    print("KERNEL_OK")
</pallas_src>

<mosaic_0001>
module attributes {stable_mosaic.version = 11 : i64} {
  func.func @_fused_kernel(%arg0: memref<15x128xf32, #tpu.memory_space<vmem>>, %arg1: memref<1x8xf32, #tpu.memory_space<vmem>>, %arg2: memref<10x15xf32, #tpu.memory_space<vmem>>, %arg3: memref<10x1xf32, #tpu.memory_space<vmem>>, %arg4: memref<5x20x10xf32, #tpu.memory_space<vmem>>, %arg5: memref<20x1xf32, #tpu.memory_space<vmem>>, %arg6: memref<8x256x20xf32, #tpu.memory_space<vmem>>, %arg7: memref<256x1xf32, #tpu.memory_space<vmem>>, %arg8: memref<256x1xf32, #tpu.memory_space<vmem>>, %arg9: memref<4x256xf32, #tpu.memory_space<vmem>>, %arg10: memref<4x1xf32, #tpu.memory_space<vmem>>, %arg11: memref<4x8xf32, #tpu.memory_space<vmem>>) attributes {dimension_semantics = [], scalar_prefetch = 0 : i64, scratch_operands = 0 : i64, tpu.core_type = #tpu.core_type<tc>} {
    %c0 = arith.constant 0 : index
    %c0_0 = arith.constant 0 : index
    %0 = vector.load %arg2[%c0, %c0_0] : memref<10x15xf32, #tpu.memory_space<vmem>>, vector<10x15xf32>
    %c0_1 = arith.constant 0 : index
    %c0_2 = arith.constant 0 : index
    %1 = vector.load %arg0[%c0_1, %c0_2] : memref<15x128xf32, #tpu.memory_space<vmem>>, vector<15x128xf32>
    %cst = arith.constant dense<0.000000e+00> : vector<10x128xf32>
    %2 = tpu.matmul %0, %1, %cst {dimension_numbers = #tpu.dot_dimension_numbers<[1], [0], [0], [1], [0, 0, 1, 1], [], []>} : vector<10x15xf32>, vector<15x128xf32>, vector<10x128xf32> -> vector<10x128xf32>
    %c0_3 = arith.constant 0 : index
    %c0_4 = arith.constant 0 : index
    %3 = vector.load %arg3[%c0_3, %c0_4] : memref<10x1xf32, #tpu.memory_space<vmem>>, vector<10x1xf32>
    %4 = vector.broadcast %3 : vector<10x1xf32> to vector<10x128xf32>
    %5 = arith.addf %2, %4 : vector<10x128xf32>
    %cst_5 = arith.constant 0.000000e+00 : f32
    %6 = vector.broadcast %cst_5 : f32 to vector<10x128xf32>
    %7 = arith.maximumf %5, %6 : vector<10x128xf32>
    %cst_6 = arith.constant 0.000000e+00 : f32
    %8 = vector.broadcast %cst_6 : f32 to vector<10x16xf32>
    %9 = vector.extract_strided_slice %7 {offsets = [0, 0], sizes = [10, 8], strides = [1, 1]} : vector<10x128xf32> to vector<10x8xf32>
    %10 = vector.extract_strided_slice %7 {offsets = [0, 8], sizes = [10, 8], strides = [1, 1]} : vector<10x128xf32> to vector<10x8xf32>
    %11 = arith.maximumf %9, %10 : vector<10x8xf32>
    %12 = vector.extract_strided_slice %7 {offsets = [0, 16], sizes = [10, 8], strides = [1, 1]} : vector<10x128xf32> to vector<10x8xf32>
    %13 = vector.extract_strided_slice %7 {offsets = [0, 24], sizes = [10, 8], strides = [1, 1]} : vector<10x128xf32> to vector<10x8xf32>
    %14 = arith.maximumf %12, %13 : vector<10x8xf32>
    %15 = vector.extract_strided_slice %7 {offsets = [0, 32], sizes = [10, 8], strides = [1, 1]} : vector<10x128xf32> to vector<10x8xf32>
    %16 = vector.extract_strided_slice %7 {offsets = [0, 40], sizes = [10, 8], strides = [1, 1]} : vector<10x128xf32> to vector<10x8xf32>
    %17 = arith.maximumf %15, %16 : vector<10x8xf32>
    %18 = vector.extract_strided_slice %7 {offsets = [0, 48], sizes = [10, 8], strides = [1, 1]} : vector<10x128xf32> to vector<10x8xf32>
    %19 = vector.extract_strided_slice %7 {offsets = [0, 56], sizes = [10, 8], strides = [1, 1]} : vector<10x128xf32> to vector<10x8xf32>
    %20 = arith.maximumf %18, %19 : vector<10x8xf32>
    %21 = vector.extract_strided_slice %7 {offsets = [0, 64], sizes = [10, 8], strides = [1, 1]} : vector<10x128xf32> to vector<10x8xf32>
    %22 = vector.extract_strided_slice %7 {offsets = [0, 72], sizes = [10, 8], strides = [1, 1]} : vector<10x128xf32> to vector<10x8xf32>
    %23 = arith.maximumf %21, %22 : vector<10x8xf32>
    %24 = vector.extract_strided_slice %7 {offsets = [0, 80], sizes = [10, 8], strides = [1, 1]} : vector<10x128xf32> to vector<10x8xf32>
    %25 = vector.extract_strided_slice %7 {offsets = [0, 88], sizes = [10, 8], strides = [1, 1]} : vector<10x128xf32> to vector<10x8xf32>
    %26 = arith.maximumf %24, %25 : vector<10x8xf32>
    %27 = vector.extract_strided_slice %7 {offsets = [0, 96], sizes = [10, 8], strides = [1, 1]} : vector<10x128xf32> to vector<10x8xf32>
    %28 = vector.extract_strided_slice %7 {offsets = [0, 104], sizes = [10, 8], strides = [1, 1]} : vector<10x128xf32> to vector<10x8xf32>
    %29 = arith.maximumf %27, %28 : vector<10x8xf32>
    %30 = vector.extract_strided_slice %7 {offsets = [0, 112], sizes = [10, 8], strides = [1, 1]} : vector<10x128xf32> to vector<10x8xf32>
    %31 = vector.extract_strided_slice %7 {offsets = [0, 120], sizes = [10, 8], strides = [1, 1]} : vector<10x128xf32> to vector<10x8xf32>
    %32 = arith.maximumf %30, %31 : vector<10x8xf32>
    %33 = tpu.concatenate %8, %11, %14, %17, %20, %23, %26, %29, %32, %8 in 1 : vector<10x16xf32>, vector<10x8xf32>, vector<10x8xf32>, vector<10x8xf32>, vector<10x8xf32>, vector<10x8xf32>, vector<10x8xf32>, vector<10x8xf32>, vector<10x8xf32>, vector<10x16xf32> -> vector<10x96xf32>
    %c0_7 = arith.constant 0 : index
    %c0_8 = arith.constant 0 : index
    %c0_9 = arith.constant 0 : index
    %34 = vector.load %arg4[%c0_7, %c0_8, %c0_9] : memref<5x20x10xf32, #tpu.memory_space<vmem>>, vector<1x20x10xf32>
    %35 = vector.shape_cast %34 : vector<1x20x10xf32> to vector<20x10xf32>
    %36 = vector.extract_strided_slice %33 {offsets = [0, 0], sizes = [10, 64], strides = [1, 1]} : vector<10x96xf32> to vector<10x64xf32>
    %cst_10 = arith.constant dense<0.000000e+00> : vector<20x64xf32>
    %37 = tpu.matmul %35, %36, %cst_10 {dimension_numbers = #tpu.dot_dimension_numbers<[1], [0], [0], [1], [0, 0, 1, 1], [], []>} : vector<20x10xf32>, vector<10x64xf32>, vector<20x64xf32> -> vector<20x64xf32>
    %c1 = arith.constant 1 : index
    %c0_11 = arith.constant 0 : index
    %c0_12 = arith.constant 0 : index
    %38 = vector.load %arg4[%c1, %c0_11, %c0_12] : memref<5x20x10xf32, #tpu.memory_space<vmem>>, vector<1x20x10xf32>
    %39 = vector.shape_cast %38 : vector<1x20x10xf32> to vector<20x10xf32>
    %40 = vector.extract_strided_slice %33 {offsets = [0, 8], sizes = [10, 64], strides = [1, 1]} : vector<10x96xf32> to vector<10x64xf32>
    %cst_13 = arith.constant dense<0.000000e+00> : vector<20x64xf32>
    %41 = tpu.matmul %39, %40, %cst_13 {dimension_numbers = #tpu.dot_dimension_numbers<[1], [0], [0], [1], [0, 0, 1, 1], [], []>} : vector<20x10xf32>, vector<10x64xf32>, vector<20x64xf32> -> vector<20x64xf32>
    %42 = arith.addf %37, %41 : vector<20x64xf32>
    %c2 = arith.constant 2 : index
    %c0_14 = arith.constant 0 : index
    %c0_15 = arith.constant 0 : index
    %43 = vector.load %arg4[%c2, %c0_14, %c0_15] : memref<5x20x10xf32, #tpu.memory_space<vmem>>, vector<1x20x10xf32>
    %44 = vector.shape_cast %43 : vector<1x20x10xf32> to vector<20x10xf32>
    %45 = vector.extract_strided_slice %33 {offsets = [0, 16], sizes = [10, 64], strides = [1, 1]} : vector<10x96xf32> to vector<10x64xf32>
    %cst_16 = arith.constant dense<0.000000e+00> : vector<20x64xf32>
    %46 = tpu.matmul %44, %45, %cst_16 {dimension_numbers = #tpu.dot_dimension_numbers<[1], [0], [0], [1], [0, 0, 1, 1], [], []>} : vector<20x10xf32>, vector<10x64xf32>, vector<20x64xf32> -> vector<20x64xf32>
    %47 = arith.addf %42, %46 : vector<20x64xf32>
    %c3 = arith.constant 3 : index
    %c0_17 = arith.constant 0 : index
    %c0_18 = arith.constant 0 : index
    %48 = vector.load %arg4[%c3, %c0_17, %c0_18] : memref<5x20x10xf32, #tpu.memory_space<vmem>>, vector<1x20x10xf32>
    %49 = vector.shape_cast %48 : vector<1x20x10xf32> to vector<20x10xf32>
    %50 = vector.extract_strided_slice %33 {offsets = [0, 24], sizes = [10, 64], strides = [1, 1]} : vector<10x96xf32> to vector<10x64xf32>
    %cst_19 = arith.constant dense<0.000000e+00> : vector<20x64xf32>
    %51 = tpu.matmul %49, %50, %cst_19 {dimension_numbers = #tpu.dot_dimension_numbers<[1], [0], [0], [1], [0, 0, 1, 1], [], []>} : vector<20x10xf32>, vector<10x64xf32>, vector<20x64xf32> -> vector<20x64xf32>
    %52 = arith.addf %47, %51 : vector<20x64xf32>
    %c4 = arith.constant 4 : index
    %c0_20 = arith.constant 0 : index
    %c0_21 = arith.constant 0 : index
    %53 = vector.load %arg4[%c4, %c0_20, %c0_21] : memref<5x20x10xf32, #tpu.memory_space<vmem>>, vector<1x20x10xf32>
    %54 = vector.shape_cast %53 : vector<1x20x10xf32> to vector<20x10xf32>
    %55 = vector.extract_strided_slice %33 {offsets = [0, 32], sizes = [10, 64], strides = [1, 1]} : vector<10x96xf32> to vector<10x64xf32>
    %cst_22 = arith.constant dense<0.000000e+00> : vector<20x64xf32>
    %56 = tpu.matmul %54, %55, %cst_22 {dimension_numbers = #tpu.dot_dimension_numbers<[1], [0], [0], [1], [0, 0, 1, 1], [], []>} : vector<20x10xf32>, vector<10x64xf32>, vector<20x64xf32> -> vector<20x64xf32>
    %57 = arith.addf %52, %56 : vector<20x64xf32>
    %c0_23 = arith.constant 0 : index
    %c0_24 = arith.constant 0 : index
    %58 = vector.load %arg5[%c0_23, %c0_24] : memref<20x1xf32, #tpu.memory_space<vmem>>, vector<20x1xf32>
    %59 = vector.broadcast %58 : vector<20x1xf32> to vector<20x64xf32>
    %60 = arith.addf %57, %59 : vector<20x64xf32>
    %cst_25 = arith.constant 0.000000e+00 : f32
    %61 = vector.broadcast %cst_25 : f32 to vector<20x64xf32>
    %62 = arith.maximumf %60, %61 : vector<20x64xf32>
    %c0_26 = arith.constant 0 : index
    %c0_27 = arith.constant 0 : index
    %63 = vector.load %arg7[%c0_26, %c0_27] : memref<256x1xf32, #tpu.memory_space<vmem>>, vector<256x1xf32>
    %c0_28 = arith.constant 0 : index
    %c0_29 = arith.constant 0 : index
    %64 = vector.load %arg1[%c0_28, %c0_29] : memref<1x8xf32, #tpu.memory_space<vmem>>, vector<1x8xf32>
    %65 = vector.broadcast %63 : vector<256x1xf32> to vector<256x8xf32>
    %66 = vector.broadcast %64 : vector<1x8xf32> to vector<256x8xf32>
    %67 = arith.mulf %65, %66 : vector<256x8xf32>
    %c0_30 = arith.constant 0 : index
    %c0_31 = arith.constant 0 : index
    %68 = vector.load %arg8[%c0_30, %c0_31] : memref<256x1xf32, #tpu.memory_space<vmem>>, vector<256x1xf32>
    %69 = vector.broadcast %68 : vector<256x1xf32> to vector<256x8xf32>
    %70 = arith.addf %67, %69 : vector<256x8xf32>
    %c0_32 = arith.constant 0 : index
    %c0_33 = arith.constant 0 : index
    %c0_34 = arith.constant 0 : index
    %71 = vector.load %arg6[%c0_32, %c0_33, %c0_34] : memref<8x256x20xf32, #tpu.memory_space<vmem>>, vector<1x256x20xf32>
    %72 = vector.shape_cast %71 : vector<1x256x20xf32> to vector<256x20xf32>
    %73 = vector.extract_strided_slice %62 {offsets = [0, 0], sizes = [20, 8], strides = [1, 1]} : vector<20x64xf32> to vector<20x8xf32>
    %cst_35 = arith.constant dense<0.000000e+00> : vector<256x8xf32>
    %74 = tpu.matmul %72, %73, %cst_35 {dimension_numbers = #tpu.dot_dimension_numbers<[1], [0], [0], [1], [0, 0, 1, 1], [], []>} : vector<256x20xf32>, vector<20x8xf32>, vector<256x8xf32> -> vector<256x8xf32>
    %75 = arith.addf %70, %74 : vector<256x8xf32>
    %c1_36 = arith.constant 1 : index
    %c0_37 = arith.constant 0 : index
    %c0_38 = arith.constant 0 : index
    %76 = vector.load %arg6[%c1_36, %c0_37, %c0_38] : memref<8x256x20xf32, #tpu.memory_space<vmem>>, vector<1x256x20xf32>
    %77 = vector.shape_cast %76 : vector<1x256x20xf32> to vector<256x20xf32>
    %78 = vector.extract_strided_slice %62 {offsets = [0, 8], sizes = [20, 8], strides = [1, 1]} : vector<20x64xf32> to vector<20x8xf32>
    %cst_39 = arith.constant dense<0.000000e+00> : vector<256x8xf32>
    %79 = tpu.matmul %77, %78, %cst_39 {dimension_numbers = #tpu.dot_dimension_numbers<[1], [0], [0], [1], [0, 0, 1, 1], [], []>} : vector<256x20xf32>, vector<20x8xf32>, vector<256x8xf32> -> vector<256x8xf32>
    %80 = arith.addf %75, %79 : vector<256x8xf32>
    %c2_40 = arith.constant 2 : index
    %c0_41 = arith.constant 0 : index
    %c0_42 = arith.constant 0 : index
    %81 = vector.load %arg6[%c2_40, %c0_41, %c0_42] : memref<8x256x20xf32, #tpu.memory_space<vmem>>, vector<1x256x20xf32>
    %82 = vector.shape_cast %81 : vector<1x256x20xf32> to vector<256x20xf32>
    %83 = vector.extract_strided_slice %62 {offsets = [0, 16], sizes = [20, 8], strides = [1, 1]} : vector<20x64xf32> to vector<20x8xf32>
    %cst_43 = arith.constant dense<0.000000e+00> : vector<256x8xf32>
    %84 = tpu.matmul %82, %83, %cst_43 {dimension_numbers = #tpu.dot_dimension_numbers<[1], [0], [0], [1], [0, 0, 1, 1], [], []>} : vector<256x20xf32>, vector<20x8xf32>, vector<256x8xf32> -> vector<256x8xf32>
    %85 = arith.addf %80, %84 : vector<256x8xf32>
    %c3_44 = arith.constant 3 : index
    %c0_45 = arith.constant 0 : index
    %c0_46 = arith.constant 0 : index
    %86 = vector.load %arg6[%c3_44, %c0_45, %c0_46] : memref<8x256x20xf32, #tpu.memory_space<vmem>>, vector<1x256x20xf32>
    %87 = vector.shape_cast %86 : vector<1x256x20xf32> to vector<256x20xf32>
    %88 = vector.extract_strided_slice %62 {offsets = [0, 24], sizes = [20, 8], strides = [1, 1]} : vector<20x64xf32> to vector<20x8xf32>
    %cst_47 = arith.constant dense<0.000000e+00> : vector<256x8xf32>
    %89 = tpu.matmul %87, %88, %cst_47 {dimension_numbers = #tpu.dot_dimension_numbers<[1], [0], [0], [1], [0, 0, 1, 1], [], []>} : vector<256x20xf32>, vector<20x8xf32>, vector<256x8xf32> -> vector<256x8xf32>
    %90 = arith.addf %85, %89 : vector<256x8xf32>
    %c4_48 = arith.constant 4 : index
    %c0_49 = arith.constant 0 : index
    %c0_50 = arith.constant 0 : index
    %91 = vector.load %arg6[%c4_48, %c0_49, %c0_50] : memref<8x256x20xf32, #tpu.memory_space<vmem>>, vector<1x256x20xf32>
    %92 = vector.shape_cast %91 : vector<1x256x20xf32> to vector<256x20xf32>
    %93 = vector.extract_strided_slice %62 {offsets = [0, 32], sizes = [20, 8], strides = [1, 1]} : vector<20x64xf32> to vector<20x8xf32>
    %cst_51 = arith.constant dense<0.000000e+00> : vector<256x8xf32>
    %94 = tpu.matmul %92, %93, %cst_51 {dimension_numbers = #tpu.dot_dimension_numbers<[1], [0], [0], [1], [0, 0, 1, 1], [], []>} : vector<256x20xf32>, vector<20x8xf32>, vector<256x8xf32> -> vector<256x8xf32>
    %95 = arith.addf %90, %94 : vector<256x8xf32>
    %c5 = arith.constant 5 : index
    %c0_52 = arith.constant 0 : index
    %c0_53 = arith.constant 0 : index
    %96 = vector.load %arg6[%c5, %c0_52, %c0_53] : memref<8x256x20xf32, #tpu.memory_space<vmem>>, vector<1x256x20xf32>
    %97 = vector.shape_cast %96 : vector<1x256x20xf32> to vector<256x20xf32>
    %98 = vector.extract_strided_slice %62 {offsets = [0, 40], sizes = [20, 8], strides = [1, 1]} : vector<20x64xf32> to vector<20x8xf32>
    %cst_54 = arith.constant dense<0.000000e+00> : vector<256x8xf32>
    %99 = tpu.matmul %97, %98, %cst_54 {dimension_numbers = #tpu.dot_dimension_numbers<[1], [0], [0], [1], [0, 0, 1, 1], [], []>} : vector<256x20xf32>, vector<20x8xf32>, vector<256x8xf32> -> vector<256x8xf32>
    %100 = arith.addf %95, %99 : vector<256x8xf32>
    %c6 = arith.constant 6 : index
    %c0_55 = arith.constant 0 : index
    %c0_56 = arith.constant 0 : index
    %101 = vector.load %arg6[%c6, %c0_55, %c0_56] : memref<8x256x20xf32, #tpu.memory_space<vmem>>, vector<1x256x20xf32>
    %102 = vector.shape_cast %101 : vector<1x256x20xf32> to vector<256x20xf32>
    %103 = vector.extract_strided_slice %62 {offsets = [0, 48], sizes = [20, 8], strides = [1, 1]} : vector<20x64xf32> to vector<20x8xf32>
    %cst_57 = arith.constant dense<0.000000e+00> : vector<256x8xf32>
    %104 = tpu.matmul %102, %103, %cst_57 {dimension_numbers = #tpu.dot_dimension_numbers<[1], [0], [0], [1], [0, 0, 1, 1], [], []>} : vector<256x20xf32>, vector<20x8xf32>, vector<256x8xf32> -> vector<256x8xf32>
    %105 = arith.addf %100, %104 : vector<256x8xf32>
    %c7 = arith.constant 7 : index
    %c0_58 = arith.constant 0 : index
    %c0_59 = arith.constant 0 : index
    %106 = vector.load %arg6[%c7, %c0_58, %c0_59] : memref<8x256x20xf32, #tpu.memory_space<vmem>>, vector<1x256x20xf32>
    %107 = vector.shape_cast %106 : vector<1x256x20xf32> to vector<256x20xf32>
    %108 = vector.extract_strided_slice %62 {offsets = [0, 56], sizes = [20, 8], strides = [1, 1]} : vector<20x64xf32> to vector<20x8xf32>
    %cst_60 = arith.constant dense<0.000000e+00> : vector<256x8xf32>
    %109 = tpu.matmul %107, %108, %cst_60 {dimension_numbers = #tpu.dot_dimension_numbers<[1], [0], [0], [1], [0, 0, 1, 1], [], []>} : vector<256x20xf32>, vector<20x8xf32>, vector<256x8xf32> -> vector<256x8xf32>
    %110 = arith.addf %105, %109 : vector<256x8xf32>
    %cst_61 = arith.constant 0.000000e+00 : f32
    %111 = vector.broadcast %cst_61 : f32 to vector<256x8xf32>
    %112 = arith.maximumf %110, %111 : vector<256x8xf32>
    %c0_62 = arith.constant 0 : index
    %c0_63 = arith.constant 0 : index
    %113 = vector.load %arg9[%c0_62, %c0_63] : memref<4x256xf32, #tpu.memory_space<vmem>>, vector<4x256xf32>
    %cst_64 = arith.constant dense<0.000000e+00> : vector<4x8xf32>
    %114 = tpu.matmul %113, %112, %cst_64 {dimension_numbers = #tpu.dot_dimension_numbers<[1], [0], [0], [1], [0, 0, 1, 1], [], []>} : vector<4x256xf32>, vector<256x8xf32>, vector<4x8xf32> -> vector<4x8xf32>
    %c0_65 = arith.constant 0 : index
    %c0_66 = arith.constant 0 : index
    %115 = vector.load %arg10[%c0_65, %c0_66] : memref<4x1xf32, #tpu.memory_space<vmem>>, vector<4x1xf32>
    %116 = vector.broadcast %115 : vector<4x1xf32> to vector<4x8xf32>
    %117 = arith.addf %114, %116 : vector<4x8xf32>
    %c0_67 = arith.constant 0 : index
    %c0_68 = arith.constant 0 : index
    %118 = vector.load %arg11[%c0_67, %c0_68] : memref<4x8xf32, #tpu.memory_space<vmem>>, vector<4x8xf32>
    tpu.vector_store %arg11[%c0_67, %c0_68], %117 {strides = array<i32>} : memref<4x8xf32, #tpu.memory_space<vmem>>, vector<4x8xf32>,
    return
  }
}

</mosaic_0001>

<llo_original>
// kernel: net_cnn_3_channels_forward.1
$region0: #{net_cnn_3_channels_forward.1}
  #allocation0 [shape = 'u32[]', space=smem, size = 0x4, offset = 0x4, fixed_abs, tag = 'smem constant byte address 0x4 - core index']
  #allocation1 [shape = 'u32[144,128]{1,0:T(1,128)}', space=vmem, size = 0x12000, scoped, tag = 'internal scratch']
  %s0 = inlined_call_operand.vmem [shape: f32[15,128], index: 0, kind: input, shape index: {}]
  %s1 = inlined_call_operand.vmem [shape: f32[1,8], index: 1, kind: input, shape index: {}]
  %s2 = inlined_call_operand.vmem [shape: f32[10,15], index: 2, kind: input, shape index: {}]
  %s3 = inlined_call_operand.vmem [shape: f32[10,1], index: 3, kind: input, shape index: {}]
  %s4 = inlined_call_operand.vmem [shape: f32[5,20,10], index: 4, kind: input, shape index: {}]
  %s5 = inlined_call_operand.vmem [shape: f32[20,1], index: 5, kind: input, shape index: {}]
  %s6 = inlined_call_operand.vmem [shape: f32[8,256,20], index: 6, kind: input, shape index: {}]
  %s7 = inlined_call_operand.vmem [shape: f32[256,1], index: 7, kind: input, shape index: {}]
  %s8 = inlined_call_operand.vmem [shape: f32[256,1], index: 8, kind: input, shape index: {}]
  %s9 = inlined_call_operand.vmem [shape: f32[4,256], index: 9, kind: input, shape index: {}]
  %s10 = inlined_call_operand.vmem [shape: f32[4,1], index: 10, kind: input, shape index: {}]
  %s11 = inlined_call_operand.hbm [shape: f32[4,8], index: 11, kind: output, shape index: {}]
  %s12 = sld [smem:[#allocation0]]
  $region54: #{net_cnn_3_channels_forward.1} parent=0
    _
  %s14 = ssub.s32 1, %s12
  %s15 = scalar_select 0, %s14, %s12
  $region1: #{net_cnn_3_channels_forward.1} parent=0
    #allocation2 [shape = 'u8[2048]{0}', space=vmem, size = 0x800, scoped, tag = 'output window, operand 0, single buffered']
    #allocation3 [shape = 's32[1]{0}', space=sflag, size = 0x4, scoped, tag = 'scoped memory for net_cnn_3_channels_forward.1']
    %16 = vsyncpa [#allocation3], 0
    // Predicated region
    $region2: #{net_cnn_3_channels_forward.1} parent=1 // pred_check
      _
    $region3: #{net_cnn_3_channels_forward.1} parent=1 // pred_check_branch
      %18 = sbr.rel (0) target = $region5
    $region4: #{net_cnn_3_channels_forward.1} parent=1 // pred_region
      _
    $region5: #{net_cnn_3_channels_forward.1} parent=1 // pred_fallthru
      _
    // Predicated region
    $region6: #{net_cnn_3_channels_forward.1} parent=1 // pred_check
      _
    $region7: #{net_cnn_3_channels_forward.1} parent=1 // pred_check_branch
      %20 = sbr.rel (0) target = $region9
    $region8: #{net_cnn_3_channels_forward.1} parent=1 // pred_region
      _
    $region9: #{net_cnn_3_channels_forward.1} parent=1 // pred_fallthru
      _
    // Predicated region
    $region10: #{net_cnn_3_channels_forward.1} parent=1 // pred_check
      _
    $region11: #{net_cnn_3_channels_forward.1} parent=1 // pred_check_branch
      %22 = sbr.rel (0) target = $region13
    $region12: #{net_cnn_3_channels_forward.1} parent=1 // pred_region
      _
    $region13: #{net_cnn_3_channels_forward.1} parent=1 // pred_fallthru
      _
    // Predicated region
    $region14: #{net_cnn_3_channels_forward.1} parent=1 // pred_check
      _
    $region15: #{net_cnn_3_channels_forward.1} parent=1 // pred_check_branch
      %24 = sbr.rel (0) target = $region17
    $region16: #{net_cnn_3_channels_forward.1} parent=1 // pred_region
      _
    $region17: #{net_cnn_3_channels_forward.1} parent=1 // pred_fallthru
      _
    // Predicated region
    $region18: #{net_cnn_3_channels_forward.1} parent=1 // pred_check
      _
    $region19: #{net_cnn_3_channels_forward.1} parent=1 // pred_check_branch
      %26 = sbr.rel (0) target = $region21
    $region20: #{net_cnn_3_channels_forward.1} parent=1 // pred_region
      _
    $region21: #{net_cnn_3_channels_forward.1} parent=1 // pred_fallthru
      _
    // Predicated region
    $region22: #{net_cnn_3_channels_forward.1} parent=1 // pred_check
      _
    $region23: #{net_cnn_3_channels_forward.1} parent=1 // pred_check_branch
      %28 = sbr.rel (0) target = $region25
    $region24: #{net_cnn_3_channels_forward.1} parent=1 // pred_region
      _
    $region25: #{net_cnn_3_channels_forward.1} parent=1 // pred_fallthru
      _
    // Predicated region
    $region26: #{net_cnn_3_channels_forward.1} parent=1 // pred_check
      _
    $region27: #{net_cnn_3_channels_forward.1} parent=1 // pred_check_branch
      %30 = sbr.rel (0) target = $region29
    $region28: #{net_cnn_3_channels_forward.1} parent=1 // pred_region
      _
    $region29: #{net_cnn_3_channels_forward.1} parent=1 // pred_fallthru
      _
    // Predicated region
    $region30: #{net_cnn_3_channels_forward.1} parent=1 // pred_check
      _
    $region31: #{net_cnn_3_channels_forward.1} parent=1 // pred_check_branch
      %32 = sbr.rel (0) target = $region33
    $region32: #{net_cnn_3_channels_forward.1} parent=1 // pred_region
      _
    $region33: #{net_cnn_3_channels_forward.1} parent=1 // pred_fallthru
      _
    // Predicated region
    $region34: #{net_cnn_3_channels_forward.1} parent=1 // pred_check
      _
    $region35: #{net_cnn_3_channels_forward.1} parent=1 // pred_check_branch
      %34 = sbr.rel (0) target = $region37
    $region36: #{net_cnn_3_channels_forward.1} parent=1 // pred_region
      _
    $region37: #{net_cnn_3_channels_forward.1} parent=1 // pred_fallthru
      _
    // Predicated region
    $region38: #{net_cnn_3_channels_forward.1} parent=1 // pred_check
      _
    $region39: #{net_cnn_3_channels_forward.1} parent=1 // pred_check_branch
      %36 = sbr.rel (0) target = $region41
    $region40: #{net_cnn_3_channels_forward.1} parent=1 // pred_region
      _
    $region41: #{net_cnn_3_channels_forward.1} parent=1 // pred_fallthru
      _
    // Predicated region
    $region42: #{net_cnn_3_channels_forward.1} parent=1 // pred_check
      _
    $region43: #{net_cnn_3_channels_forward.1} parent=1 // pred_check_branch
      %38 = sbr.rel (0) target = $region45
    $region44: #{net_cnn_3_channels_forward.1} parent=1 // pred_region
      _
    $region45: #{net_cnn_3_channels_forward.1} parent=1 // pred_fallthru
      _
    %v39 = vld [vmem:[%s2] sm:$0xff]
    %v40 = vld [vmem:[%s2 + $0x8] sm:$0x3]
    %v41 = vld [vmem:[%s0] sm:$0xff]
    %v42 = vld [vmem:[%s0 + $0x8] sm:$0x7f]
    %v43 = vld [vmem:[%s3] sm:$0xff]
    %v44 = vld [vmem:[%s3 + $0x8] sm:$0x3]
    %46 = vset.pattern.permute.xlu0 0
    %47 = vperm.xlu0 %46, %v43
    %v48 = vpop.permute.xlu0 %47
    %51 = vset.pattern.permute.xlu0 0
    %52 = vperm.xlu0 %51, %v44
    %v53 = vpop.permute.xlu0 %52
    %vm55 = vcmask 121856
    %v57 = vsel %vm55, %v39, 0
    %v60 = vsel %vm55, %v40, 0
    %vm62 = vcmask 1046528
    %v64 = vsel %vm62, %v42, 0
    %66 = vmatprep.subr.mxu0 0.0
    %67 = vmatpush1.msra.mxu0 0.0
    %68 = vmatprep.subr.mxu0 0.0
    %69 = vmatpush1.msra.mxu0 0.0
    %70 = vmatprep.subr.mxu0 0.0
    %71 = vmatpush1.msra.mxu0 0.0
    %72 = vmatprep.subr.mxu0 0.0
    %73 = vmatpush1.msra.mxu0 0.0
    %74 = vmatprep.subr.mxu0 0.0
    %75 = vmatpush1.msra.mxu0 0.0
    %76 = vmatprep.subr.mxu0 0.0
    %77 = vmatpush1.msra.mxu0 0.0
    %78 = vmatprep.subr.mxu0 0.0
    %79 = vmatpush1.msra.mxu0 0.0
    %80 = vmatprep.subr.mxu0 0.0
    %81 = vmatpush1.msra.mxu0 0.0
    %82 = vmatprep.subr.mxu0 0.0
    %83 = vmatpush1.msra.mxu0 0.0
    %84 = vmatprep.subr.mxu0 0.0
    %85 = vmatpush1.msra.mxu0 0.0
    %86 = vmatprep.subr.mxu0 0.0
    %87 = vmatpush1.msra.mxu0 0.0
    %88 = vmatprep.subr.mxu0 0.0
    %89 = vmatpush1.msra.mxu0 0.0
    %90 = vmatprep.subr.mxu0 0.0
    %91 = vmatpush1.msra.mxu0 0.0
    %92 = vmatprep.subr.mxu0 0.0
    %93 = vmatpush1.msra.mxu0 0.0
    %94 = vmatprep.subr.mxu0 0.0
    %95 = vmatpush1.msra.mxu0 %v64
    %96 = vmatprep.subr.mxu0 0.0
    %97 = vmatpush1.msra.mxu0 %v41
    %98 = vmatprep.subr.mxu0 0.0
    %99 = vmatpush2.msra.mxu0 0.0
    %100 = vmatprep.subr.mxu0 0.0
    %101 = vmatpush2.msra.mxu0 0.0
    %102 = vmatprep.subr.mxu0 0.0
    %103 = vmatpush2.msra.mxu0 0.0
    %104 = vmatprep.subr.mxu0 0.0
    %105 = vmatpush2.msra.mxu0 0.0
    %106 = vmatprep.subr.mxu0 0.0
    %107 = vmatpush2.msra.mxu0 0.0
    %108 = vmatprep.subr.mxu0 0.0
    %109 = vmatpush2.msra.mxu0 0.0
    %110 = vmatprep.subr.mxu0 0.0
    %111 = vmatpush2.msra.mxu0 0.0
    %112 = vmatprep.subr.mxu0 0.0
    %113 = vmatpush2.msra.mxu0 0.0
    %114 = vmatprep.subr.mxu0 0.0
    %115 = vmatpush2.msra.mxu0 0.0
    %116 = vmatprep.subr.mxu0 0.0
    %117 = vmatpush2.msra.mxu0 0.0
    %118 = vmatprep.subr.mxu0 0.0
    %119 = vmatpush2.msra.mxu0 0.0
    %120 = vmatprep.subr.mxu0 0.0
    %121 = vmatpush2.msra.mxu0 0.0
    %122 = vmatprep.subr.mxu0 0.0
    %123 = vmatpush2.msra.mxu0 0.0
    %124 = vmatprep.subr.mxu0 0.0
    %125 = vmatpush2.msra.mxu0 0.0
    %126 = vmatprep.subr.mxu0 0.0
    %127 = vmatpush2.msra.mxu0 0.0
    %128 = vmatprep.subr.mxu0 0.0
    %129 = vmatpush2.msra.mxu0 0.0
    %130 = vmatprep.mubr.f32.mxu0 0.0
    %131 = vmatmul.mubr.f32.gmra.mxu0 %v57
    %v132 = vpop.f32.mrf.mxu0
    %v133 = vadd.f32 %v48, %v132
    %v134 = vpop.f32.mrf.mxu0
    %135 = vmatprep.mubr.f32.mxu0 0.0
    %136 = vmatmul.mubr.f32.gmra.mxu0 %v60
    %v137 = vpop.f32.mrf.mxu0
    %v138 = vadd.f32 %v53, %v137
    %v139 = vpop.f32.mrf.mxu0
    %140 = vdwg.mxu0
    %v141 = vmax.f32 %v133, 0.0
    %v142 = vmax.f32 %v138, 0.0
    %145 = vrot.lane.b32.xlu0 %v141, 120
    %v146 = vpop.permute.xlu0 %145
    %147 = vrot.lane.b32.xlu0 %v142, 120
    %v148 = vpop.permute.xlu0 %147
    %v151 = vmax.f32 %v141, %v146
    %v152 = vmax.f32 %v142, %v148
    %155 = vrot.lane.b32.xlu0 %v151, 16
    %v156 = vpop.permute.xlu0 %155
    %157 = vrot.lane.b32.xlu0 %v152, 16
    %v158 = vpop.permute.xlu0 %157
    %161 = vrot.lane.b32.xlu0 %v151, 8
    %v162 = vpop.permute.xlu0 %161
    %163 = vrot.lane.b32.xlu0 %v152, 8
    %v164 = vpop.permute.xlu0 %163
    %167 = vrot.lane.b32.xlu0 %v151, 120
    %v168 = vpop.permute.xlu0 %167
    %169 = vrot.lane.b32.xlu0 %v152, 120
    %v170 = vpop.permute.xlu0 %169
    %173 = vrot.lane.b32.xlu0 %v151, 112
    %v174 = vpop.permute.xlu0 %173
    %175 = vrot.lane.b32.xlu0 %v152, 112
    %v176 = vpop.permute.xlu0 %175
    %179 = vrot.lane.b32.xlu0 %v151, 104
    %v180 = vpop.permute.xlu0 %179
    %181 = vrot.lane.b32.xlu0 %v152, 104
    %v182 = vpop.permute.xlu0 %181
    %185 = vrot.lane.b32.xlu0 %v151, 96
    %v186 = vpop.permute.xlu0 %185
    %187 = vrot.lane.b32.xlu0 %v152, 96
    %v188 = vpop.permute.xlu0 %187
    %191 = vrot.lane.b32.xlu0 %v151, 88
    %v192 = vpop.permute.xlu0 %191
    %193 = vrot.lane.b32.xlu0 %v152, 88
    %v194 = vpop.permute.xlu0 %193
    %vm197 = vcmask 130048
    %v198 = vsel %vm197, 0.0, %v156
    %v199 = vsel %vm197, 0.0, %v158
    %vm200 = vcmask 195584
    %v201 = vsel %vm200, %v198, %v162
    %v202 = vsel %vm200, %v199, %v164
    %vm203 = vcmask 261120
    %v204 = vsel %vm203, %v201, %v151
    %v205 = vsel %vm203, %v202, %v152
    %vm206 = vcmask 326656
    %v207 = vsel %vm206, %v204, %v168
    %v208 = vsel %vm206, %v205, %v170
    %vm209 = vcmask 392192
    %v210 = vsel %vm209, %v207, %v174
    %v211 = vsel %vm209, %v208, %v176
    %vm212 = vcmask 457728
    %v213 = vsel %vm212, %v210, %v180
    %v214 = vsel %vm212, %v211, %v182
    %vm215 = vcmask 523264
    %v216 = vsel %vm215, %v213, %v186
    %v217 = vsel %vm215, %v214, %v188
    %vm218 = vcmask 588800
    %v219 = vsel %vm218, %v216, %v192
    %v220 = vsel %vm218, %v217, %v194
    %vm221 = vcmask 654336
    %v222 = vsel %vm221, %v219, 0.0
    %v223 = vsel %vm221, %v220, 0.0
    %v224 = vld [vmem:[%s4] sm:$0xff]
    %v225 = vld [vmem:[%s4 + $0x8] sm:$0xff]
    %v226 = vld [vmem:[%s4 + $0x10] sm:$0xf]
    %s227 = scalar_lea.vmem %s4, 24
    %v228 = vld [vmem:[%s227] sm:$0xff]
    %v229 = vld [vmem:[%s227 + $0x8] sm:$0xff]
    %v230 = vld [vmem:[%s227 + $0x10] sm:$0xf]
    %233 = vrot.lane.b32.xlu0 %v222, 120
    %v234 = vpop.permute.xlu0 %233
    %235 = vrot.lane.b32.xlu0 %v223, 120
    %v236 = vpop.permute.xlu0 %235
    %vm238 = vcmask 80896
    %v240 = vsel %vm238, %v228, 0
    %v243 = vsel %vm238, %v229, 0
    %v246 = vsel %vm238, %v230, 0
    %vm248 = vcmask 1041408
    %v249 = vsel %vm248, %v236, 0
    %251 = vmatprep.subr.mxu0 0.0
    %252 = vmatpush1.msra.mxu0 0.0
    %253 = vmatprep.subr.mxu0 0.0
    %254 = vmatpush1.msra.mxu0 0.0
    %255 = vmatprep.subr.mxu0 0.0
    %256 = vmatpush1.msra.mxu0 0.0
    %257 = vmatprep.subr.mxu0 0.0
    %258 = vmatpush1.msra.mxu0 0.0
    %259 = vmatprep.subr.mxu0 0.0
    %260 = vmatpush1.msra.mxu0 0.0
    %261 = vmatprep.subr.mxu0 0.0
    %262 = vmatpush1.msra.mxu0 0.0
    %263 = vmatprep.subr.mxu0 0.0
    %264 = vmatpush1.msra.mxu0 0.0
    %265 = vmatprep.subr.mxu0 0.0
    %266 = vmatpush1.msra.mxu0 0.0
    %267 = vmatprep.subr.mxu0 0.0
    %268 = vmatpush1.msra.mxu0 0.0
    %269 = vmatprep.subr.mxu0 0.0
    %270 = vmatpush1.msra.mxu0 0.0
    %271 = vmatprep.subr.mxu0 0.0
    %272 = vmatpush1.msra.mxu0 0.0
    %273 = vmatprep.subr.mxu0 0.0
    %274 = vmatpush1.msra.mxu0 0.0
    %275 = vmatprep.subr.mxu0 0.0
    %276 = vmatpush1.msra.mxu0 0.0
    %277 = vmatprep.subr.mxu0 0.0
    %278 = vmatpush1.msra.mxu0 0.0
    %279 = vmatprep.subr.mxu0 0.0
    %280 = vmatpush1.msra.mxu0 %v249
    %281 = vmatprep.subr.mxu0 0.0
    %282 = vmatpush1.msra.mxu0 %v234
    %283 = vmatprep.subr.mxu0 0.0
    %284 = vmatpush2.msra.mxu0 0.0
    %285 = vmatprep.subr.mxu0 0.0
    %286 = vmatpush2.msra.mxu0 0.0
    %287 = vmatprep.subr.mxu0 0.0
    %288 = vmatpush2.msra.mxu0 0.0
    %289 = vmatprep.subr.mxu0 0.0
    %290 = vmatpush2.msra.mxu0 0.0
    %291 = vmatprep.subr.mxu0 0.0
    %292 = vmatpush2.msra.mxu0 0.0
    %293 = vmatprep.subr.mxu0 0.0
    %294 = vmatpush2.msra.mxu0 0.0
    %295 = vmatprep.subr.mxu0 0.0
    %296 = vmatpush2.msra.mxu0 0.0
    %297 = vmatprep.subr.mxu0 0.0
    %298 = vmatpush2.msra.mxu0 0.0
    %299 = vmatprep.subr.mxu0 0.0
    %300 = vmatpush2.msra.mxu0 0.0
    %301 = vmatprep.subr.mxu0 0.0
    %302 = vmatpush2.msra.mxu0 0.0
    %303 = vmatprep.subr.mxu0 0.0
    %304 = vmatpush2.msra.mxu0 0.0
    %305 = vmatprep.subr.mxu0 0.0
    %306 = vmatpush2.msra.mxu0 0.0
    %307 = vmatprep.subr.mxu0 0.0
    %308 = vmatpush2.msra.mxu0 0.0
    %309 = vmatprep.subr.mxu0 0.0
    %310 = vmatpush2.msra.mxu0 0.0
    %311 = vmatprep.subr.mxu0 0.0
    %312 = vmatpush2.msra.mxu0 0.0
    %313 = vmatprep.subr.mxu0 0.0
    %314 = vmatpush2.msra.mxu0 0.0
    %315 = vmatprep.mubr.f32.mxu0 0.0
    %316 = vmatmul.mubr.f32.gmra.mxu0 %v240
    %v317 = vpop.f32.mrf.mxu0
    %v318 = vadd.f32 0.0, %v317
    %v319 = vpop.f32.mrf.mxu0
    %320 = vmatprep.mubr.f32.mxu0 0.0
    %321 = vmatmul.mubr.f32.gmra.mxu0 %v243
    %v322 = vpop.f32.mrf.mxu0
    %v323 = vadd.f32 0.0, %v322
    %v324 = vpop.f32.mrf.mxu0
    %325 = vmatprep.mubr.f32.mxu0 0.0
    %326 = vmatmul.mubr.f32.gmra.mxu0 %v246
    %v327 = vpop.f32.mrf.mxu0
    %v328 = vadd.f32 0.0, %v327
    %v329 = vpop.f32.mrf.mxu0
    %330 = vdwg.mxu0
    %v332 = vsel %vm238, %v224, 0
    %v335 = vsel %vm238, %v225, 0
    %v338 = vsel %vm238, %v226, 0
    %v340 = vsel %vm248, %v223, 0
    %342 = vmatprep.subr.mxu0 0.0
    %343 = vmatpush1.msra.mxu0 0.0
    %344 = vmatprep.subr.mxu0 0.0
    %345 = vmatpush1.msra.mxu0 0.0
    %346 = vmatprep.subr.mxu0 0.0
    %347 = vmatpush1.msra.mxu0 0.0
    %348 = vmatprep.subr.mxu0 0.0
    %349 = vmatpush1.msra.mxu0 0.0
    %350 = vmatprep.subr.mxu0 0.0
    %351 = vmatpush1.msra.mxu0 0.0
    %352 = vmatprep.subr.mxu0 0.0
    %353 = vmatpush1.msra.mxu0 0.0
    %354 = vmatprep.subr.mxu0 0.0
    %355 = vmatpush1.msra.mxu0 0.0
    %356 = vmatprep.subr.mxu0 0.0
    %357 = vmatpush1.msra.mxu0 0.0
    %358 = vmatprep.subr.mxu0 0.0
    %359 = vmatpush1.msra.mxu0 0.0
    %360 = vmatprep.subr.mxu0 0.0
    %361 = vmatpush1.msra.mxu0 0.0
    %362 = vmatprep.subr.mxu0 0.0
    %363 = vmatpush1.msra.mxu0 0.0
    %364 = vmatprep.subr.mxu0 0.0
    %365 = vmatpush1.msra.mxu0 0.0
    %366 = vmatprep.subr.mxu0 0.0
    %367 = vmatpush1.msra.mxu0 0.0
    %368 = vmatprep.subr.mxu0 0.0
    %369 = vmatpush1.msra.mxu0 0.0
    %370 = vmatprep.subr.mxu0 0.0
    %371 = vmatpush1.msra.mxu0 %v340
    %372 = vmatprep.subr.mxu0 0.0
    %373 = vmatpush1.msra.mxu0 %v222
    %374 = vmatprep.subr.mxu0 0.0
    %375 = vmatpush2.msra.mxu0 0.0
    %376 = vmatprep.subr.mxu0 0.0
    %377 = vmatpush2.msra.mxu0 0.0
    %378 = vmatprep.subr.mxu0 0.0
    %379 = vmatpush2.msra.mxu0 0.0
    %380 = vmatprep.subr.mxu0 0.0
    %381 = vmatpush2.msra.mxu0 0.0
    %382 = vmatprep.subr.mxu0 0.0
    %383 = vmatpush2.msra.mxu0 0.0
    %384 = vmatprep.subr.mxu0 0.0
    %385 = vmatpush2.msra.mxu0 0.0
    %386 = vmatprep.subr.mxu0 0.0
    %387 = vmatpush2.msra.mxu0 0.0
    %388 = vmatprep.subr.mxu0 0.0
    %389 = vmatpush2.msra.mxu0 0.0
    %390 = vmatprep.subr.mxu0 0.0
    %391 = vmatpush2.msra.mxu0 0.0
    %392 = vmatprep.subr.mxu0 0.0
    %393 = vmatpush2.msra.mxu0 0.0
    %394 = vmatprep.subr.mxu0 0.0
    %395 = vmatpush2.msra.mxu0 0.0
    %396 = vmatprep.subr.mxu0 0.0
    %397 = vmatpush2.msra.mxu0 0.0
    %398 = vmatprep.subr.mxu0 0.0
    %399 = vmatpush2.msra.mxu0 0.0
    %400 = vmatprep.subr.mxu0 0.0
    %401 = vmatpush2.msra.mxu0 0.0
    %402 = vmatprep.subr.mxu0 0.0
    %403 = vmatpush2.msra.mxu0 0.0
    %404 = vmatprep.subr.mxu0 0.0
    %405 = vmatpush2.msra.mxu0 0.0
    %406 = vmatprep.mubr.f32.mxu0 0.0
    %407 = vmatmul.mubr.f32.gmra.mxu0 %v332
    %v408 = vpop.f32.mrf.mxu0
    %v409 = vadd.f32 %v318, %v408
    %v410 = vpop.f32.mrf.mxu0
    %411 = vmatprep.mubr.f32.mxu0 0.0
    %412 = vmatmul.mubr.f32.gmra.mxu0 %v335
    %v413 = vpop.f32.mrf.mxu0
    %v414 = vadd.f32 %v323, %v413
    %v415 = vpop.f32.mrf.mxu0
    %416 = vmatprep.mubr.f32.mxu0 0.0
    %417 = vmatmul.mubr.f32.gmra.mxu0 %v338
    %v418 = vpop.f32.mrf.mxu0
    %v419 = vadd.f32 %v328, %v418
    %v420 = vpop.f32.mrf.mxu0
    %421 = vdwg.mxu0
    %s422 = scalar_lea.vmem %s4, 48
    %v423 = vld [vmem:[%s422] sm:$0xff]
    %v424 = vld [vmem:[%s422 + $0x8] sm:$0xff]
    %v425 = vld [vmem:[%s422 + $0x10] sm:$0xf]
    %426 = vrot.lane.b32.xlu0 %v222, 112
    %v427 = vpop.permute.xlu0 %426
    %428 = vrot.lane.b32.xlu0 %v223, 112
    %v429 = vpop.permute.xlu0 %428
    %v432 = vsel %vm238, %v423, 0
    %v435 = vsel %vm238, %v424, 0
    %v438 = vsel %vm238, %v425, 0
    %v440 = vsel %vm248, %v429, 0
    %442 = vmatprep.subr.mxu0 0.0
    %443 = vmatpush1.msra.mxu0 0.0
    %444 = vmatprep.subr.mxu0 0.0
    %445 = vmatpush1.msra.mxu0 0.0
    %446 = vmatprep.subr.mxu0 0.0
    %447 = vmatpush1.msra.mxu0 0.0
    %448 = vmatprep.subr.mxu0 0.0
    %449 = vmatpush1.msra.mxu0 0.0
    %450 = vmatprep.subr.mxu0 0.0
    %451 = vmatpush1.msra.mxu0 0.0
    %452 = vmatprep.subr.mxu0 0.0
    %453 = vmatpush1.msra.mxu0 0.0
    %454 = vmatprep.subr.mxu0 0.0
    %455 = vmatpush1.msra.mxu0 0.0
    %456 = vmatprep.subr.mxu0 0.0
    %457 = vmatpush1.msra.mxu0 0.0
    %458 = vmatprep.subr.mxu0 0.0
    %459 = vmatpush1.msra.mxu0 0.0
    %460 = vmatprep.subr.mxu0 0.0
    %461 = vmatpush1.msra.mxu0 0.0
    %462 = vmatprep.subr.mxu0 0.0
    %463 = vmatpush1.msra.mxu0 0.0
    %464 = vmatprep.subr.mxu0 0.0
    %465 = vmatpush1.msra.mxu0 0.0
    %466 = vmatprep.subr.mxu0 0.0
    %467 = vmatpush1.msra.mxu0 0.0
    %468 = vmatprep.subr.mxu0 0.0
    %469 = vmatpush1.msra.mxu0 0.0
    %470 = vmatprep.subr.mxu0 0.0
    %471 = vmatpush1.msra.mxu0 %v440
    %472 = vmatprep.subr.mxu0 0.0
    %473 = vmatpush1.msra.mxu0 %v427
    %474 = vmatprep.subr.mxu0 0.0
    %475 = vmatpush2.msra.mxu0 0.0
    %476 = vmatprep.subr.mxu0 0.0
    %477 = vmatpush2.msra.mxu0 0.0
    %478 = vmatprep.subr.mxu0 0.0
    %479 = vmatpush2.msra.mxu0 0.0
    %480 = vmatprep.subr.mxu0 0.0
    %481 = vmatpush2.msra.mxu0 0.0
    %482 = vmatprep.subr.mxu0 0.0
    %483 = vmatpush2.msra.mxu0 0.0
    %484 = vmatprep.subr.mxu0 0.0
    %485 = vmatpush2.msra.mxu0 0.0
    %486 = vmatprep.subr.mxu0 0.0
    %487 = vmatpush2.msra.mxu0 0.0
    %488 = vmatprep.subr.mxu0 0.0
    %489 = vmatpush2.msra.mxu0 0.0
    %490 = vmatprep.subr.mxu0 0.0
    %491 = vmatpush2.msra.mxu0 0.0
    %492 = vmatprep.subr.mxu0 0.0
    %493 = vmatpush2.msra.mxu0 0.0
    %494 = vmatprep.subr.mxu0 0.0
    %495 = vmatpush2.msra.mxu0 0.0
    %496 = vmatprep.subr.mxu0 0.0
    %497 = vmatpush2.msra.mxu0 0.0
    %498 = vmatprep.subr.mxu0 0.0
    %499 = vmatpush2.msra.mxu0 0.0
    %500 = vmatprep.subr.mxu0 0.0
    %501 = vmatpush2.msra.mxu0 0.0
    %502 = vmatprep.subr.mxu0 0.0
    %503 = vmatpush2.msra.mxu0 0.0
    %504 = vmatprep.subr.mxu0 0.0
    %505 = vmatpush2.msra.mxu0 0.0
    %506 = vmatprep.mubr.f32.mxu0 0.0
    %507 = vmatmul.mubr.f32.gmra.mxu0 %v432
    %v508 = vpop.f32.mrf.mxu0
    %v509 = vadd.f32 0.0, %v508
    %v510 = vpop.f32.mrf.mxu0
    %511 = vmatprep.mubr.f32.mxu0 0.0
    %512 = vmatmul.mubr.f32.gmra.mxu0 %v435
    %v513 = vpop.f32.mrf.mxu0
    %v514 = vadd.f32 0.0, %v513
    %v515 = vpop.f32.mrf.mxu0
    %516 = vmatprep.mubr.f32.mxu0 0.0
    %517 = vmatmul.mubr.f32.gmra.mxu0 %v438
    %v518 = vpop.f32.mrf.mxu0
    %v519 = vadd.f32 0.0, %v518
    %v520 = vpop.f32.mrf.mxu0
    %521 = vdwg.mxu0
    %v522 = vadd.f32 %v409, %v509
    %v523 = vadd.f32 %v414, %v514
    %v524 = vadd.f32 %v419, %v519
    %s525 = scalar_lea.vmem %s4, 72
    %v526 = vld [vmem:[%s525] sm:$0xff]
    %v527 = vld [vmem:[%s525 + $0x8] sm:$0xff]
    %v528 = vld [vmem:[%s525 + $0x10] sm:$0xf]
    %529 = vrot.lane.b32.xlu0 %v222, 104
    %v530 = vpop.permute.xlu0 %529
    %531 = vrot.lane.b32.xlu0 %v223, 104
    %v532 = vpop.permute.xlu0 %531
    %v535 = vsel %vm238, %v526, 0
    %v538 = vsel %vm238, %v527, 0
    %v541 = vsel %vm238, %v528, 0
    %v543 = vsel %vm248, %v532, 0
    %545 = vmatprep.subr.mxu0 0.0
    %546 = vmatpush1.msra.mxu0 0.0
    %547 = vmatprep.subr.mxu0 0.0
    %548 = vmatpush1.msra.mxu0 0.0
    %549 = vmatprep.subr.mxu0 0.0
    %550 = vmatpush1.msra.mxu0 0.0
    %551 = vmatprep.subr.mxu0 0.0
    %552 = vmatpush1.msra.mxu0 0.0
    %553 = vmatprep.subr.mxu0 0.0
    %554 = vmatpush1.msra.mxu0 0.0
    %555 = vmatprep.subr.mxu0 0.0
    %556 = vmatpush1.msra.mxu0 0.0
    %557 = vmatprep.subr.mxu0 0.0
    %558 = vmatpush1.msra.mxu0 0.0
    %559 = vmatprep.subr.mxu0 0.0
    %560 = vmatpush1.msra.mxu0 0.0
    %561 = vmatprep.subr.mxu0 0.0
    %562 = vmatpush1.msra.mxu0 0.0
    %563 = vmatprep.subr.mxu0 0.0
    %564 = vmatpush1.msra.mxu0 0.0
    %565 = vmatprep.subr.mxu0 0.0
    %566 = vmatpush1.msra.mxu0 0.0
    %567 = vmatprep.subr.mxu0 0.0
    %568 = vmatpush1.msra.mxu0 0.0
    %569 = vmatprep.subr.mxu0 0.0
    %570 = vmatpush1.msra.mxu0 0.0
    %571 = vmatprep.subr.mxu0 0.0
    %572 = vmatpush1.msra.mxu0 0.0
    %573 = vmatprep.subr.mxu0 0.0
    %574 = vmatpush1.msra.mxu0 %v543
    %575 = vmatprep.subr.mxu0 0.0
    %576 = vmatpush1.msra.mxu0 %v530
    %577 = vmatprep.subr.mxu0 0.0
    %578 = vmatpush2.msra.mxu0 0.0
    %579 = vmatprep.subr.mxu0 0.0
    %580 = vmatpush2.msra.mxu0 0.0
    %581 = vmatprep.subr.mxu0 0.0
    %582 = vmatpush2.msra.mxu0 0.0
    %583 = vmatprep.subr.mxu0 0.0
    %584 = vmatpush2.msra.mxu0 0.0
    %585 = vmatprep.subr.mxu0 0.0
    %586 = vmatpush2.msra.mxu0 0.0
    %587 = vmatprep.subr.mxu0 0.0
    %588 = vmatpush2.msra.mxu0 0.0
    %589 = vmatprep.subr.mxu0 0.0
    %590 = vmatpush2.msra.mxu0 0.0
    %591 = vmatprep.subr.mxu0 0.0
    %592 = vmatpush2.msra.mxu0 0.0
    %593 = vmatprep.subr.mxu0 0.0
    %594 = vmatpush2.msra.mxu0 0.0
    %595 = vmatprep.subr.mxu0 0.0
    %596 = vmatpush2.msra.mxu0 0.0
    %597 = vmatprep.subr.mxu0 0.0
    %598 = vmatpush2.msra.mxu0 0.0
    %599 = vmatprep.subr.mxu0 0.0
    %600 = vmatpush2.msra.mxu0 0.0
    %601 = vmatprep.subr.mxu0 0.0
    %602 = vmatpush2.msra.mxu0 0.0
    %603 = vmatprep.subr.mxu0 0.0
    %604 = vmatpush2.msra.mxu0 0.0
    %605 = vmatprep.subr.mxu0 0.0
    %606 = vmatpush2.msra.mxu0 0.0
    %607 = vmatprep.subr.mxu0 0.0
    %608 = vmatpush2.msra.mxu0 0.0
    %609 = vmatprep.mubr.f32.mxu0 0.0
    %610 = vmatmul.mubr.f32.gmra.mxu0 %v535
    %v611 = vpop.f32.mrf.mxu0
    %v612 = vadd.f32 0.0, %v611
    %v613 = vpop.f32.mrf.mxu0
    %614 = vmatprep.mubr.f32.mxu0 0.0
    %615 = vmatmul.mubr.f32.gmra.mxu0 %v538
    %v616 = vpop.f32.mrf.mxu0
    %v617 = vadd.f32 0.0, %v616
    %v618 = vpop.f32.mrf.mxu0
    %619 = vmatprep.mubr.f32.mxu0 0.0
    %620 = vmatmul.mubr.f32.gmra.mxu0 %v541
    %v621 = vpop.f32.mrf.mxu0
    %v622 = vadd.f32 0.0, %v621
    %v623 = vpop.f32.mrf.mxu0
    %624 = vdwg.mxu0
    %v625 = vadd.f32 %v522, %v612
    %v626 = vadd.f32 %v523, %v617
    %v627 = vadd.f32 %v524, %v622
    %s628 = scalar_lea.vmem %s4, 96
    %v629 = vld [vmem:[%s628] sm:$0xff]
    %v630 = vld [vmem:[%s628 + $0x8] sm:$0xff]
    %v631 = vld [vmem:[%s628 + $0x10] sm:$0xf]
    %632 = vrot.lane.b32.xlu0 %v222, 96
    %v633 = vpop.permute.xlu0 %632
    %634 = vrot.lane.b32.xlu0 %v223, 96
    %v635 = vpop.permute.xlu0 %634
    %v638 = vsel %vm238, %v629, 0
    %v641 = vsel %vm238, %v630, 0
    %v644 = vsel %vm238, %v631, 0
    %v646 = vsel %vm248, %v635, 0
    %648 = vmatprep.subr.mxu0 0.0
    %649 = vmatpush1.msra.mxu0 0.0
    %650 = vmatprep.subr.mxu0 0.0
    %651 = vmatpush1.msra.mxu0 0.0
    %652 = vmatprep.subr.mxu0 0.0
    %653 = vmatpush1.msra.mxu0 0.0
    %654 = vmatprep.subr.mxu0 0.0
    %655 = vmatpush1.msra.mxu0 0.0
    %656 = vmatprep.subr.mxu0 0.0
    %657 = vmatpush1.msra.mxu0 0.0
    %658 = vmatprep.subr.mxu0 0.0
    %659 = vmatpush1.msra.mxu0 0.0
    %660 = vmatprep.subr.mxu0 0.0
    %661 = vmatpush1.msra.mxu0 0.0
    %662 = vmatprep.subr.mxu0 0.0
    %663 = vmatpush1.msra.mxu0 0.0
    %664 = vmatprep.subr.mxu0 0.0
    %665 = vmatpush1.msra.mxu0 0.0
    %666 = vmatprep.subr.mxu0 0.0
    %667 = vmatpush1.msra.mxu0 0.0
    %668 = vmatprep.subr.mxu0 0.0
    %669 = vmatpush1.msra.mxu0 0.0
    %670 = vmatprep.subr.mxu0 0.0
    %671 = vmatpush1.msra.mxu0 0.0
    %672 = vmatprep.subr.mxu0 0.0
    %673 = vmatpush1.msra.mxu0 0.0
    %674 = vmatprep.subr.mxu0 0.0
    %675 = vmatpush1.msra.mxu0 0.0
    %676 = vmatprep.subr.mxu0 0.0
    %677 = vmatpush1.msra.mxu0 %v646
    %678 = vmatprep.subr.mxu0 0.0
    %679 = vmatpush1.msra.mxu0 %v633
    %680 = vmatprep.subr.mxu0 0.0
    %681 = vmatpush2.msra.mxu0 0.0
    %682 = vmatprep.subr.mxu0 0.0
    %683 = vmatpush2.msra.mxu0 0.0
    %684 = vmatprep.subr.mxu0 0.0
    %685 = vmatpush2.msra.mxu0 0.0
    %686 = vmatprep.subr.mxu0 0.0
    %687 = vmatpush2.msra.mxu0 0.0
    %688 = vmatprep.subr.mxu0 0.0
    %689 = vmatpush2.msra.mxu0 0.0
    %690 = vmatprep.subr.mxu0 0.0
    %691 = vmatpush2.msra.mxu0 0.0
    %692 = vmatprep.subr.mxu0 0.0
    %693 = vmatpush2.msra.mxu0 0.0
    %694 = vmatprep.subr.mxu0 0.0
    %695 = vmatpush2.msra.mxu0 0.0
    %696 = vmatprep.subr.mxu0 0.0
    %697 = vmatpush2.msra.mxu0 0.0
    %698 = vmatprep.subr.mxu0 0.0
    %699 = vmatpush2.msra.mxu0 0.0
    %700 = vmatprep.subr.mxu0 0.0
    %701 = vmatpush2.msra.mxu0 0.0
    %702 = vmatprep.subr.mxu0 0.0
    %703 = vmatpush2.msra.mxu0 0.0
    %704 = vmatprep.subr.mxu0 0.0
    %705 = vmatpush2.msra.mxu0 0.0
    %706 = vmatprep.subr.mxu0 0.0
    %707 = vmatpush2.msra.mxu0 0.0
    %708 = vmatprep.subr.mxu0 0.0
    %709 = vmatpush2.msra.mxu0 0.0
    %710 = vmatprep.subr.mxu0 0.0
    %711 = vmatpush2.msra.mxu0 0.0
    %712 = vmatprep.mubr.f32.mxu0 0.0
    %713 = vmatmul.mubr.f32.gmra.mxu0 %v638
    %v714 = vpop.f32.mrf.mxu0
    %v715 = vadd.f32 0.0, %v714
    %v716 = vpop.f32.mrf.mxu0
    %717 = vmatprep.mubr.f32.mxu0 0.0
    %718 = vmatmul.mubr.f32.gmra.mxu0 %v641
    %v719 = vpop.f32.mrf.mxu0
    %v720 = vadd.f32 0.0, %v719
    %v721 = vpop.f32.mrf.mxu0
    %722 = vmatprep.mubr.f32.mxu0 0.0
    %723 = vmatmul.mubr.f32.gmra.mxu0 %v644
    %v724 = vpop.f32.mrf.mxu0
    %v725 = vadd.f32 0.0, %v724
    %v726 = vpop.f32.mrf.mxu0
    %727 = vdwg.mxu0
    %v728 = vadd.f32 %v625, %v715
    %v729 = vadd.f32 %v626, %v720
    %v730 = vadd.f32 %v627, %v725
    %v731 = vld [vmem:[%s5] sm:$0xff]
    %v732 = vld [vmem:[%s5 + $0x8] sm:$0xff]
    %v733 = vld [vmem:[%s5 + $0x10] sm:$0xf]
    %735 = vset.pattern.permute.xlu0 0
    %736 = vperm.xlu0 %735, %v731
    %v737 = vpop.permute.xlu0 %736
    %740 = vset.pattern.permute.xlu0 0
    %741 = vperm.xlu0 %740, %v732
    %v742 = vpop.permute.xlu0 %741
    %745 = vset.pattern.permute.xlu0 0
    %746 = vperm.xlu0 %745, %v733
    %v747 = vpop.permute.xlu0 %746
    %v749 = vadd.f32 %v728, %v737
    %v750 = vadd.f32 %v729, %v742
    %v751 = vadd.f32 %v730, %v747
    %v752 = vmax.f32 %v749, 0.0
    %v753 = vmax.f32 %v750, 0.0
    %v754 = vmax.f32 %v751, 0.0
    %v755 = vld [vmem:[%s7] sm:$0xff]
    %v756 = vld [vmem:[%s7 + $0x8] sm:$0xff]
    %v757 = vld [vmem:[%s7 + $0x10] sm:$0xff]
    %v758 = vld [vmem:[%s7 + $0x18] sm:$0xff]
    %v759 = vld [vmem:[%s7 + $0x20] sm:$0xff]
    %v760 = vld [vmem:[%s7 + $0x28] sm:$0xff]
    %v761 = vld [vmem:[%s7 + $0x30] sm:$0xff]
    %v762 = vld [vmem:[%s7 + $0x38] sm:$0xff]
    %v763 = vld [vmem:[%s7 + $0x40] sm:$0xff]
    %v764 = vld [vmem:[%s7 + $0x48] sm:$0xff]
    %v765 = vld [vmem:[%s7 + $0x50] sm:$0xff]
    %v766 = vld [vmem:[%s7 + $0x58] sm:$0xff]
    %v767 = vld [vmem:[%s7 + $0x60] sm:$0xff]
    %v768 = vld [vmem:[%s7 + $0x68] sm:$0xff]
    %v769 = vld [vmem:[%s7 + $0x70] sm:$0xff]
    %v770 = vld [vmem:[%s7 + $0x78] sm:$0xff]
    %v771 = vld [vmem:[%s7 + $0x80] sm:$0xff]
    %v772 = vld [vmem:[%s7 + $0x88] sm:$0xff]
    %v773 = vld [vmem:[%s7 + $0x90] sm:$0xff]
    %v774 = vld [vmem:[%s7 + $0x98] sm:$0xff]
    %v775 = vld [vmem:[%s7 + $0xa0] sm:$0xff]
    %v776 = vld [vmem:[%s7 + $0xa8] sm:$0xff]
    %v777 = vld [vmem:[%s7 + $0xb0] sm:$0xff]
    %v778 = vld [vmem:[%s7 + $0xb8] sm:$0xff]
    %v779 = vld [vmem:[%s7 + $0xc0] sm:$0xff]
    %v780 = vld [vmem:[%s7 + $0xc8] sm:$0xff]
    %v781 = vld [vmem:[%s7 + $0xd0] sm:$0xff]
    %v782 = vld [vmem:[%s7 + $0xd8] sm:$0xff]
    %v783 = vld [vmem:[%s7 + $0xe0] sm:$0xff]
    %v784 = vld [vmem:[%s7 + $0xe8] sm:$0xff]
    %v785 = vld [vmem:[%s7 + $0xf0] sm:$0xff]
    %v786 = vld [vmem:[%s7 + $0xf8] sm:$0xff]
    %v787 = vld [vmem:[%s1] sm:$0x1]
    %789 = vset.pattern.permute.xlu0 0
    %790 = vperm.xlu0 %789, %v755
    %v791 = vpop.permute.xlu0 %790
    %794 = vset.pattern.permute.xlu0 0
    %795 = vperm.xlu0 %794, %v756
    %v796 = vpop.permute.xlu0 %795
    %799 = vset.pattern.permute.xlu0 0
    %800 = vperm.xlu0 %799, %v757
    %v801 = vpop.permute.xlu0 %800
    %804 = vset.pattern.permute.xlu0 0
    %805 = vperm.xlu0 %804, %v758
    %v806 = vpop.permute.xlu0 %805
    %809 = vset.pattern.permute.xlu0 0
    %810 = vperm.xlu0 %809, %v759
    %v811 = vpop.permute.xlu0 %810
    %814 = vset.pattern.permute.xlu0 0
    %815 = vperm.xlu0 %814, %v760
    %v816 = vpop.permute.xlu0 %815
    %819 = vset.pattern.permute.xlu0 0
    %820 = vperm.xlu0 %819, %v761
    %v821 = vpop.permute.xlu0 %820
    %824 = vset.pattern.permute.xlu0 0
    %825 = vperm.xlu0 %824, %v762
    %v826 = vpop.permute.xlu0 %825
    %829 = vset.pattern.permute.xlu0 0
    %830 = vperm.xlu0 %829, %v763
    %v831 = vpop.permute.xlu0 %830
    %834 = vset.pattern.permute.xlu0 0
    %835 = vperm.xlu0 %834, %v764
    %v836 = vpop.permute.xlu0 %835
    %839 = vset.pattern.permute.xlu0 0
    %840 = vperm.xlu0 %839, %v765
    %v841 = vpop.permute.xlu0 %840
    %844 = vset.pattern.permute.xlu0 0
    %845 = vperm.xlu0 %844, %v766
    %v846 = vpop.permute.xlu0 %845
    %849 = vset.pattern.permute.xlu0 0
    %850 = vperm.xlu0 %849, %v767
    %v851 = vpop.permute.xlu0 %850
    %854 = vset.pattern.permute.xlu0 0
    %855 = vperm.xlu0 %854, %v768
    %v856 = vpop.permute.xlu0 %855
    %859 = vset.pattern.permute.xlu0 0
    %860 = vperm.xlu0 %859, %v769
    %v861 = vpop.permute.xlu0 %860
    %864 = vset.pattern.permute.xlu0 0
    %865 = vperm.xlu0 %864, %v770
    %v866 = vpop.permute.xlu0 %865
    %869 = vset.pattern.permute.xlu0 0
    %870 = vperm.xlu0 %869, %v771
    %v871 = vpop.permute.xlu0 %870
    %874 = vset.pattern.permute.xlu0 0
    %875 = vperm.xlu0 %874, %v772
    %v876 = vpop.permute.xlu0 %875
    %879 = vset.pattern.permute.xlu0 0
    %880 = vperm.xlu0 %879, %v773
    %v881 = vpop.permute.xlu0 %880
    %884 = vset.pattern.permute.xlu0 0
    %885 = vperm.xlu0 %884, %v774
    %v886 = vpop.permute.xlu0 %885
    %889 = vset.pattern.permute.xlu0 0
    %890 = vperm.xlu0 %889, %v775
    %v891 = vpop.permute.xlu0 %890
    %894 = vset.pattern.permute.xlu0 0
    %895 = vperm.xlu0 %894, %v776
    %v896 = vpop.permute.xlu0 %895
    %899 = vset.pattern.permute.xlu0 0
    %900 = vperm.xlu0 %899, %v777
    %v901 = vpop.permute.xlu0 %900
    %904 = vset.pattern.permute.xlu0 0
    %905 = vperm.xlu0 %904, %v778
    %v906 = vpop.permute.xlu0 %905
    %909 = vset.pattern.permute.xlu0 0
    %910 = vperm.xlu0 %909, %v779
    %v911 = vpop.permute.xlu0 %910
    %914 = vset.pattern.permute.xlu0 0
    %915 = vperm.xlu0 %914, %v780
    %v916 = vpop.permute.xlu0 %915
    %919 = vset.pattern.permute.xlu0 0
    %920 = vperm.xlu0 %919, %v781
    %v921 = vpop.permute.xlu0 %920
    %924 = vset.pattern.permute.xlu0 0
    %925 = vperm.xlu0 %924, %v782
    %v926 = vpop.permute.xlu0 %925
    %929 = vset.pattern.permute.xlu0 0
    %930 = vperm.xlu0 %929, %v783
    %v931 = vpop.permute.xlu0 %930
    %934 = vset.pattern.permute.xlu0 0
    %935 = vperm.xlu0 %934, %v784
    %v936 = vpop.permute.xlu0 %935
    %939 = vset.pattern.permute.xlu0 0
    %940 = vperm.xlu0 %939, %v785
    %v941 = vpop.permute.xlu0 %940
    %944 = vset.pattern.permute.xlu0 0
    %945 = vperm.xlu0 %944, %v786
    %v946 = vpop.permute.xlu0 %945
    %v949 = vlaneseq
    %v950 = vshrl.u32 %v949, 7
    %v951 = vsub.s32 0, %v950
    %v952 = vrot.slane %v787, %v951
    %v954 = vmul.f32 %v791, %v952
    %v955 = vmul.f32 %v796, %v952
    %v956 = vmul.f32 %v801, %v952
    %v957 = vmul.f32 %v806, %v952
    %v958 = vmul.f32 %v811, %v952
    %v959 = vmul.f32 %v816, %v952
    %v960 = vmul.f32 %v821, %v952
    %v961 = vmul.f32 %v826, %v952
    %v962 = vmul.f32 %v831, %v952
    %v963 = vmul.f32 %v836, %v952
    %v964 = vmul.f32 %v841, %v952
    %v965 = vmul.f32 %v846, %v952
    %v966 = vmul.f32 %v851, %v952
    %v967 = vmul.f32 %v856, %v952
    %v968 = vmul.f32 %v861, %v952
    %v969 = vmul.f32 %v866, %v952
    %v970 = vmul.f32 %v871, %v952
    %v971 = vmul.f32 %v876, %v952
    %v972 = vmul.f32 %v881, %v952
    %v973 = vmul.f32 %v886, %v952
    %v974 = vmul.f32 %v891, %v952
    %v975 = vmul.f32 %v896, %v952
    %v976 = vmul.f32 %v901, %v952
    %v977 = vmul.f32 %v906, %v952
    %v978 = vmul.f32 %v911, %v952
    %v979 = vmul.f32 %v916, %v952
    %v980 = vmul.f32 %v921, %v952
    %v981 = vmul.f32 %v926, %v952
    %v982 = vmul.f32 %v931, %v952
    %v983 = vmul.f32 %v936, %v952
    %v984 = vmul.f32 %v941, %v952
    %v985 = vmul.f32 %v946, %v952
    %v986 = vld [vmem:[%s8] sm:$0xff]
    %v987 = vld [vmem:[%s8 + $0x8] sm:$0xff]
    %v988 = vld [vmem:[%s8 + $0x10] sm:$0xff]
    %v989 = vld [vmem:[%s8 + $0x18] sm:$0xff]
    %v990 = vld [vmem:[%s8 + $0x20] sm:$0xff]
    %v991 = vld [vmem:[%s8 + $0x28] sm:$0xff]
    %v992 = vld [vmem:[%s8 + $0x30] sm:$0xff]
    %v993 = vld [vmem:[%s8 + $0x38] sm:$0xff]
    %v994 = vld [vmem:[%s8 + $0x40] sm:$0xff]
    %v995 = vld [vmem:[%s8 + $0x48] sm:$0xff]
    %v996 = vld [vmem:[%s8 + $0x50] sm:$0xff]
    %v997 = vld [vmem:[%s8 + $0x58] sm:$0xff]
    %v998 = vld [vmem:[%s8 + $0x60] sm:$0xff]
    %v999 = vld [vmem:[%s8 + $0x68] sm:$0xff]
    %v1000 = vld [vmem:[%s8 + $0x70] sm:$0xff]
    %v1001 = vld [vmem:[%s8 + $0x78] sm:$0xff]
    %v1002 = vld [vmem:[%s8 + $0x80] sm:$0xff]
    %v1003 = vld [vmem:[%s8 + $0x88] sm:$0xff]
    %v1004 = vld [vmem:[%s8 + $0x90] sm:$0xff]
    %v1005 = vld [vmem:[%s8 + $0x98] sm:$0xff]
    %v1006 = vld [vmem:[%s8 + $0xa0] sm:$0xff]
    %v1007 = vld [vmem:[%s8 + $0xa8] sm:$0xff]
    %v1008 = vld [vmem:[%s8 + $0xb0] sm:$0xff]
    %v1009 = vld [vmem:[%s8 + $0xb8] sm:$0xff]
    %v1010 = vld [vmem:[%s8 + $0xc0] sm:$0xff]
    %v1011 = vld [vmem:[%s8 + $0xc8] sm:$0xff]
    %v1012 = vld [vmem:[%s8 + $0xd0] sm:$0xff]
    %v1013 = vld [vmem:[%s8 + $0xd8] sm:$0xff]
    %v1014 = vld [vmem:[%s8 + $0xe0] sm:$0xff]
    %v1015 = vld [vmem:[%s8 + $0xe8] sm:$0xff]
    %v1016 = vld [vmem:[%s8 + $0xf0] sm:$0xff]
    %v1017 = vld [vmem:[%s8 + $0xf8] sm:$0xff]
    %1019 = vset.pattern.permute.xlu0 0
    %1020 = vperm.xlu0 %1019, %v986
    %v1021 = vpop.permute.xlu0 %1020
    %1024 = vset.pattern.permute.xlu0 0
    %1025 = vperm.xlu0 %1024, %v987
    %v1026 = vpop.permute.xlu0 %1025
    %1029 = vset.pattern.permute.xlu0 0
    %1030 = vperm.xlu0 %1029, %v988
    %v1031 = vpop.permute.xlu0 %1030
    %1034 = vset.pattern.permute.xlu0 0
    %1035 = vperm.xlu0 %1034, %v989
    %v1036 = vpop.permute.xlu0 %1035
    %1039 = vset.pattern.permute.xlu0 0
    %1040 = vperm.xlu0 %1039, %v990
    %v1041 = vpop.permute.xlu0 %1040
    %1044 = vset.pattern.permute.xlu0 0
    %1045 = vperm.xlu0 %1044, %v991
    %v1046 = vpop.permute.xlu0 %1045
    %1049 = vset.pattern.permute.xlu0 0
    %1050 = vperm.xlu0 %1049, %v992
    %v1051 = vpop.permute.xlu0 %1050
    %1054 = vset.pattern.permute.xlu0 0
    %1055 = vperm.xlu0 %1054, %v993
    %v1056 = vpop.permute.xlu0 %1055
    %1059 = vset.pattern.permute.xlu0 0
    %1060 = vperm.xlu0 %1059, %v994
    %v1061 = vpop.permute.xlu0 %1060
    %1064 = vset.pattern.permute.xlu0 0
    %1065 = vperm.xlu0 %1064, %v995
    %v1066 = vpop.permute.xlu0 %1065
    %1069 = vset.pattern.permute.xlu0 0
    %1070 = vperm.xlu0 %1069, %v996
    %v1071 = vpop.permute.xlu0 %1070
    %1074 = vset.pattern.permute.xlu0 0
    %1075 = vperm.xlu0 %1074, %v997
    %v1076 = vpop.permute.xlu0 %1075
    %1079 = vset.pattern.permute.xlu0 0
    %1080 = vperm.xlu0 %1079, %v998
    %v1081 = vpop.permute.xlu0 %1080
    %1084 = vset.pattern.permute.xlu0 0
    %1085 = vperm.xlu0 %1084, %v999
    %v1086 = vpop.permute.xlu0 %1085
    %1089 = vset.pattern.permute.xlu0 0
    %1090 = vperm.xlu0 %1089, %v1000
    %v1091 = vpop.permute.xlu0 %1090
    %1094 = vset.pattern.permute.xlu0 0
    %1095 = vperm.xlu0 %1094, %v1001
    %v1096 = vpop.permute.xlu0 %1095
    %1099 = vset.pattern.permute.xlu0 0
    %1100 = vperm.xlu0 %1099, %v1002
    %v1101 = vpop.permute.xlu0 %1100
    %1104 = vset.pattern.permute.xlu0 0
    %1105 = vperm.xlu0 %1104, %v1003
    %v1106 = vpop.permute.xlu0 %1105
    %1109 = vset.pattern.permute.xlu0 0
    %1110 = vperm.xlu0 %1109, %v1004
    %v1111 = vpop.permute.xlu0 %1110
    %1114 = vset.pattern.permute.xlu0 0
    %1115 = vperm.xlu0 %1114, %v1005
    %v1116 = vpop.permute.xlu0 %1115
    %1119 = vset.pattern.permute.xlu0 0
    %1120 = vperm.xlu0 %1119, %v1006
    %v1121 = vpop.permute.xlu0 %1120
    %1124 = vset.pattern.permute.xlu0 0
    %1125 = vperm.xlu0 %1124, %v1007
    %v1126 = vpop.permute.xlu0 %1125
    %1129 = vset.pattern.permute.xlu0 0
    %1130 = vperm.xlu0 %1129, %v1008
    %v1131 = vpop.permute.xlu0 %1130
    %1134 = vset.pattern.permute.xlu0 0
    %1135 = vperm.xlu0 %1134, %v1009
    %v1136 = vpop.permute.xlu0 %1135
    %1139 = vset.pattern.permute.xlu0 0
    %1140 = vperm.xlu0 %1139, %v1010
    %v1141 = vpop.permute.xlu0 %1140
    %1144 = vset.pattern.permute.xlu0 0
    %1145 = vperm.xlu0 %1144, %v1011
    %v1146 = vpop.permute.xlu0 %1145
    %1149 = vset.pattern.permute.xlu0 0
    %1150 = vperm.xlu0 %1149, %v1012
    %v1151 = vpop.permute.xlu0 %1150
    %1154 = vset.pattern.permute.xlu0 0
    %1155 = vperm.xlu0 %1154, %v1013
    %v1156 = vpop.permute.xlu0 %1155
    %1159 = vset.pattern.permute.xlu0 0
    %1160 = vperm.xlu0 %1159, %v1014
    %v1161 = vpop.permute.xlu0 %1160
    %1164 = vset.pattern.permute.xlu0 0
    %1165 = vperm.xlu0 %1164, %v1015
    %v1166 = vpop.permute.xlu0 %1165
    %1169 = vset.pattern.permute.xlu0 0
    %1170 = vperm.xlu0 %1169, %v1016
    %v1171 = vpop.permute.xlu0 %1170
    %1174 = vset.pattern.permute.xlu0 0
    %1175 = vperm.xlu0 %1174, %v1017
    %v1176 = vpop.permute.xlu0 %1175
    %v1178 = vadd.f32 %v954, %v1021
    %v1179 = vadd.f32 %v955, %v1026
    %v1180 = vadd.f32 %v956, %v1031
    %v1181 = vadd.f32 %v957, %v1036
    %v1182 = vadd.f32 %v958, %v1041
    %v1183 = vadd.f32 %v959, %v1046
    %v1184 = vadd.f32 %v960, %v1051
    %v1185 = vadd.f32 %v961, %v1056
    %v1186 = vadd.f32 %v962, %v1061
    %v1187 = vadd.f32 %v963, %v1066
    %v1188 = vadd.f32 %v964, %v1071
    %v1189 = vadd.f32 %v965, %v1076
    %v1190 = vadd.f32 %v966, %v1081
    %v1191 = vadd.f32 %v967, %v1086
    %v1192 = vadd.f32 %v968, %v1091
    %v1193 = vadd.f32 %v969, %v1096
    %v1194 = vadd.f32 %v970, %v1101
    %v1195 = vadd.f32 %v971, %v1106
    %v1196 = vadd.f32 %v972, %v1111
    %v1197 = vadd.f32 %v973, %v1116
    %v1198 = vadd.f32 %v974, %v1121
    %v1199 = vadd.f32 %v975, %v1126
    %v1200 = vadd.f32 %v976, %v1131
    %v1201 = vadd.f32 %v977, %v1136
    %v1202 = vadd.f32 %v978, %v1141
    %v1203 = vadd.f32 %v979, %v1146
    %v1204 = vadd.f32 %v980, %v1151
    %v1205 = vadd.f32 %v981, %v1156
    %v1206 = vadd.f32 %v982, %v1161
    %v1207 = vadd.f32 %v983, %v1166
    %v1208 = vadd.f32 %v984, %v1171
    %v1209 = vadd.f32 %v985, %v1176
    %v1210 = vld [vmem:[%s6] sm:$0xff]
    %v1211 = vld [vmem:[%s6 + $0x8] sm:$0xff]
    %v1212 = vld [vmem:[%s6 + $0x10] sm:$0xff]
    %v1213 = vld [vmem:[%s6 + $0x18] sm:$0xff]
    %v1214 = vld [vmem:[%s6 + $0x20] sm:$0xff]
    %v1215 = vld [vmem:[%s6 + $0x28] sm:$0xff]
    %v1216 = vld [vmem:[%s6 + $0x30] sm:$0xff]
    %v1217 = vld [vmem:[%s6 + $0x38] sm:$0xff]
    %v1218 = vld [vmem:[%s6 + $0x40] sm:$0xff]
    %v1219 = vld [vmem:[%s6 + $0x48] sm:$0xff]
    %v1220 = vld [vmem:[%s6 + $0x50] sm:$0xff]
    %v1221 = vld [vmem:[%s6 + $0x58] sm:$0xff]
    %v1222 = vld [vmem:[%s6 + $0x60] sm:$0xff]
    %v1223 = vld [vmem:[%s6 + $0x68] sm:$0xff]
    %v1224 = vld [vmem:[%s6 + $0x70] sm:$0xff]
    %v1225 = vld [vmem:[%s6 + $0x78] sm:$0xff]
    %v1226 = vld [vmem:[%s6 + $0x80] sm:$0xff]
    %v1227 = vld [vmem:[%s6 + $0x88] sm:$0xff]
    %v1228 = vld [vmem:[%s6 + $0x90] sm:$0xff]
    %v1229 = vld [vmem:[%s6 + $0x98] sm:$0xff]
    %v1230 = vld [vmem:[%s6 + $0xa0] sm:$0xff]
    %v1231 = vld [vmem:[%s6 + $0xa8] sm:$0xff]
    %v1232 = vld [vmem:[%s6 + $0xb0] sm:$0xff]
    %v1233 = vld [vmem:[%s6 + $0xb8] sm:$0xff]
    %v1234 = vld [vmem:[%s6 + $0xc0] sm:$0xff]
    %v1235 = vld [vmem:[%s6 + $0xc8] sm:$0xff]
    %v1236 = vld [vmem:[%s6 + $0xd0] sm:$0xff]
    %v1237 = vld [vmem:[%s6 + $0xd8] sm:$0xff]
    %v1238 = vld [vmem:[%s6 + $0xe0] sm:$0xff]
    %v1239 = vld [vmem:[%s6 + $0xe8] sm:$0xff]
    %v1240 = vld [vmem:[%s6 + $0xf0] sm:$0xff]
    %v1241 = vld [vmem:[%s6 + $0xf8] sm:$0xff]
    %vm1242 = vcmask 162816
    %v1244 = vsel %vm1242, %v1210, 0
    %v1247 = vsel %vm1242, %v1211, 0
    %v1250 = vsel %vm1242, %v1212, 0
    %v1253 = vsel %vm1242, %v1213, 0
    %v1256 = vsel %vm1242, %v1214, 0
    %v1259 = vsel %vm1242, %v1215, 0
    %v1262 = vsel %vm1242, %v1216, 0
    %v1265 = vsel %vm1242, %v1217, 0
    %v1268 = vsel %vm1242, %v1218, 0
    %v1271 = vsel %vm1242, %v1219, 0
    %v1274 = vsel %vm1242, %v1220, 0
    %v1277 = vsel %vm1242, %v1221, 0
    %v1280 = vsel %vm1242, %v1222, 0
    %v1283 = vsel %vm1242, %v1223, 0
    %v1286 = vsel %vm1242, %v1224, 0
    %v1289 = vsel %vm1242, %v1225, 0
    %v1292 = vsel %vm1242, %v1226, 0
    %v1295 = vsel %vm1242, %v1227, 0
    %v1298 = vsel %vm1242, %v1228, 0
    %v1301 = vsel %vm1242, %v1229, 0
    %v1304 = vsel %vm1242, %v1230, 0
    %v1307 = vsel %vm1242, %v1231, 0
    %v1310 = vsel %vm1242, %v1232, 0
    %v1313 = vsel %vm1242, %v1233, 0
    %v1316 = vsel %vm1242, %v1234, 0
    %v1319 = vsel %vm1242, %v1235, 0
    %v1322 = vsel %vm1242, %v1236, 0
    %v1325 = vsel %vm1242, %v1237, 0
    %v1328 = vsel %vm1242, %v1238, 0
    %v1331 = vsel %vm1242, %v1239, 0
    %v1334 = vsel %vm1242, %v1240, 0
    %v1337 = vsel %vm1242, %v1241, 0
    %vm1339 = vcmask 1043456
    %v1341 = vsel %vm1339, %v754, 0
    %1343 = vmatprep.subr.mxu0 0.0
    %1344 = vmatpush1.msra.mxu0 0.0
    %1345 = vmatprep.subr.mxu0 0.0
    %1346 = vmatpush1.msra.mxu0 0.0
    %1347 = vmatprep.subr.mxu0 0.0
    %1348 = vmatpush1.msra.mxu0 0.0
    %1349 = vmatprep.subr.mxu0 0.0
    %1350 = vmatpush1.msra.mxu0 0.0
    %1351 = vmatprep.subr.mxu0 0.0
    %1352 = vmatpush1.msra.mxu0 0.0
    %1353 = vmatprep.subr.mxu0 0.0
    %1354 = vmatpush1.msra.mxu0 0.0
    %1355 = vmatprep.subr.mxu0 0.0
    %1356 = vmatpush1.msra.mxu0 0.0
    %1357 = vmatprep.subr.mxu0 0.0
    %1358 = vmatpush1.msra.mxu0 0.0
    %1359 = vmatprep.subr.mxu0 0.0
    %1360 = vmatpush1.msra.mxu0 0.0
    %1361 = vmatprep.subr.mxu0 0.0
    %1362 = vmatpush1.msra.mxu0 0.0
    %1363 = vmatprep.subr.mxu0 0.0
    %1364 = vmatpush1.msra.mxu0 0.0
    %1365 = vmatprep.subr.mxu0 0.0
    %1366 = vmatpush1.msra.mxu0 0.0
    %1367 = vmatprep.subr.mxu0 0.0
    %1368 = vmatpush1.msra.mxu0 0.0
    %1369 = vmatprep.subr.mxu0 0.0
    %1370 = vmatpush1.msra.mxu0 %v1341
    %1371 = vmatprep.subr.mxu0 0.0
    %1372 = vmatpush1.msra.mxu0 %v753
    %1373 = vmatprep.subr.mxu0 0.0
    %1374 = vmatpush1.msra.mxu0 %v752
    %1375 = vmatprep.subr.mxu0 0.0
    %1376 = vmatpush2.msra.mxu0 0.0
    %1377 = vmatprep.subr.mxu0 0.0
    %1378 = vmatpush2.msra.mxu0 0.0
    %1379 = vmatprep.subr.mxu0 0.0
    %1380 = vmatpush2.msra.mxu0 0.0
    %1381 = vmatprep.subr.mxu0 0.0
    %1382 = vmatpush2.msra.mxu0 0.0
    %1383 = vmatprep.subr.mxu0 0.0
    %1384 = vmatpush2.msra.mxu0 0.0
    %1385 = vmatprep.subr.mxu0 0.0
    %1386 = vmatpush2.msra.mxu0 0.0
    %1387 = vmatprep.subr.mxu0 0.0
    %1388 = vmatpush2.msra.mxu0 0.0
    %1389 = vmatprep.subr.mxu0 0.0
    %1390 = vmatpush2.msra.mxu0 0.0
    %1391 = vmatprep.subr.mxu0 0.0
    %1392 = vmatpush2.msra.mxu0 0.0
    %1393 = vmatprep.subr.mxu0 0.0
    %1394 = vmatpush2.msra.mxu0 0.0
    %1395 = vmatprep.subr.mxu0 0.0
    %1396 = vmatpush2.msra.mxu0 0.0
    %1397 = vmatprep.subr.mxu0 0.0
    %1398 = vmatpush2.msra.mxu0 0.0
    %1399 = vmatprep.subr.mxu0 0.0
    %1400 = vmatpush2.msra.mxu0 0.0
    %1401 = vmatprep.subr.mxu0 0.0
    %1402 = vmatpush2.msra.mxu0 0.0
    %1403 = vmatprep.subr.mxu0 0.0
    %1404 = vmatpush2.msra.mxu0 0.0
    %1405 = vmatprep.subr.mxu0 0.0
    %1406 = vmatpush2.msra.mxu0 0.0
    %1407 = vmatprep.mubr.f32.mxu0 0.0
    %1408 = vmatmul.mubr.f32.gmra.mxu0 %v1244
    %v1409 = vpop.f32.mrf.mxu0
    %v1410 = vadd.f32 0.0, %v1409
    %v1411 = vpop.f32.mrf.mxu0
    %1412 = vmatprep.mubr.f32.mxu0 0.0
    %1413 = vmatmul.mubr.f32.gmra.mxu0 %v1247
    %v1414 = vpop.f32.mrf.mxu0
    %v1415 = vadd.f32 0.0, %v1414
    %v1416 = vpop.f32.mrf.mxu0
    %1417 = vmatprep.mubr.f32.mxu0 0.0
    %1418 = vmatmul.mubr.f32.gmra.mxu0 %v1250
    %v1419 = vpop.f32.mrf.mxu0
    %v1420 = vadd.f32 0.0, %v1419
    %v1421 = vpop.f32.mrf.mxu0
    %1422 = vmatprep.mubr.f32.mxu0 0.0
    %1423 = vmatmul.mubr.f32.gmra.mxu0 %v1253
    %v1424 = vpop.f32.mrf.mxu0
    %v1425 = vadd.f32 0.0, %v1424
    %v1426 = vpop.f32.mrf.mxu0
    %1427 = vmatprep.mubr.f32.mxu0 0.0
    %1428 = vmatmul.mubr.f32.gmra.mxu0 %v1256
    %v1429 = vpop.f32.mrf.mxu0
    %v1430 = vadd.f32 0.0, %v1429
    %v1431 = vpop.f32.mrf.mxu0
    %1432 = vmatprep.mubr.f32.mxu0 0.0
    %1433 = vmatmul.mubr.f32.gmra.mxu0 %v1259
    %v1434 = vpop.f32.mrf.mxu0
    %v1435 = vadd.f32 0.0, %v1434
    %v1436 = vpop.f32.mrf.mxu0
    %1437 = vmatprep.mubr.f32.mxu0 0.0
    %1438 = vmatmul.mubr.f32.gmra.mxu0 %v1262
    %v1439 = vpop.f32.mrf.mxu0
    %v1440 = vadd.f32 0.0, %v1439
    %v1441 = vpop.f32.mrf.mxu0
    %1442 = vmatprep.mubr.f32.mxu0 0.0
    %1443 = vmatmul.mubr.f32.gmra.mxu0 %v1265
    %v1444 = vpop.f32.mrf.mxu0
    %v1445 = vadd.f32 0.0, %v1444
    %v1446 = vpop.f32.mrf.mxu0
    %1447 = vmatprep.mubr.f32.mxu0 0.0
    %1448 = vmatmul.mubr.f32.gmra.mxu0 %v1268
    %v1449 = vpop.f32.mrf.mxu0
    %v1450 = vadd.f32 0.0, %v1449
    %v1451 = vpop.f32.mrf.mxu0
    %1452 = vmatprep.mubr.f32.mxu0 0.0
    %1453 = vmatmul.mubr.f32.gmra.mxu0 %v1271
    %v1454 = vpop.f32.mrf.mxu0
    %v1455 = vadd.f32 0.0, %v1454
    %v1456 = vpop.f32.mrf.mxu0
    %1457 = vmatprep.mubr.f32.mxu0 0.0
    %1458 = vmatmul.mubr.f32.gmra.mxu0 %v1274
    %v1459 = vpop.f32.mrf.mxu0
    %v1460 = vadd.f32 0.0, %v1459
    %v1461 = vpop.f32.mrf.mxu0
    %1462 = vmatprep.mubr.f32.mxu0 0.0
    %1463 = vmatmul.mubr.f32.gmra.mxu0 %v1277
    %v1464 = vpop.f32.mrf.mxu0
    %v1465 = vadd.f32 0.0, %v1464
    %v1466 = vpop.f32.mrf.mxu0
    %1467 = vmatprep.mubr.f32.mxu0 0.0
    %1468 = vmatmul.mubr.f32.gmra.mxu0 %v1280
    %v1469 = vpop.f32.mrf.mxu0
    %v1470 = vadd.f32 0.0, %v1469
    %v1471 = vpop.f32.mrf.mxu0
    %1472 = vmatprep.mubr.f32.mxu0 0.0
    %1473 = vmatmul.mubr.f32.gmra.mxu0 %v1283
    %v1474 = vpop.f32.mrf.mxu0
    %v1475 = vadd.f32 0.0, %v1474
    %v1476 = vpop.f32.mrf.mxu0
    %1477 = vmatprep.mubr.f32.mxu0 0.0
    %1478 = vmatmul.mubr.f32.gmra.mxu0 %v1286
    %v1479 = vpop.f32.mrf.mxu0
    %v1480 = vadd.f32 0.0, %v1479
    %v1481 = vpop.f32.mrf.mxu0
    %1482 = vmatprep.mubr.f32.mxu0 0.0
    %1483 = vmatmul.mubr.f32.gmra.mxu0 %v1289
    %v1484 = vpop.f32.mrf.mxu0
    %v1485 = vadd.f32 0.0, %v1484
    %v1486 = vpop.f32.mrf.mxu0
    %1487 = vmatprep.mubr.f32.mxu0 0.0
    %1488 = vmatmul.mubr.f32.gmra.mxu0 %v1292
    %v1489 = vpop.f32.mrf.mxu0
    %v1490 = vadd.f32 0.0, %v1489
    %v1491 = vpop.f32.mrf.mxu0
    %1492 = vmatprep.mubr.f32.mxu0 0.0
    %1493 = vmatmul.mubr.f32.gmra.mxu0 %v1295
    %v1494 = vpop.f32.mrf.mxu0
    %v1495 = vadd.f32 0.0, %v1494
    %v1496 = vpop.f32.mrf.mxu0
    %1497 = vmatprep.mubr.f32.mxu0 0.0
    %1498 = vmatmul.mubr.f32.gmra.mxu0 %v1298
    %v1499 = vpop.f32.mrf.mxu0
    %v1500 = vadd.f32 0.0, %v1499
    %v1501 = vpop.f32.mrf.mxu0
    %1502 = vmatprep.mubr.f32.mxu0 0.0
    %1503 = vmatmul.mubr.f32.gmra.mxu0 %v1301
    %v1504 = vpop.f32.mrf.mxu0
    %v1505 = vadd.f32 0.0, %v1504
    %v1506 = vpop.f32.mrf.mxu0
    %1507 = vmatprep.mubr.f32.mxu0 0.0
    %1508 = vmatmul.mubr.f32.gmra.mxu0 %v1304
    %v1509 = vpop.f32.mrf.mxu0
    %v1510 = vadd.f32 0.0, %v1509
    %v1511 = vpop.f32.mrf.mxu0
    %1512 = vmatprep.mubr.f32.mxu0 0.0
    %1513 = vmatmul.mubr.f32.gmra.mxu0 %v1307
    %v1514 = vpop.f32.mrf.mxu0
    %v1515 = vadd.f32 0.0, %v1514
    %v1516 = vpop.f32.mrf.mxu0
    %1517 = vmatprep.mubr.f32.mxu0 0.0
    %1518 = vmatmul.mubr.f32.gmra.mxu0 %v1310
    %v1519 = vpop.f32.mrf.mxu0
    %v1520 = vadd.f32 0.0, %v1519
    %v1521 = vpop.f32.mrf.mxu0
    %1522 = vmatprep.mubr.f32.mxu0 0.0
    %1523 = vmatmul.mubr.f32.gmra.mxu0 %v1313
    %v1524 = vpop.f32.mrf.mxu0
    %v1525 = vadd.f32 0.0, %v1524
    %v1526 = vpop.f32.mrf.mxu0
    %1527 = vmatprep.mubr.f32.mxu0 0.0
    %1528 = vmatmul.mubr.f32.gmra.mxu0 %v1316
    %v1529 = vpop.f32.mrf.mxu0
    %v1530 = vadd.f32 0.0, %v1529
    %v1531 = vpop.f32.mrf.mxu0
    %1532 = vmatprep.mubr.f32.mxu0 0.0
    %1533 = vmatmul.mubr.f32.gmra.mxu0 %v1319
    %v1534 = vpop.f32.mrf.mxu0
    %v1535 = vadd.f32 0.0, %v1534
    %v1536 = vpop.f32.mrf.mxu0
    %1537 = vmatprep.mubr.f32.mxu0 0.0
    %1538 = vmatmul.mubr.f32.gmra.mxu0 %v1322
    %v1539 = vpop.f32.mrf.mxu0
    %v1540 = vadd.f32 0.0, %v1539
    %v1541 = vpop.f32.mrf.mxu0
    %1542 = vmatprep.mubr.f32.mxu0 0.0
    %1543 = vmatmul.mubr.f32.gmra.mxu0 %v1325
    %v1544 = vpop.f32.mrf.mxu0
    %v1545 = vadd.f32 0.0, %v1544
    %v1546 = vpop.f32.mrf.mxu0
    %1547 = vmatprep.mubr.f32.mxu0 0.0
    %1548 = vmatmul.mubr.f32.gmra.mxu0 %v1328
    %v1549 = vpop.f32.mrf.mxu0
    %v1550 = vadd.f32 0.0, %v1549
    %v1551 = vpop.f32.mrf.mxu0
    %1552 = vmatprep.mubr.f32.mxu0 0.0
    %1553 = vmatmul.mubr.f32.gmra.mxu0 %v1331
    %v1554 = vpop.f32.mrf.mxu0
    %v1555 = vadd.f32 0.0, %v1554
    %v1556 = vpop.f32.mrf.mxu0
    %1557 = vmatprep.mubr.f32.mxu0 0.0
    %1558 = vmatmul.mubr.f32.gmra.mxu0 %v1334
    %v1559 = vpop.f32.mrf.mxu0
    %v1560 = vadd.f32 0.0, %v1559
    %v1561 = vpop.f32.mrf.mxu0
    %1562 = vmatprep.mubr.f32.mxu0 0.0
    %1563 = vmatmul.mubr.f32.gmra.mxu0 %v1337
    %v1564 = vpop.f32.mrf.mxu0
    %v1565 = vadd.f32 0.0, %v1564
    %v1566 = vpop.f32.mrf.mxu0
    %1567 = vdwg.mxu0
    %v1568 = vadd.f32 %v1178, %v1410
    %v1569 = vadd.f32 %v1179, %v1415
    %v1570 = vadd.f32 %v1180, %v1420
    %v1571 = vadd.f32 %v1181, %v1425
    %v1572 = vadd.f32 %v1182, %v1430
    %v1573 = vadd.f32 %v1183, %v1435
    %v1574 = vadd.f32 %v1184, %v1440
    %v1575 = vadd.f32 %v1185, %v1445
    %v1576 = vadd.f32 %v1186, %v1450
    %v1577 = vadd.f32 %v1187, %v1455
    %v1578 = vadd.f32 %v1188, %v1460
    %v1579 = vadd.f32 %v1189, %v1465
    %v1580 = vadd.f32 %v1190, %v1470
    %v1581 = vadd.f32 %v1191, %v1475
    %v1582 = vadd.f32 %v1192, %v1480
    %v1583 = vadd.f32 %v1193, %v1485
    %v1584 = vadd.f32 %v1194, %v1490
    %v1585 = vadd.f32 %v1195, %v1495
    %v1586 = vadd.f32 %v1196, %v1500
    %v1587 = vadd.f32 %v1197, %v1505
    %v1588 = vadd.f32 %v1198, %v1510
    %v1589 = vadd.f32 %v1199, %v1515
    %v1590 = vadd.f32 %v1200, %v1520
    %v1591 = vadd.f32 %v1201, %v1525
    %v1592 = vadd.f32 %v1202, %v1530
    %v1593 = vadd.f32 %v1203, %v1535
    %v1594 = vadd.f32 %v1204, %v1540
    %v1595 = vadd.f32 %v1205, %v1545
    %v1596 = vadd.f32 %v1206, %v1550
    %v1597 = vadd.f32 %v1207, %v1555
    %v1598 = vadd.f32 %v1208, %v1560
    %v1599 = vadd.f32 %v1209, %v1565
    %s1600 = scalar_lea.vmem %s6, 256
    %v1601 = vld [vmem:[%s1600] sm:$0xff]
    %v1602 = vld [vmem:[%s1600 + $0x8] sm:$0xff]
    %v1603 = vld [vmem:[%s1600 + $0x10] sm:$0xff]
    %v1604 = vld [vmem:[%s1600 + $0x18] sm:$0xff]
    %v1605 = vld [vmem:[%s1600 + $0x20] sm:$0xff]
    %v1606 = vld [vmem:[%s1600 + $0x28] sm:$0xff]
    %v1607 = vld [vmem:[%s1600 + $0x30] sm:$0xff]
    %v1608 = vld [vmem:[%s1600 + $0x38] sm:$0xff]
    %v1609 = vld [vmem:[%s1600 + $0x40] sm:$0xff]
    %v1610 = vld [vmem:[%s1600 + $0x48] sm:$0xff]
    %v1611 = vld [vmem:[%s1600 + $0x50] sm:$0xff]
    %v1612 = vld [vmem:[%s1600 + $0x58] sm:$0xff]
    %v1613 = vld [vmem:[%s1600 + $0x60] sm:$0xff]
    %v1614 = vld [vmem:[%s1600 + $0x68] sm:$0xff]
    %v1615 = vld [vmem:[%s1600 + $0x70] sm:$0xff]
    %v1616 = vld [vmem:[%s1600 + $0x78] sm:$0xff]
    %v1617 = vld [vmem:[%s1600 + $0x80] sm:$0xff]
    %v1618 = vld [vmem:[%s1600 + $0x88] sm:$0xff]
    %v1619 = vld [vmem:[%s1600 + $0x90] sm:$0xff]
    %v1620 = vld [vmem:[%s1600 + $0x98] sm:$0xff]
    %v1621 = vld [vmem:[%s1600 + $0xa0] sm:$0xff]
    %v1622 = vld [vmem:[%s1600 + $0xa8] sm:$0xff]
    %v1623 = vld [vmem:[%s1600 + $0xb0] sm:$0xff]
    %v1624 = vld [vmem:[%s1600 + $0xb8] sm:$0xff]
    %v1625 = vld [vmem:[%s1600 + $0xc0] sm:$0xff]
    %v1626 = vld [vmem:[%s1600 + $0xc8] sm:$0xff]
    %v1627 = vld [vmem:[%s1600 + $0xd0] sm:$0xff]
    %v1628 = vld [vmem:[%s1600 + $0xd8] sm:$0xff]
    %v1629 = vld [vmem:[%s1600 + $0xe0] sm:$0xff]
    %v1630 = vld [vmem:[%s1600 + $0xe8] sm:$0xff]
    %v1631 = vld [vmem:[%s1600 + $0xf0] sm:$0xff]
    %v1632 = vld [vmem:[%s1600 + $0xf8] sm:$0xff]
    %1635 = vrot.lane.b32.xlu0 %v752, 120
    %v1636 = vpop.permute.xlu0 %1635
    %1637 = vrot.lane.b32.xlu0 %v753, 120
    %v1638 = vpop.permute.xlu0 %1637
    %1639 = vrot.lane.b32.xlu0 %v754, 120
    %v1640 = vpop.permute.xlu0 %1639
    %v1644 = vsel %vm1242, %v1601, 0
    %v1647 = vsel %vm1242, %v1602, 0
    %v1650 = vsel %vm1242, %v1603, 0
    %v1653 = vsel %vm1242, %v1604, 0
    %v1656 = vsel %vm1242, %v1605, 0
    %v1659 = vsel %vm1242, %v1606, 0
    %v1662 = vsel %vm1242, %v1607, 0
    %v1665 = vsel %vm1242, %v1608, 0
    %v1668 = vsel %vm1242, %v1609, 0
    %v1671 = vsel %vm1242, %v1610, 0
    %v1674 = vsel %vm1242, %v1611, 0
    %v1677 = vsel %vm1242, %v1612, 0
    %v1680 = vsel %vm1242, %v1613, 0
    %v1683 = vsel %vm1242, %v1614, 0
    %v1686 = vsel %vm1242, %v1615, 0
    %v1689 = vsel %vm1242, %v1616, 0
    %v1692 = vsel %vm1242, %v1617, 0
    %v1695 = vsel %vm1242, %v1618, 0
    %v1698 = vsel %vm1242, %v1619, 0
    %v1701 = vsel %vm1242, %v1620, 0
    %v1704 = vsel %vm1242, %v1621, 0
    %v1707 = vsel %vm1242, %v1622, 0
    %v1710 = vsel %vm1242, %v1623, 0
    %v1713 = vsel %vm1242, %v1624, 0
    %v1716 = vsel %vm1242, %v1625, 0
    %v1719 = vsel %vm1242, %v1626, 0
    %v1722 = vsel %vm1242, %v1627, 0
    %v1725 = vsel %vm1242, %v1628, 0
    %v1728 = vsel %vm1242, %v1629, 0
    %v1731 = vsel %vm1242, %v1630, 0
    %v1734 = vsel %vm1242, %v1631, 0
    %v1737 = vsel %vm1242, %v1632, 0
    %v1739 = vsel %vm1339, %v1640, 0
    %1741 = vmatprep.subr.mxu0 0.0
    %1742 = vmatpush1.msra.mxu0 0.0
    %1743 = vmatprep.subr.mxu0 0.0
    %1744 = vmatpush1.msra.mxu0 0.0
    %1745 = vmatprep.subr.mxu0 0.0
    %1746 = vmatpush1.msra.mxu0 0.0
    %1747 = vmatprep.subr.mxu0 0.0
    %1748 = vmatpush1.msra.mxu0 0.0
    %1749 = vmatprep.subr.mxu0 0.0
    %1750 = vmatpush1.msra.mxu0 0.0
    %1751 = vmatprep.subr.mxu0 0.0
    %1752 = vmatpush1.msra.mxu0 0.0
    %1753 = vmatprep.subr.mxu0 0.0
    %1754 = vmatpush1.msra.mxu0 0.0
    %1755 = vmatprep.subr.mxu0 0.0
    %1756 = vmatpush1.msra.mxu0 0.0
    %1757 = vmatprep.subr.mxu0 0.0
    %1758 = vmatpush1.msra.mxu0 0.0
    %1759 = vmatprep.subr.mxu0 0.0
    %1760 = vmatpush1.msra.mxu0 0.0
    %1761 = vmatprep.subr.mxu0 0.0
    %1762 = vmatpush1.msra.mxu0 0.0
    %1763 = vmatprep.subr.mxu0 0.0
    %1764 = vmatpush1.msra.mxu0 0.0
    %1765 = vmatprep.subr.mxu0 0.0
    %1766 = vmatpush1.msra.mxu0 0.0
    %1767 = vmatprep.subr.mxu0 0.0
    %1768 = vmatpush1.msra.mxu0 %v1739
    %1769 = vmatprep.subr.mxu0 0.0
    %1770 = vmatpush1.msra.mxu0 %v1638
    %1771 = vmatprep.subr.mxu0 0.0
    %1772 = vmatpush1.msra.mxu0 %v1636
    %1773 = vmatprep.subr.mxu0 0.0
    %1774 = vmatpush2.msra.mxu0 0.0
    %1775 = vmatprep.subr.mxu0 0.0
    %1776 = vmatpush2.msra.mxu0 0.0
    %1777 = vmatprep.subr.mxu0 0.0
    %1778 = vmatpush2.msra.mxu0 0.0
    %1779 = vmatprep.subr.mxu0 0.0
    %1780 = vmatpush2.msra.mxu0 0.0
    %1781 = vmatprep.subr.mxu0 0.0
    %1782 = vmatpush2.msra.mxu0 0.0
    %1783 = vmatprep.subr.mxu0 0.0
    %1784 = vmatpush2.msra.mxu0 0.0
    %1785 = vmatprep.subr.mxu0 0.0
    %1786 = vmatpush2.msra.mxu0 0.0
    %1787 = vmatprep.subr.mxu0 0.0
    %1788 = vmatpush2.msra.mxu0 0.0
    %1789 = vmatprep.subr.mxu0 0.0
    %1790 = vmatpush2.msra.mxu0 0.0
    %1791 = vmatprep.subr.mxu0 0.0
    %1792 = vmatpush2.msra.mxu0 0.0
    %1793 = vmatprep.subr.mxu0 0.0
    %1794 = vmatpush2.msra.mxu0 0.0
    %1795 = vmatprep.subr.mxu0 0.0
    %1796 = vmatpush2.msra.mxu0 0.0
    %1797 = vmatprep.subr.mxu0 0.0
    %1798 = vmatpush2.msra.mxu0 0.0
    %1799 = vmatprep.subr.mxu0 0.0
    %1800 = vmatpush2.msra.mxu0 0.0
    %1801 = vmatprep.subr.mxu0 0.0
    %1802 = vmatpush2.msra.mxu0 0.0
    %1803 = vmatprep.subr.mxu0 0.0
    %1804 = vmatpush2.msra.mxu0 0.0
    %1805 = vmatprep.mubr.f32.mxu0 0.0
    %1806 = vmatmul.mubr.f32.gmra.mxu0 %v1644
    %v1807 = vpop.f32.mrf.mxu0
    %v1808 = vadd.f32 0.0, %v1807
    %v1809 = vpop.f32.mrf.mxu0
    %1810 = vmatprep.mubr.f32.mxu0 0.0
    %1811 = vmatmul.mubr.f32.gmra.mxu0 %v1647
    %v1812 = vpop.f32.mrf.mxu0
    %v1813 = vadd.f32 0.0, %v1812
    %v1814 = vpop.f32.mrf.mxu0
    %1815 = vmatprep.mubr.f32.mxu0 0.0
    %1816 = vmatmul.mubr.f32.gmra.mxu0 %v1650
    %v1817 = vpop.f32.mrf.mxu0
    %v1818 = vadd.f32 0.0, %v1817
    %v1819 = vpop.f32.mrf.mxu0
    %1820 = vmatprep.mubr.f32.mxu0 0.0
    %1821 = vmatmul.mubr.f32.gmra.mxu0 %v1653
    %v1822 = vpop.f32.mrf.mxu0
    %v1823 = vadd.f32 0.0, %v1822
    %v1824 = vpop.f32.mrf.mxu0
    %1825 = vmatprep.mubr.f32.mxu0 0.0
    %1826 = vmatmul.mubr.f32.gmra.mxu0 %v1656
    %v1827 = vpop.f32.mrf.mxu0
    %v1828 = vadd.f32 0.0, %v1827
    %v1829 = vpop.f32.mrf.mxu0
    %1830 = vmatprep.mubr.f32.mxu0 0.0
    %1831 = vmatmul.mubr.f32.gmra.mxu0 %v1659
    %v1832 = vpop.f32.mrf.mxu0
    %v1833 = vadd.f32 0.0, %v1832
    %v1834 = vpop.f32.mrf.mxu0
    %1835 = vmatprep.mubr.f32.mxu0 0.0
    %1836 = vmatmul.mubr.f32.gmra.mxu0 %v1662
    %v1837 = vpop.f32.mrf.mxu0
    %v1838 = vadd.f32 0.0, %v1837
    %v1839 = vpop.f32.mrf.mxu0
    %1840 = vmatprep.mubr.f32.mxu0 0.0
    %1841 = vmatmul.mubr.f32.gmra.mxu0 %v1665
    %v1842 = vpop.f32.mrf.mxu0
    %v1843 = vadd.f32 0.0, %v1842
    %v1844 = vpop.f32.mrf.mxu0
    %1845 = vmatprep.mubr.f32.mxu0 0.0
    %1846 = vmatmul.mubr.f32.gmra.mxu0 %v1668
    %v1847 = vpop.f32.mrf.mxu0
    %v1848 = vadd.f32 0.0, %v1847
    %v1849 = vpop.f32.mrf.mxu0
    %1850 = vmatprep.mubr.f32.mxu0 0.0
    %1851 = vmatmul.mubr.f32.gmra.mxu0 %v1671
    %v1852 = vpop.f32.mrf.mxu0
    %v1853 = vadd.f32 0.0, %v1852
    %v1854 = vpop.f32.mrf.mxu0
    %1855 = vmatprep.mubr.f32.mxu0 0.0
    %1856 = vmatmul.mubr.f32.gmra.mxu0 %v1674
    %v1857 = vpop.f32.mrf.mxu0
    %v1858 = vadd.f32 0.0, %v1857
    %v1859 = vpop.f32.mrf.mxu0
    %1860 = vmatprep.mubr.f32.mxu0 0.0
    %1861 = vmatmul.mubr.f32.gmra.mxu0 %v1677
    %v1862 = vpop.f32.mrf.mxu0
    %v1863 = vadd.f32 0.0, %v1862
    %v1864 = vpop.f32.mrf.mxu0
    %1865 = vmatprep.mubr.f32.mxu0 0.0
    %1866 = vmatmul.mubr.f32.gmra.mxu0 %v1680
    %v1867 = vpop.f32.mrf.mxu0
    %v1868 = vadd.f32 0.0, %v1867
    %v1869 = vpop.f32.mrf.mxu0
    %1870 = vmatprep.mubr.f32.mxu0 0.0
    %1871 = vmatmul.mubr.f32.gmra.mxu0 %v1683
    %v1872 = vpop.f32.mrf.mxu0
    %v1873 = vadd.f32 0.0, %v1872
    %v1874 = vpop.f32.mrf.mxu0
    %1875 = vmatprep.mubr.f32.mxu0 0.0
    %1876 = vmatmul.mubr.f32.gmra.mxu0 %v1686
    %v1877 = vpop.f32.mrf.mxu0
    %v1878 = vadd.f32 0.0, %v1877
    %v1879 = vpop.f32.mrf.mxu0
    %1880 = vmatprep.mubr.f32.mxu0 0.0
    %1881 = vmatmul.mubr.f32.gmra.mxu0 %v1689
    %v1882 = vpop.f32.mrf.mxu0
    %v1883 = vadd.f32 0.0, %v1882
    %v1884 = vpop.f32.mrf.mxu0
    %1885 = vmatprep.mubr.f32.mxu0 0.0
    %1886 = vmatmul.mubr.f32.gmra.mxu0 %v1692
    %v1887 = vpop.f32.mrf.mxu0
    %v1888 = vadd.f32 0.0, %v1887
    %v1889 = vpop.f32.mrf.mxu0
    %1890 = vmatprep.mubr.f32.mxu0 0.0
    %1891 = vmatmul.mubr.f32.gmra.mxu0 %v1695
    %v1892 = vpop.f32.mrf.mxu0
    %v1893 = vadd.f32 0.0, %v1892
    %v1894 = vpop.f32.mrf.mxu0
    %1895 = vmatprep.mubr.f32.mxu0 0.0
    %1896 = vmatmul.mubr.f32.gmra.mxu0 %v1698
    %v1897 = vpop.f32.mrf.mxu0
    %v1898 = vadd.f32 0.0, %v1897
    %v1899 = vpop.f32.mrf.mxu0
    %1900 = vmatprep.mubr.f32.mxu0 0.0
    %1901 = vmatmul.mubr.f32.gmra.mxu0 %v1701
    %v1902 = vpop.f32.mrf.mxu0
    %v1903 = vadd.f32 0.0, %v1902
    %v1904 = vpop.f32.mrf.mxu0
    %1905 = vmatprep.mubr.f32.mxu0 0.0
    %1906 = vmatmul.mubr.f32.gmra.mxu0 %v1704
    %v1907 = vpop.f32.mrf.mxu0
    %v1908 = vadd.f32 0.0, %v1907
    %v1909 = vpop.f32.mrf.mxu0
    %1910 = vmatprep.mubr.f32.mxu0 0.0
    %1911 = vmatmul.mubr.f32.gmra.mxu0 %v1707
    %v1912 = vpop.f32.mrf.mxu0
    %v1913 = vadd.f32 0.0, %v1912
    %v1914 = vpop.f32.mrf.mxu0
    %1915 = vmatprep.mubr.f32.mxu0 0.0
    %1916 = vmatmul.mubr.f32.gmra.mxu0 %v1710
    %v1917 = vpop.f32.mrf.mxu0
    %v1918 = vadd.f32 0.0, %v1917
    %v1919 = vpop.f32.mrf.mxu0
    %1920 = vmatprep.mubr.f32.mxu0 0.0
    %1921 = vmatmul.mubr.f32.gmra.mxu0 %v1713
    %v1922 = vpop.f32.mrf.mxu0
    %v1923 = vadd.f32 0.0, %v1922
    %v1924 = vpop.f32.mrf.mxu0
    %1925 = vmatprep.mubr.f32.mxu0 0.0
    %1926 = vmatmul.mubr.f32.gmra.mxu0 %v1716
    %v1927 = vpop.f32.mrf.mxu0
    %v1928 = vadd.f32 0.0, %v1927
    %v1929 = vpop.f32.mrf.mxu0
    %1930 = vmatprep.mubr.f32.mxu0 0.0
    %1931 = vmatmul.mubr.f32.gmra.mxu0 %v1719
    %v1932 = vpop.f32.mrf.mxu0
    %v1933 = vadd.f32 0.0, %v1932
    %v1934 = vpop.f32.mrf.mxu0
    %1935 = vmatprep.mubr.f32.mxu0 0.0
    %1936 = vmatmul.mubr.f32.gmra.mxu0 %v1722
    %v1937 = vpop.f32.mrf.mxu0
    %v1938 = vadd.f32 0.0, %v1937
    %v1939 = vpop.f32.mrf.mxu0
    %1940 = vmatprep.mubr.f32.mxu0 0.0
    %1941 = vmatmul.mubr.f32.gmra.mxu0 %v1725
    %v1942 = vpop.f32.mrf.mxu0
    %v1943 = vadd.f32 0.0, %v1942
    %v1944 = vpop.f32.mrf.mxu0
    %1945 = vmatprep.mubr.f32.mxu0 0.0
    %1946 = vmatmul.mubr.f32.gmra.mxu0 %v1728
    %v1947 = vpop.f32.mrf.mxu0
    %v1948 = vadd.f32 0.0, %v1947
    %v1949 = vpop.f32.mrf.mxu0
    %1950 = vmatprep.mubr.f32.mxu0 0.0
    %1951 = vmatmul.mubr.f32.gmra.mxu0 %v1731
    %v1952 = vpop.f32.mrf.mxu0
    %v1953 = vadd.f32 0.0, %v1952
    %v1954 = vpop.f32.mrf.mxu0
    %1955 = vmatprep.mubr.f32.mxu0 0.0
    %1956 = vmatmul.mubr.f32.gmra.mxu0 %v1734
    %v1957 = vpop.f32.mrf.mxu0
    %v1958 = vadd.f32 0.0, %v1957
    %v1959 = vpop.f32.mrf.mxu0
    %1960 = vmatprep.mubr.f32.mxu0 0.0
    %1961 = vmatmul.mubr.f32.gmra.mxu0 %v1737
    %v1962 = vpop.f32.mrf.mxu0
    %v1963 = vadd.f32 0.0, %v1962
    %v1964 = vpop.f32.mrf.mxu0
    %1965 = vdwg.mxu0
    %v1966 = vadd.f32 %v1568, %v1808
    %v1967 = vadd.f32 %v1569, %v1813
    %v1968 = vadd.f32 %v1570, %v1818
    %v1969 = vadd.f32 %v1571, %v1823
    %v1970 = vadd.f32 %v1572, %v1828
    %v1971 = vadd.f32 %v1573, %v1833
    %v1972 = vadd.f32 %v1574, %v1838
    %v1973 = vadd.f32 %v1575, %v1843
    %v1974 = vadd.f32 %v1576, %v1848
    %v1975 = vadd.f32 %v1577, %v1853
    %v1976 = vadd.f32 %v1578, %v1858
    %v1977 = vadd.f32 %v1579, %v1863
    %v1978 = vadd.f32 %v1580, %v1868
    %v1979 = vadd.f32 %v1581, %v1873
    %v1980 = vadd.f32 %v1582, %v1878
    %v1981 = vadd.f32 %v1583, %v1883
    %v1982 = vadd.f32 %v1584, %v1888
    %v1983 = vadd.f32 %v1585, %v1893
    %v1984 = vadd.f32 %v1586, %v1898
    %v1985 = vadd.f32 %v1587, %v1903
    %v1986 = vadd.f32 %v1588, %v1908
    %v1987 = vadd.f32 %v1589, %v1913
    %v1988 = vadd.f32 %v1590, %v1918
    %v1989 = vadd.f32 %v1591, %v1923
    %v1990 = vadd.f32 %v1592, %v1928
    %v1991 = vadd.f32 %v1593, %v1933
    %v1992 = vadd.f32 %v1594, %v1938
    %v1993 = vadd.f32 %v1595, %v1943
    %v1994 = vadd.f32 %v1596, %v1948
    %v1995 = vadd.f32 %v1597, %v1953
    %v1996 = vadd.f32 %v1598, %v1958
    %v1997 = vadd.f32 %v1599, %v1963
    %s1998 = scalar_lea.vmem %s6, 512
    %v1999 = vld [vmem:[%s1998] sm:$0xff]
    %v2000 = vld [vmem:[%s1998 + $0x8] sm:$0xff]
    %v2001 = vld [vmem:[%s1998 + $0x10] sm:$0xff]
    %v2002 = vld [vmem:[%s1998 + $0x18] sm:$0xff]
    %v2003 = vld [vmem:[%s1998 + $0x20] sm:$0xff]
    %v2004 = vld [vmem:[%s1998 + $0x28] sm:$0xff]
    %v2005 = vld [vmem:[%s1998 + $0x30] sm:$0xff]
    %v2006 = vld [vmem:[%s1998 + $0x38] sm:$0xff]
    %v2007 = vld [vmem:[%s1998 + $0x40] sm:$0xff]
    %v2008 = vld [vmem:[%s1998 + $0x48] sm:$0xff]
    %v2009 = vld [vmem:[%s1998 + $0x50] sm:$0xff]
    %v2010 = vld [vmem:[%s1998 + $0x58] sm:$0xff]
    %v2011 = vld [vmem:[%s1998 + $0x60] sm:$0xff]
    %v2012 = vld [vmem:[%s1998 + $0x68] sm:$0xff]
    %v2013 = vld [vmem:[%s1998 + $0x70] sm:$0xff]
    %v2014 = vld [vmem:[%s1998 + $0x78] sm:$0xff]
    %v2015 = vld [vmem:[%s1998 + $0x80] sm:$0xff]
    %v2016 = vld [vmem:[%s1998 + $0x88] sm:$0xff]
    %v2017 = vld [vmem:[%s1998 + $0x90] sm:$0xff]
    %v2018 = vld [vmem:[%s1998 + $0x98] sm:$0xff]
    %v2019 = vld [vmem:[%s1998 + $0xa0] sm:$0xff]
    %v2020 = vld [vmem:[%s1998 + $0xa8] sm:$0xff]
    %v2021 = vld [vmem:[%s1998 + $0xb0] sm:$0xff]
    %v2022 = vld [vmem:[%s1998 + $0xb8] sm:$0xff]
    %v2023 = vld [vmem:[%s1998 + $0xc0] sm:$0xff]
    %v2024 = vld [vmem:[%s1998 + $0xc8] sm:$0xff]
    %v2025 = vld [vmem:[%s1998 + $0xd0] sm:$0xff]
    %v2026 = vld [vmem:[%s1998 + $0xd8] sm:$0xff]
    %v2027 = vld [vmem:[%s1998 + $0xe0] sm:$0xff]
    %v2028 = vld [vmem:[%s1998 + $0xe8] sm:$0xff]
    %v2029 = vld [vmem:[%s1998 + $0xf0] sm:$0xff]
    %v2030 = vld [vmem:[%s1998 + $0xf8] sm:$0xff]
    %2031 = vrot.lane.b32.xlu0 %v752, 112
    %v2032 = vpop.permute.xlu0 %2031
    %2033 = vrot.lane.b32.xlu0 %v753, 112
    %v2034 = vpop.permute.xlu0 %2033
    %2035 = vrot.lane.b32.xlu0 %v754, 112
    %v2036 = vpop.permute.xlu0 %2035
    %v2040 = vsel %vm1242, %v1999, 0
    %v2043 = vsel %vm1242, %v2000, 0
    %v2046 = vsel %vm1242, %v2001, 0
    %v2049 = vsel %vm1242, %v2002, 0
    %v2052 = vsel %vm1242, %v2003, 0
    %v2055 = vsel %vm1242, %v2004, 0
    %v2058 = vsel %vm1242, %v2005, 0
    %v2061 = vsel %vm1242, %v2006, 0
    %v2064 = vsel %vm1242, %v2007, 0
    %v2067 = vsel %vm1242, %v2008, 0
    %v2070 = vsel %vm1242, %v2009, 0
    %v2073 = vsel %vm1242, %v2010, 0
    %v2076 = vsel %vm1242, %v2011, 0
    %v2079 = vsel %vm1242, %v2012, 0
    %v2082 = vsel %vm1242, %v2013, 0
    %v2085 = vsel %vm1242, %v2014, 0
    %v2088 = vsel %vm1242, %v2015, 0
    %v2091 = vsel %vm1242, %v2016, 0
    %v2094 = vsel %vm1242, %v2017, 0
    %v2097 = vsel %vm1242, %v2018, 0
    %v2100 = vsel %vm1242, %v2019, 0
    %v2103 = vsel %vm1242, %v2020, 0
    %v2106 = vsel %vm1242, %v2021, 0
    %v2109 = vsel %vm1242, %v2022, 0
    %v2112 = vsel %vm1242, %v2023, 0
    %v2115 = vsel %vm1242, %v2024, 0
    %v2118 = vsel %vm1242, %v2025, 0
    %v2121 = vsel %vm1242, %v2026, 0
    %v2124 = vsel %vm1242, %v2027, 0
    %v2127 = vsel %vm1242, %v2028, 0
    %v2130 = vsel %vm1242, %v2029, 0
    %v2133 = vsel %vm1242, %v2030, 0
    %v2135 = vsel %vm1339, %v2036, 0
    %2137 = vmatprep.subr.mxu0 0.0
    %2138 = vmatpush1.msra.mxu0 0.0
    %2139 = vmatprep.subr.mxu0 0.0
    %2140 = vmatpush1.msra.mxu0 0.0
    %2141 = vmatprep.subr.mxu0 0.0
    %2142 = vmatpush1.msra.mxu0 0.0
    %2143 = vmatprep.subr.mxu0 0.0
    %2144 = vmatpush1.msra.mxu0 0.0
    %2145 = vmatprep.subr.mxu0 0.0
    %2146 = vmatpush1.msra.mxu0 0.0
    %2147 = vmatprep.subr.mxu0 0.0
    %2148 = vmatpush1.msra.mxu0 0.0
    %2149 = vmatprep.subr.mxu0 0.0
    %2150 = vmatpush1.msra.mxu0 0.0
    %2151 = vmatprep.subr.mxu0 0.0
    %2152 = vmatpush1.msra.mxu0 0.0
    %2153 = vmatprep.subr.mxu0 0.0
    %2154 = vmatpush1.msra.mxu0 0.0
    %2155 = vmatprep.subr.mxu0 0.0
    %2156 = vmatpush1.msra.mxu0 0.0
    %2157 = vmatprep.subr.mxu0 0.0
    %2158 = vmatpush1.msra.mxu0 0.0
    %2159 = vmatprep.subr.mxu0 0.0
    %2160 = vmatpush1.msra.mxu0 0.0
    %2161 = vmatprep.subr.mxu0 0.0
    %2162 = vmatpush1.msra.mxu0 0.0
    %2163 = vmatprep.subr.mxu0 0.0
    %2164 = vmatpush1.msra.mxu0 %v2135
    %2165 = vmatprep.subr.mxu0 0.0
    %2166 = vmatpush1.msra.mxu0 %v2034
    %2167 = vmatprep.subr.mxu0 0.0
    %2168 = vmatpush1.msra.mxu0 %v2032
    %2169 = vmatprep.subr.mxu0 0.0
    %2170 = vmatpush2.msra.mxu0 0.0
    %2171 = vmatprep.subr.mxu0 0.0
    %2172 = vmatpush2.msra.mxu0 0.0
    %2173 = vmatprep.subr.mxu0 0.0
    %2174 = vmatpush2.msra.mxu0 0.0
    %2175 = vmatprep.subr.mxu0 0.0
    %2176 = vmatpush2.msra.mxu0 0.0
    %2177 = vmatprep.subr.mxu0 0.0
    %2178 = vmatpush2.msra.mxu0 0.0
    %2179 = vmatprep.subr.mxu0 0.0
    %2180 = vmatpush2.msra.mxu0 0.0
    %2181 = vmatprep.subr.mxu0 0.0
    %2182 = vmatpush2.msra.mxu0 0.0
    %2183 = vmatprep.subr.mxu0 0.0
    %2184 = vmatpush2.msra.mxu0 0.0
    %2185 = vmatprep.subr.mxu0 0.0
    %2186 = vmatpush2.msra.mxu0 0.0
    %2187 = vmatprep.subr.mxu0 0.0
    %2188 = vmatpush2.msra.mxu0 0.0
    %2189 = vmatprep.subr.mxu0 0.0
    %2190 = vmatpush2.msra.mxu0 0.0
    %2191 = vmatprep.subr.mxu0 0.0
    %2192 = vmatpush2.msra.mxu0 0.0
    %2193 = vmatprep.subr.mxu0 0.0
    %2194 = vmatpush2.msra.mxu0 0.0
    %2195 = vmatprep.subr.mxu0 0.0
    %2196 = vmatpush2.msra.mxu0 0.0
    %2197 = vmatprep.subr.mxu0 0.0
    %2198 = vmatpush2.msra.mxu0 0.0
    %2199 = vmatprep.subr.mxu0 0.0
    %2200 = vmatpush2.msra.mxu0 0.0
    %2201 = vmatprep.mubr.f32.mxu0 0.0
    %2202 = vmatmul.mubr.f32.gmra.mxu0 %v2040
    %v2203 = vpop.f32.mrf.mxu0
    %v2204 = vadd.f32 0.0, %v2203
    %v2205 = vpop.f32.mrf.mxu0
    %2206 = vmatprep.mubr.f32.mxu0 0.0
    %2207 = vmatmul.mubr.f32.gmra.mxu0 %v2043
    %v2208 = vpop.f32.mrf.mxu0
    %v2209 = vadd.f32 0.0, %v2208
    %v2210 = vpop.f32.mrf.mxu0
    %2211 = vmatprep.mubr.f32.mxu0 0.0
    %2212 = vmatmul.mubr.f32.gmra.mxu0 %v2046
    %v2213 = vpop.f32.mrf.mxu0
    %v2214 = vadd.f32 0.0, %v2213
    %v2215 = vpop.f32.mrf.mxu0
    %2216 = vmatprep.mubr.f32.mxu0 0.0
    %2217 = vmatmul.mubr.f32.gmra.mxu0 %v2049
    %v2218 = vpop.f32.mrf.mxu0
    %v2219 = vadd.f32 0.0, %v2218
    %v2220 = vpop.f32.mrf.mxu0
    %2221 = vmatprep.mubr.f32.mxu0 0.0
    %2222 = vmatmul.mubr.f32.gmra.mxu0 %v2052
    %v2223 = vpop.f32.mrf.mxu0
    %v2224 = vadd.f32 0.0, %v2223
    %v2225 = vpop.f32.mrf.mxu0
    %2226 = vmatprep.mubr.f32.mxu0 0.0
    %2227 = vmatmul.mubr.f32.gmra.mxu0 %v2055
    %v2228 = vpop.f32.mrf.mxu0
    %v2229 = vadd.f32 0.0, %v2228
    %v2230 = vpop.f32.mrf.mxu0
    %2231 = vmatprep.mubr.f32.mxu0 0.0
    %2232 = vmatmul.mubr.f32.gmra.mxu0 %v2058
    %v2233 = vpop.f32.mrf.mxu0
    %v2234 = vadd.f32 0.0, %v2233
    %v2235 = vpop.f32.mrf.mxu0
    %2236 = vmatprep.mubr.f32.mxu0 0.0
    %2237 = vmatmul.mubr.f32.gmra.mxu0 %v2061
    %v2238 = vpop.f32.mrf.mxu0
    %v2239 = vadd.f32 0.0, %v2238
    %v2240 = vpop.f32.mrf.mxu0
    %2241 = vmatprep.mubr.f32.mxu0 0.0
    %2242 = vmatmul.mubr.f32.gmra.mxu0 %v2064
    %v2243 = vpop.f32.mrf.mxu0
    %v2244 = vadd.f32 0.0, %v2243
    %v2245 = vpop.f32.mrf.mxu0
    %2246 = vmatprep.mubr.f32.mxu0 0.0
    %2247 = vmatmul.mubr.f32.gmra.mxu0 %v2067
    %v2248 = vpop.f32.mrf.mxu0
    %v2249 = vadd.f32 0.0, %v2248
    %v2250 = vpop.f32.mrf.mxu0
    %2251 = vmatprep.mubr.f32.mxu0 0.0
    %2252 = vmatmul.mubr.f32.gmra.mxu0 %v2070
    %v2253 = vpop.f32.mrf.mxu0
    %v2254 = vadd.f32 0.0, %v2253
    %v2255 = vpop.f32.mrf.mxu0
    %2256 = vmatprep.mubr.f32.mxu0 0.0
    %2257 = vmatmul.mubr.f32.gmra.mxu0 %v2073
    %v2258 = vpop.f32.mrf.mxu0
    %v2259 = vadd.f32 0.0, %v2258
    %v2260 = vpop.f32.mrf.mxu0
    %2261 = vmatprep.mubr.f32.mxu0 0.0
    %2262 = vmatmul.mubr.f32.gmra.mxu0 %v2076
    %v2263 = vpop.f32.mrf.mxu0
    %v2264 = vadd.f32 0.0, %v2263
    %v2265 = vpop.f32.mrf.mxu0
    %2266 = vmatprep.mubr.f32.mxu0 0.0
    %2267 = vmatmul.mubr.f32.gmra.mxu0 %v2079
    %v2268 = vpop.f32.mrf.mxu0
    %v2269 = vadd.f32 0.0, %v2268
    %v2270 = vpop.f32.mrf.mxu0
    %2271 = vmatprep.mubr.f32.mxu0 0.0
    %2272 = vmatmul.mubr.f32.gmra.mxu0 %v2082
    %v2273 = vpop.f32.mrf.mxu0
    %v2274 = vadd.f32 0.0, %v2273
    %v2275 = vpop.f32.mrf.mxu0
    %2276 = vmatprep.mubr.f32.mxu0 0.0
    %2277 = vmatmul.mubr.f32.gmra.mxu0 %v2085
    %v2278 = vpop.f32.mrf.mxu0
    %v2279 = vadd.f32 0.0, %v2278
    %v2280 = vpop.f32.mrf.mxu0
    %2281 = vmatprep.mubr.f32.mxu0 0.0
    %2282 = vmatmul.mubr.f32.gmra.mxu0 %v2088
    %v2283 = vpop.f32.mrf.mxu0
    %v2284 = vadd.f32 0.0, %v2283
    %v2285 = vpop.f32.mrf.mxu0
    %2286 = vmatprep.mubr.f32.mxu0 0.0
    %2287 = vmatmul.mubr.f32.gmra.mxu0 %v2091
    %v2288 = vpop.f32.mrf.mxu0
    %v2289 = vadd.f32 0.0, %v2288
    %v2290 = vpop.f32.mrf.mxu0
    %2291 = vmatprep.mubr.f32.mxu0 0.0
    %2292 = vmatmul.mubr.f32.gmra.mxu0 %v2094
    %v2293 = vpop.f32.mrf.mxu0
    %v2294 = vadd.f32 0.0, %v2293
    %v2295 = vpop.f32.mrf.mxu0
    %2296 = vmatprep.mubr.f32.mxu0 0.0
    %2297 = vmatmul.mubr.f32.gmra.mxu0 %v2097
    %v2298 = vpop.f32.mrf.mxu0
    %v2299 = vadd.f32 0.0, %v2298
    %v2300 = vpop.f32.mrf.mxu0
    %2301 = vmatprep.mubr.f32.mxu0 0.0
    %2302 = vmatmul.mubr.f32.gmra.mxu0 %v2100
    %v2303 = vpop.f32.mrf.mxu0
    %v2304 = vadd.f32 0.0, %v2303
    %v2305 = vpop.f32.mrf.mxu0
    %2306 = vmatprep.mubr.f32.mxu0 0.0
    %2307 = vmatmul.mubr.f32.gmra.mxu0 %v2103
    %v2308 = vpop.f32.mrf.mxu0
    %v2309 = vadd.f32 0.0, %v2308
    %v2310 = vpop.f32.mrf.mxu0
    %2311 = vmatprep.mubr.f32.mxu0 0.0
    %2312 = vmatmul.mubr.f32.gmra.mxu0 %v2106
    %v2313 = vpop.f32.mrf.mxu0
    %v2314 = vadd.f32 0.0, %v2313
    %v2315 = vpop.f32.mrf.mxu0
    %2316 = vmatprep.mubr.f32.mxu0 0.0
    %2317 = vmatmul.mubr.f32.gmra.mxu0 %v2109
    %v2318 = vpop.f32.mrf.mxu0
    %v2319 = vadd.f32 0.0, %v2318
    %v2320 = vpop.f32.mrf.mxu0
    %2321 = vmatprep.mubr.f32.mxu0 0.0
    %2322 = vmatmul.mubr.f32.gmra.mxu0 %v2112
    %v2323 = vpop.f32.mrf.mxu0
    %v2324 = vadd.f32 0.0, %v2323
    %v2325 = vpop.f32.mrf.mxu0
    %2326 = vmatprep.mubr.f32.mxu0 0.0
    %2327 = vmatmul.mubr.f32.gmra.mxu0 %v2115
    %v2328 = vpop.f32.mrf.mxu0
    %v2329 = vadd.f32 0.0, %v2328
    %v2330 = vpop.f32.mrf.mxu0
    %2331 = vmatprep.mubr.f32.mxu0 0.0
    %2332 = vmatmul.mubr.f32.gmra.mxu0 %v2118
    %v2333 = vpop.f32.mrf.mxu0
    %v2334 = vadd.f32 0.0, %v2333
    %v2335 = vpop.f32.mrf.mxu0
    %2336 = vmatprep.mubr.f32.mxu0 0.0
    %2337 = vmatmul.mubr.f32.gmra.mxu0 %v2121
    %v2338 = vpop.f32.mrf.mxu0
    %v2339 = vadd.f32 0.0, %v2338
    %v2340 = vpop.f32.mrf.mxu0
    %2341 = vmatprep.mubr.f32.mxu0 0.0
    %2342 = vmatmul.mubr.f32.gmra.mxu0 %v2124
    %v2343 = vpop.f32.mrf.mxu0
    %v2344 = vadd.f32 0.0, %v2343
    %v2345 = vpop.f32.mrf.mxu0
    %2346 = vmatprep.mubr.f32.mxu0 0.0
    %2347 = vmatmul.mubr.f32.gmra.mxu0 %v2127
    %v2348 = vpop.f32.mrf.mxu0
    %v2349 = vadd.f32 0.0, %v2348
    %v2350 = vpop.f32.mrf.mxu0
    %2351 = vmatprep.mubr.f32.mxu0 0.0
    %2352 = vmatmul.mubr.f32.gmra.mxu0 %v2130
    %v2353 = vpop.f32.mrf.mxu0
    %v2354 = vadd.f32 0.0, %v2353
    %v2355 = vpop.f32.mrf.mxu0
    %2356 = vmatprep.mubr.f32.mxu0 0.0
    %2357 = vmatmul.mubr.f32.gmra.mxu0 %v2133
    %v2358 = vpop.f32.mrf.mxu0
    %v2359 = vadd.f32 0.0, %v2358
    %v2360 = vpop.f32.mrf.mxu0
    %2361 = vdwg.mxu0
    %v2362 = vadd.f32 %v1966, %v2204
    %v2363 = vadd.f32 %v1967, %v2209
    %v2364 = vadd.f32 %v1968, %v2214
    %v2365 = vadd.f32 %v1969, %v2219
    %v2366 = vadd.f32 %v1970, %v2224
    %v2367 = vadd.f32 %v1971, %v2229
    %v2368 = vadd.f32 %v1972, %v2234
    %v2369 = vadd.f32 %v1973, %v2239
    %v2370 = vadd.f32 %v1974, %v2244
    %v2371 = vadd.f32 %v1975, %v2249
    %v2372 = vadd.f32 %v1976, %v2254
    %v2373 = vadd.f32 %v1977, %v2259
    %v2374 = vadd.f32 %v1978, %v2264
    %v2375 = vadd.f32 %v1979, %v2269
    %v2376 = vadd.f32 %v1980, %v2274
    %v2377 = vadd.f32 %v1981, %v2279
    %v2378 = vadd.f32 %v1982, %v2284
    %v2379 = vadd.f32 %v1983, %v2289
    %v2380 = vadd.f32 %v1984, %v2294
    %v2381 = vadd.f32 %v1985, %v2299
    %v2382 = vadd.f32 %v1986, %v2304
    %v2383 = vadd.f32 %v1987, %v2309
    %v2384 = vadd.f32 %v1988, %v2314
    %v2385 = vadd.f32 %v1989, %v2319
    %v2386 = vadd.f32 %v1990, %v2324
    %v2387 = vadd.f32 %v1991, %v2329
    %v2388 = vadd.f32 %v1992, %v2334
    %v2389 = vadd.f32 %v1993, %v2339
    %v2390 = vadd.f32 %v1994, %v2344
    %v2391 = vadd.f32 %v1995, %v2349
    %v2392 = vadd.f32 %v1996, %v2354
    %v2393 = vadd.f32 %v1997, %v2359
    %s2394 = scalar_lea.vmem %s6, 768
    %v2395 = vld [vmem:[%s2394] sm:$0xff]
    %v2396 = vld [vmem:[%s2394 + $0x8] sm:$0xff]
    %v2397 = vld [vmem:[%s2394 + $0x10] sm:$0xff]
    %v2398 = vld [vmem:[%s2394 + $0x18] sm:$0xff]
    %v2399 = vld [vmem:[%s2394 + $0x20] sm:$0xff]
    %v2400 = vld [vmem:[%s2394 + $0x28] sm:$0xff]
    %v2401 = vld [vmem:[%s2394 + $0x30] sm:$0xff]
    %v2402 = vld [vmem:[%s2394 + $0x38] sm:$0xff]
    %v2403 = vld [vmem:[%s2394 + $0x40] sm:$0xff]
    %v2404 = vld [vmem:[%s2394 + $0x48] sm:$0xff]
    %v2405 = vld [vmem:[%s2394 + $0x50] sm:$0xff]
    %v2406 = vld [vmem:[%s2394 + $0x58] sm:$0xff]
    %v2407 = vld [vmem:[%s2394 + $0x60] sm:$0xff]
    %v2408 = vld [vmem:[%s2394 + $0x68] sm:$0xff]
    %v2409 = vld [vmem:[%s2394 + $0x70] sm:$0xff]
    %v2410 = vld [vmem:[%s2394 + $0x78] sm:$0xff]
    %v2411 = vld [vmem:[%s2394 + $0x80] sm:$0xff]
    %v2412 = vld [vmem:[%s2394 + $0x88] sm:$0xff]
    %v2413 = vld [vmem:[%s2394 + $0x90] sm:$0xff]
    %v2414 = vld [vmem:[%s2394 + $0x98] sm:$0xff]
    %v2415 = vld [vmem:[%s2394 + $0xa0] sm:$0xff]
    %v2416 = vld [vmem:[%s2394 + $0xa8] sm:$0xff]
    %v2417 = vld [vmem:[%s2394 + $0xb0] sm:$0xff]
    %v2418 = vld [vmem:[%s2394 + $0xb8] sm:$0xff]
    %v2419 = vld [vmem:[%s2394 + $0xc0] sm:$0xff]
    %v2420 = vld [vmem:[%s2394 + $0xc8] sm:$0xff]
    %v2421 = vld [vmem:[%s2394 + $0xd0] sm:$0xff]
    %v2422 = vld [vmem:[%s2394 + $0xd8] sm:$0xff]
    %v2423 = vld [vmem:[%s2394 + $0xe0] sm:$0xff]
    %v2424 = vld [vmem:[%s2394 + $0xe8] sm:$0xff]
    %v2425 = vld [vmem:[%s2394 + $0xf0] sm:$0xff]
    %v2426 = vld [vmem:[%s2394 + $0xf8] sm:$0xff]
    %2427 = vrot.lane.b32.xlu0 %v752, 104
    %v2428 = vpop.permute.xlu0 %2427
    %2429 = vrot.lane.b32.xlu0 %v753, 104
    %v2430 = vpop.permute.xlu0 %2429
    %2431 = vrot.lane.b32.xlu0 %v754, 104
    %v2432 = vpop.permute.xlu0 %2431
    %v2436 = vsel %vm1242, %v2395, 0
    %v2439 = vsel %vm1242, %v2396, 0
    %v2442 = vsel %vm1242, %v2397, 0
    %v2445 = vsel %vm1242, %v2398, 0
    %v2448 = vsel %vm1242, %v2399, 0
    %v2451 = vsel %vm1242, %v2400, 0
    %v2454 = vsel %vm1242, %v2401, 0
    %v2457 = vsel %vm1242, %v2402, 0
    %v2460 = vsel %vm1242, %v2403, 0
    %v2463 = vsel %vm1242, %v2404, 0
    %v2466 = vsel %vm1242, %v2405, 0
    %v2469 = vsel %vm1242, %v2406, 0
    %v2472 = vsel %vm1242, %v2407, 0
    %v2475 = vsel %vm1242, %v2408, 0
    %v2478 = vsel %vm1242, %v2409, 0
    %v2481 = vsel %vm1242, %v2410, 0
    %v2484 = vsel %vm1242, %v2411, 0
    %v2487 = vsel %vm1242, %v2412, 0
    %v2490 = vsel %vm1242, %v2413, 0
    %v2493 = vsel %vm1242, %v2414, 0
    %v2496 = vsel %vm1242, %v2415, 0
    %v2499 = vsel %vm1242, %v2416, 0
    %v2502 = vsel %vm1242, %v2417, 0
    %v2505 = vsel %vm1242, %v2418, 0
    %v2508 = vsel %vm1242, %v2419, 0
    %v2511 = vsel %vm1242, %v2420, 0
    %v2514 = vsel %vm1242, %v2421, 0
    %v2517 = vsel %vm1242, %v2422, 0
    %v2520 = vsel %vm1242, %v2423, 0
    %v2523 = vsel %vm1242, %v2424, 0
    %v2526 = vsel %vm1242, %v2425, 0
    %v2529 = vsel %vm1242, %v2426, 0
    %v2531 = vsel %vm1339, %v2432, 0
    %2533 = vmatprep.subr.mxu0 0.0
    %2534 = vmatpush1.msra.mxu0 0.0
    %2535 = vmatprep.subr.mxu0 0.0
    %2536 = vmatpush1.msra.mxu0 0.0
    %2537 = vmatprep.subr.mxu0 0.0
    %2538 = vmatpush1.msra.mxu0 0.0
    %2539 = vmatprep.subr.mxu0 0.0
    %2540 = vmatpush1.msra.mxu0 0.0
    %2541 = vmatprep.subr.mxu0 0.0
    %2542 = vmatpush1.msra.mxu0 0.0
    %2543 = vmatprep.subr.mxu0 0.0
    %2544 = vmatpush1.msra.mxu0 0.0
    %2545 = vmatprep.subr.mxu0 0.0
    %2546 = vmatpush1.msra.mxu0 0.0
    %2547 = vmatprep.subr.mxu0 0.0
    %2548 = vmatpush1.msra.mxu0 0.0
    %2549 = vmatprep.subr.mxu0 0.0
    %2550 = vmatpush1.msra.mxu0 0.0
    %2551 = vmatprep.subr.mxu0 0.0
    %2552 = vmatpush1.msra.mxu0 0.0
    %2553 = vmatprep.subr.mxu0 0.0
    %2554 = vmatpush1.msra.mxu0 0.0
    %2555 = vmatprep.subr.mxu0 0.0
    %2556 = vmatpush1.msra.mxu0 0.0
    %2557 = vmatprep.subr.mxu0 0.0
    %2558 = vmatpush1.msra.mxu0 0.0
    %2559 = vmatprep.subr.mxu0 0.0
    %2560 = vmatpush1.msra.mxu0 %v2531
    %2561 = vmatprep.subr.mxu0 0.0
    %2562 = vmatpush1.msra.mxu0 %v2430
    %2563 = vmatprep.subr.mxu0 0.0
    %2564 = vmatpush1.msra.mxu0 %v2428
    %2565 = vmatprep.subr.mxu0 0.0
    %2566 = vmatpush2.msra.mxu0 0.0
    %2567 = vmatprep.subr.mxu0 0.0
    %2568 = vmatpush2.msra.mxu0 0.0
    %2569 = vmatprep.subr.mxu0 0.0
    %2570 = vmatpush2.msra.mxu0 0.0
    %2571 = vmatprep.subr.mxu0 0.0
    %2572 = vmatpush2.msra.mxu0 0.0
    %2573 = vmatprep.subr.mxu0 0.0
    %2574 = vmatpush2.msra.mxu0 0.0
    %2575 = vmatprep.subr.mxu0 0.0
    %2576 = vmatpush2.msra.mxu0 0.0
    %2577 = vmatprep.subr.mxu0 0.0
    %2578 = vmatpush2.msra.mxu0 0.0
    %2579 = vmatprep.subr.mxu0 0.0
    %2580 = vmatpush2.msra.mxu0 0.0
    %2581 = vmatprep.subr.mxu0 0.0
    %2582 = vmatpush2.msra.mxu0 0.0
    %2583 = vmatprep.subr.mxu0 0.0
    %2584 = vmatpush2.msra.mxu0 0.0
    %2585 = vmatprep.subr.mxu0 0.0
    %2586 = vmatpush2.msra.mxu0 0.0
    %2587 = vmatprep.subr.mxu0 0.0
    %2588 = vmatpush2.msra.mxu0 0.0
    %2589 = vmatprep.subr.mxu0 0.0
    %2590 = vmatpush2.msra.mxu0 0.0
    %2591 = vmatprep.subr.mxu0 0.0
    %2592 = vmatpush2.msra.mxu0 0.0
    %2593 = vmatprep.subr.mxu0 0.0
    %2594 = vmatpush2.msra.mxu0 0.0
    %2595 = vmatprep.subr.mxu0 0.0
    %2596 = vmatpush2.msra.mxu0 0.0
    %2597 = vmatprep.mubr.f32.mxu0 0.0
    %2598 = vmatmul.mubr.f32.gmra.mxu0 %v2436
    %v2599 = vpop.f32.mrf.mxu0
    %v2600 = vadd.f32 0.0, %v2599
    %v2601 = vpop.f32.mrf.mxu0
    %2602 = vmatprep.mubr.f32.mxu0 0.0
    %2603 = vmatmul.mubr.f32.gmra.mxu0 %v2439
    %v2604 = vpop.f32.mrf.mxu0
    %v2605 = vadd.f32 0.0, %v2604
    %v2606 = vpop.f32.mrf.mxu0
    %2607 = vmatprep.mubr.f32.mxu0 0.0
    %2608 = vmatmul.mubr.f32.gmra.mxu0 %v2442
    %v2609 = vpop.f32.mrf.mxu0
    %v2610 = vadd.f32 0.0, %v2609
    %v2611 = vpop.f32.mrf.mxu0
    %2612 = vmatprep.mubr.f32.mxu0 0.0
    %2613 = vmatmul.mubr.f32.gmra.mxu0 %v2445
    %v2614 = vpop.f32.mrf.mxu0
    %v2615 = vadd.f32 0.0, %v2614
    %v2616 = vpop.f32.mrf.mxu0
    %2617 = vmatprep.mubr.f32.mxu0 0.0
    %2618 = vmatmul.mubr.f32.gmra.mxu0 %v2448
    %v2619 = vpop.f32.mrf.mxu0
    %v2620 = vadd.f32 0.0, %v2619
    %v2621 = vpop.f32.mrf.mxu0
    %2622 = vmatprep.mubr.f32.mxu0 0.0
    %2623 = vmatmul.mubr.f32.gmra.mxu0 %v2451
    %v2624 = vpop.f32.mrf.mxu0
    %v2625 = vadd.f32 0.0, %v2624
    %v2626 = vpop.f32.mrf.mxu0
    %2627 = vmatprep.mubr.f32.mxu0 0.0
    %2628 = vmatmul.mubr.f32.gmra.mxu0 %v2454
    %v2629 = vpop.f32.mrf.mxu0
    %v2630 = vadd.f32 0.0, %v2629
    %v2631 = vpop.f32.mrf.mxu0
    %2632 = vmatprep.mubr.f32.mxu0 0.0
    %2633 = vmatmul.mubr.f32.gmra.mxu0 %v2457
    %v2634 = vpop.f32.mrf.mxu0
    %v2635 = vadd.f32 0.0, %v2634
    %v2636 = vpop.f32.mrf.mxu0
    %2637 = vmatprep.mubr.f32.mxu0 0.0
    %2638 = vmatmul.mubr.f32.gmra.mxu0 %v2460
    %v2639 = vpop.f32.mrf.mxu0
    %v2640 = vadd.f32 0.0, %v2639
    %v2641 = vpop.f32.mrf.mxu0
    %2642 = vmatprep.mubr.f32.mxu0 0.0
    %2643 = vmatmul.mubr.f32.gmra.mxu0 %v2463
    %v2644 = vpop.f32.mrf.mxu0
    %v2645 = vadd.f32 0.0, %v2644
    %v2646 = vpop.f32.mrf.mxu0
    %2647 = vmatprep.mubr.f32.mxu0 0.0
    %2648 = vmatmul.mubr.f32.gmra.mxu0 %v2466
    %v2649 = vpop.f32.mrf.mxu0
    %v2650 = vadd.f32 0.0, %v2649
    %v2651 = vpop.f32.mrf.mxu0
    %2652 = vmatprep.mubr.f32.mxu0 0.0
    %2653 = vmatmul.mubr.f32.gmra.mxu0 %v2469
    %v2654 = vpop.f32.mrf.mxu0
    %v2655 = vadd.f32 0.0, %v2654
    %v2656 = vpop.f32.mrf.mxu0
    %2657 = vmatprep.mubr.f32.mxu0 0.0
    %2658 = vmatmul.mubr.f32.gmra.mxu0 %v2472
    %v2659 = vpop.f32.mrf.mxu0
    %v2660 = vadd.f32 0.0, %v2659
    %v2661 = vpop.f32.mrf.mxu0
    %2662 = vmatprep.mubr.f32.mxu0 0.0
    %2663 = vmatmul.mubr.f32.gmra.mxu0 %v2475
    %v2664 = vpop.f32.mrf.mxu0
    %v2665 = vadd.f32 0.0, %v2664
    %v2666 = vpop.f32.mrf.mxu0
    %2667 = vmatprep.mubr.f32.mxu0 0.0
    %2668 = vmatmul.mubr.f32.gmra.mxu0 %v2478
    %v2669 = vpop.f32.mrf.mxu0
    %v2670 = vadd.f32 0.0, %v2669
    %v2671 = vpop.f32.mrf.mxu0
    %2672 = vmatprep.mubr.f32.mxu0 0.0
    %2673 = vmatmul.mubr.f32.gmra.mxu0 %v2481
    %v2674 = vpop.f32.mrf.mxu0
    %v2675 = vadd.f32 0.0, %v2674
    %v2676 = vpop.f32.mrf.mxu0
    %2677 = vmatprep.mubr.f32.mxu0 0.0
    %2678 = vmatmul.mubr.f32.gmra.mxu0 %v2484
    %v2679 = vpop.f32.mrf.mxu0
    %v2680 = vadd.f32 0.0, %v2679
    %v2681 = vpop.f32.mrf.mxu0
    %2682 = vmatprep.mubr.f32.mxu0 0.0
    %2683 = vmatmul.mubr.f32.gmra.mxu0 %v2487
    %v2684 = vpop.f32.mrf.mxu0
    %v2685 = vadd.f32 0.0, %v2684
    %v2686 = vpop.f32.mrf.mxu0
    %2687 = vmatprep.mubr.f32.mxu0 0.0
    %2688 = vmatmul.mubr.f32.gmra.mxu0 %v2490
    %v2689 = vpop.f32.mrf.mxu0
    %v2690 = vadd.f32 0.0, %v2689
    %v2691 = vpop.f32.mrf.mxu0
    %2692 = vmatprep.mubr.f32.mxu0 0.0
    %2693 = vmatmul.mubr.f32.gmra.mxu0 %v2493
    %v2694 = vpop.f32.mrf.mxu0
    %v2695 = vadd.f32 0.0, %v2694
    %v2696 = vpop.f32.mrf.mxu0
    %2697 = vmatprep.mubr.f32.mxu0 0.0
    %2698 = vmatmul.mubr.f32.gmra.mxu0 %v2496
    %v2699 = vpop.f32.mrf.mxu0
    %v2700 = vadd.f32 0.0, %v2699
    %v2701 = vpop.f32.mrf.mxu0
    %2702 = vmatprep.mubr.f32.mxu0 0.0
    %2703 = vmatmul.mubr.f32.gmra.mxu0 %v2499
    %v2704 = vpop.f32.mrf.mxu0
    %v2705 = vadd.f32 0.0, %v2704
    %v2706 = vpop.f32.mrf.mxu0
    %2707 = vmatprep.mubr.f32.mxu0 0.0
    %2708 = vmatmul.mubr.f32.gmra.mxu0 %v2502
    %v2709 = vpop.f32.mrf.mxu0
    %v2710 = vadd.f32 0.0, %v2709
    %v2711 = vpop.f32.mrf.mxu0
    %2712 = vmatprep.mubr.f32.mxu0 0.0
    %2713 = vmatmul.mubr.f32.gmra.mxu0 %v2505
    %v2714 = vpop.f32.mrf.mxu0
    %v2715 = vadd.f32 0.0, %v2714
    %v2716 = vpop.f32.mrf.mxu0
    %2717 = vmatprep.mubr.f32.mxu0 0.0
    %2718 = vmatmul.mubr.f32.gmra.mxu0 %v2508
    %v2719 = vpop.f32.mrf.mxu0
    %v2720 = vadd.f32 0.0, %v2719
    %v2721 = vpop.f32.mrf.mxu0
    %2722 = vmatprep.mubr.f32.mxu0 0.0
    %2723 = vmatmul.mubr.f32.gmra.mxu0 %v2511
    %v2724 = vpop.f32.mrf.mxu0
    %v2725 = vadd.f32 0.0, %v2724
    %v2726 = vpop.f32.mrf.mxu0
    %2727 = vmatprep.mubr.f32.mxu0 0.0
    %2728 = vmatmul.mubr.f32.gmra.mxu0 %v2514
    %v2729 = vpop.f32.mrf.mxu0
    %v2730 = vadd.f32 0.0, %v2729
    %v2731 = vpop.f32.mrf.mxu0
    %2732 = vmatprep.mubr.f32.mxu0 0.0
    %2733 = vmatmul.mubr.f32.gmra.mxu0 %v2517
    %v2734 = vpop.f32.mrf.mxu0
    %v2735 = vadd.f32 0.0, %v2734
    %v2736 = vpop.f32.mrf.mxu0
    %2737 = vmatprep.mubr.f32.mxu0 0.0
    %2738 = vmatmul.mubr.f32.gmra.mxu0 %v2520
    %v2739 = vpop.f32.mrf.mxu0
    %v2740 = vadd.f32 0.0, %v2739
    %v2741 = vpop.f32.mrf.mxu0
    %2742 = vmatprep.mubr.f32.mxu0 0.0
    %2743 = vmatmul.mubr.f32.gmra.mxu0 %v2523
    %v2744 = vpop.f32.mrf.mxu0
    %v2745 = vadd.f32 0.0, %v2744
    %v2746 = vpop.f32.mrf.mxu0
    %2747 = vmatprep.mubr.f32.mxu0 0.0
    %2748 = vmatmul.mubr.f32.gmra.mxu0 %v2526
    %v2749 = vpop.f32.mrf.mxu0
    %v2750 = vadd.f32 0.0, %v2749
    %v2751 = vpop.f32.mrf.mxu0
    %2752 = vmatprep.mubr.f32.mxu0 0.0
    %2753 = vmatmul.mubr.f32.gmra.mxu0 %v2529
    %v2754 = vpop.f32.mrf.mxu0
    %v2755 = vadd.f32 0.0, %v2754
    %v2756 = vpop.f32.mrf.mxu0
    %2757 = vdwg.mxu0
    %v2758 = vadd.f32 %v2362, %v2600
    %v2759 = vadd.f32 %v2363, %v2605
    %v2760 = vadd.f32 %v2364, %v2610
    %v2761 = vadd.f32 %v2365, %v2615
    %v2762 = vadd.f32 %v2366, %v2620
    %v2763 = vadd.f32 %v2367, %v2625
    %v2764 = vadd.f32 %v2368, %v2630
    %v2765 = vadd.f32 %v2369, %v2635
    %v2766 = vadd.f32 %v2370, %v2640
    %v2767 = vadd.f32 %v2371, %v2645
    %v2768 = vadd.f32 %v2372, %v2650
    %v2769 = vadd.f32 %v2373, %v2655
    %v2770 = vadd.f32 %v2374, %v2660
    %v2771 = vadd.f32 %v2375, %v2665
    %v2772 = vadd.f32 %v2376, %v2670
    %v2773 = vadd.f32 %v2377, %v2675
    %v2774 = vadd.f32 %v2378, %v2680
    %v2775 = vadd.f32 %v2379, %v2685
    %v2776 = vadd.f32 %v2380, %v2690
    %v2777 = vadd.f32 %v2381, %v2695
    %v2778 = vadd.f32 %v2382, %v2700
    %v2779 = vadd.f32 %v2383, %v2705
    %v2780 = vadd.f32 %v2384, %v2710
    %v2781 = vadd.f32 %v2385, %v2715
    %v2782 = vadd.f32 %v2386, %v2720
    %v2783 = vadd.f32 %v2387, %v2725
    %v2784 = vadd.f32 %v2388, %v2730
    %v2785 = vadd.f32 %v2389, %v2735
    %v2786 = vadd.f32 %v2390, %v2740
    %v2787 = vadd.f32 %v2391, %v2745
    %v2788 = vadd.f32 %v2392, %v2750
    %v2789 = vadd.f32 %v2393, %v2755
    %s2790 = scalar_lea.vmem %s6, 1024
    %v2791 = vld [vmem:[%s2790] sm:$0xff]
    %v2792 = vld [vmem:[%s2790 + $0x8] sm:$0xff]
    %v2793 = vld [vmem:[%s2790 + $0x10] sm:$0xff]
    %v2794 = vld [vmem:[%s2790 + $0x18] sm:$0xff]
    %v2795 = vld [vmem:[%s2790 + $0x20] sm:$0xff]
    %v2796 = vld [vmem:[%s2790 + $0x28] sm:$0xff]
    %v2797 = vld [vmem:[%s2790 + $0x30] sm:$0xff]
    %v2798 = vld [vmem:[%s2790 + $0x38] sm:$0xff]
    %v2799 = vld [vmem:[%s2790 + $0x40] sm:$0xff]
    %v2800 = vld [vmem:[%s2790 + $0x48] sm:$0xff]
    %v2801 = vld [vmem:[%s2790 + $0x50] sm:$0xff]
    %v2802 = vld [vmem:[%s2790 + $0x58] sm:$0xff]
    %v2803 = vld [vmem:[%s2790 + $0x60] sm:$0xff]
    %v2804 = vld [vmem:[%s2790 + $0x68] sm:$0xff]
    %v2805 = vld [vmem:[%s2790 + $0x70] sm:$0xff]
    %v2806 = vld [vmem:[%s2790 + $0x78] sm:$0xff]
    %v2807 = vld [vmem:[%s2790 + $0x80] sm:$0xff]
    %v2808 = vld [vmem:[%s2790 + $0x88] sm:$0xff]
    %v2809 = vld [vmem:[%s2790 + $0x90] sm:$0xff]
    %v2810 = vld [vmem:[%s2790 + $0x98] sm:$0xff]
    %v2811 = vld [vmem:[%s2790 + $0xa0] sm:$0xff]
    %v2812 = vld [vmem:[%s2790 + $0xa8] sm:$0xff]
    %v2813 = vld [vmem:[%s2790 + $0xb0] sm:$0xff]
    %v2814 = vld [vmem:[%s2790 + $0xb8] sm:$0xff]
    %v2815 = vld [vmem:[%s2790 + $0xc0] sm:$0xff]
    %v2816 = vld [vmem:[%s2790 + $0xc8] sm:$0xff]
    %v2817 = vld [vmem:[%s2790 + $0xd0] sm:$0xff]
    %v2818 = vld [vmem:[%s2790 + $0xd8] sm:$0xff]
    %v2819 = vld [vmem:[%s2790 + $0xe0] sm:$0xff]
    %v2820 = vld [vmem:[%s2790 + $0xe8] sm:$0xff]
    %v2821 = vld [vmem:[%s2790 + $0xf0] sm:$0xff]
    %v2822 = vld [vmem:[%s2790 + $0xf8] sm:$0xff]
    %2823 = vrot.lane.b32.xlu0 %v752, 96
    %v2824 = vpop.permute.xlu0 %2823
    %2825 = vrot.lane.b32.xlu0 %v753, 96
    %v2826 = vpop.permute.xlu0 %2825
    %2827 = vrot.lane.b32.xlu0 %v754, 96
    %v2828 = vpop.permute.xlu0 %2827
    %v2832 = vsel %vm1242, %v2791, 0
    %v2835 = vsel %vm1242, %v2792, 0
    %v2838 = vsel %vm1242, %v2793, 0
    %v2841 = vsel %vm1242, %v2794, 0
    %v2844 = vsel %vm1242, %v2795, 0
    %v2847 = vsel %vm1242, %v2796, 0
    %v2850 = vsel %vm1242, %v2797, 0
    %v2853 = vsel %vm1242, %v2798, 0
    %v2856 = vsel %vm1242, %v2799, 0
    %v2859 = vsel %vm1242, %v2800, 0
    %v2862 = vsel %vm1242, %v2801, 0
    %v2865 = vsel %vm1242, %v2802, 0
    %v2868 = vsel %vm1242, %v2803, 0
    %v2871 = vsel %vm1242, %v2804, 0
    %v2874 = vsel %vm1242, %v2805, 0
    %v2877 = vsel %vm1242, %v2806, 0
    %v2880 = vsel %vm1242, %v2807, 0
    %v2883 = vsel %vm1242, %v2808, 0
    %v2886 = vsel %vm1242, %v2809, 0
    %v2889 = vsel %vm1242, %v2810, 0
    %v2892 = vsel %vm1242, %v2811, 0
    %v2895 = vsel %vm1242, %v2812, 0
    %v2898 = vsel %vm1242, %v2813, 0
    %v2901 = vsel %vm1242, %v2814, 0
    %v2904 = vsel %vm1242, %v2815, 0
    %v2907 = vsel %vm1242, %v2816, 0
    %v2910 = vsel %vm1242, %v2817, 0
    %v2913 = vsel %vm1242, %v2818, 0
    %v2916 = vsel %vm1242, %v2819, 0
    %v2919 = vsel %vm1242, %v2820, 0
    %v2922 = vsel %vm1242, %v2821, 0
    %v2925 = vsel %vm1242, %v2822, 0
    %v2927 = vsel %vm1339, %v2828, 0
    %2929 = vmatprep.subr.mxu0 0.0
    %2930 = vmatpush1.msra.mxu0 0.0
    %2931 = vmatprep.subr.mxu0 0.0
    %2932 = vmatpush1.msra.mxu0 0.0
    %2933 = vmatprep.subr.mxu0 0.0
    %2934 = vmatpush1.msra.mxu0 0.0
    %2935 = vmatprep.subr.mxu0 0.0
    %2936 = vmatpush1.msra.mxu0 0.0
    %2937 = vmatprep.subr.mxu0 0.0
    %2938 = vmatpush1.msra.mxu0 0.0
    %2939 = vmatprep.subr.mxu0 0.0
    %2940 = vmatpush1.msra.mxu0 0.0
    %2941 = vmatprep.subr.mxu0 0.0
    %2942 = vmatpush1.msra.mxu0 0.0
    %2943 = vmatprep.subr.mxu0 0.0
    %2944 = vmatpush1.msra.mxu0 0.0
    %2945 = vmatprep.subr.mxu0 0.0
    %2946 = vmatpush1.msra.mxu0 0.0
    %2947 = vmatprep.subr.mxu0 0.0
    %2948 = vmatpush1.msra.mxu0 0.0
    %2949 = vmatprep.subr.mxu0 0.0
    %2950 = vmatpush1.msra.mxu0 0.0
    %2951 = vmatprep.subr.mxu0 0.0
    %2952 = vmatpush1.msra.mxu0 0.0
    %2953 = vmatprep.subr.mxu0 0.0
    %2954 = vmatpush1.msra.mxu0 0.0
    %2955 = vmatprep.subr.mxu0 0.0
    %2956 = vmatpush1.msra.mxu0 %v2927
    %2957 = vmatprep.subr.mxu0 0.0
    %2958 = vmatpush1.msra.mxu0 %v2826
    %2959 = vmatprep.subr.mxu0 0.0
    %2960 = vmatpush1.msra.mxu0 %v2824
    %2961 = vmatprep.subr.mxu0 0.0
    %2962 = vmatpush2.msra.mxu0 0.0
    %2963 = vmatprep.subr.mxu0 0.0
    %2964 = vmatpush2.msra.mxu0 0.0
    %2965 = vmatprep.subr.mxu0 0.0
    %2966 = vmatpush2.msra.mxu0 0.0
    %2967 = vmatprep.subr.mxu0 0.0
    %2968 = vmatpush2.msra.mxu0 0.0
    %2969 = vmatprep.subr.mxu0 0.0
    %2970 = vmatpush2.msra.mxu0 0.0
    %2971 = vmatprep.subr.mxu0 0.0
    %2972 = vmatpush2.msra.mxu0 0.0
    %2973 = vmatprep.subr.mxu0 0.0
    %2974 = vmatpush2.msra.mxu0 0.0
    %2975 = vmatprep.subr.mxu0 0.0
    %2976 = vmatpush2.msra.mxu0 0.0
    %2977 = vmatprep.subr.mxu0 0.0
    %2978 = vmatpush2.msra.mxu0 0.0
    %2979 = vmatprep.subr.mxu0 0.0
    %2980 = vmatpush2.msra.mxu0 0.0
    %2981 = vmatprep.subr.mxu0 0.0
    %2982 = vmatpush2.msra.mxu0 0.0
    %2983 = vmatprep.subr.mxu0 0.0
    %2984 = vmatpush2.msra.mxu0 0.0
    %2985 = vmatprep.subr.mxu0 0.0
    %2986 = vmatpush2.msra.mxu0 0.0
    %2987 = vmatprep.subr.mxu0 0.0
    %2988 = vmatpush2.msra.mxu0 0.0
    %2989 = vmatprep.subr.mxu0 0.0
    %2990 = vmatpush2.msra.mxu0 0.0
    %2991 = vmatprep.subr.mxu0 0.0
    %2992 = vmatpush2.msra.mxu0 0.0
    %2993 = vmatprep.mubr.f32.mxu0 0.0
    %2994 = vmatmul.mubr.f32.gmra.mxu0 %v2832
    %v2995 = vpop.f32.mrf.mxu0
    %v2996 = vadd.f32 0.0, %v2995
    %v2997 = vpop.f32.mrf.mxu0
    %2998 = vmatprep.mubr.f32.mxu0 0.0
    %2999 = vmatmul.mubr.f32.gmra.mxu0 %v2835
    %v3000 = vpop.f32.mrf.mxu0
    %v3001 = vadd.f32 0.0, %v3000
    %v3002 = vpop.f32.mrf.mxu0
    %3003 = vmatprep.mubr.f32.mxu0 0.0
    %3004 = vmatmul.mubr.f32.gmra.mxu0 %v2838
    %v3005 = vpop.f32.mrf.mxu0
    %v3006 = vadd.f32 0.0, %v3005
    %v3007 = vpop.f32.mrf.mxu0
    %3008 = vmatprep.mubr.f32.mxu0 0.0
    %3009 = vmatmul.mubr.f32.gmra.mxu0 %v2841
    %v3010 = vpop.f32.mrf.mxu0
    %v3011 = vadd.f32 0.0, %v3010
    %v3012 = vpop.f32.mrf.mxu0
    %3013 = vmatprep.mubr.f32.mxu0 0.0
    %3014 = vmatmul.mubr.f32.gmra.mxu0 %v2844
    %v3015 = vpop.f32.mrf.mxu0
    %v3016 = vadd.f32 0.0, %v3015
    %v3017 = vpop.f32.mrf.mxu0
    %3018 = vmatprep.mubr.f32.mxu0 0.0
    %3019 = vmatmul.mubr.f32.gmra.mxu0 %v2847
    %v3020 = vpop.f32.mrf.mxu0
    %v3021 = vadd.f32 0.0, %v3020
    %v3022 = vpop.f32.mrf.mxu0
    %3023 = vmatprep.mubr.f32.mxu0 0.0
    %3024 = vmatmul.mubr.f32.gmra.mxu0 %v2850
    %v3025 = vpop.f32.mrf.mxu0
    %v3026 = vadd.f32 0.0, %v3025
    %v3027 = vpop.f32.mrf.mxu0
    %3028 = vmatprep.mubr.f32.mxu0 0.0
    %3029 = vmatmul.mubr.f32.gmra.mxu0 %v2853
    %v3030 = vpop.f32.mrf.mxu0
    %v3031 = vadd.f32 0.0, %v3030
    %v3032 = vpop.f32.mrf.mxu0
    %3033 = vmatprep.mubr.f32.mxu0 0.0
    %3034 = vmatmul.mubr.f32.gmra.mxu0 %v2856
    %v3035 = vpop.f32.mrf.mxu0
    %v3036 = vadd.f32 0.0, %v3035
    %v3037 = vpop.f32.mrf.mxu0
    %3038 = vmatprep.mubr.f32.mxu0 0.0
    %3039 = vmatmul.mubr.f32.gmra.mxu0 %v2859
    %v3040 = vpop.f32.mrf.mxu0
    %v3041 = vadd.f32 0.0, %v3040
    %v3042 = vpop.f32.mrf.mxu0
    %3043 = vmatprep.mubr.f32.mxu0 0.0
    %3044 = vmatmul.mubr.f32.gmra.mxu0 %v2862
    %v3045 = vpop.f32.mrf.mxu0
    %v3046 = vadd.f32 0.0, %v3045
    %v3047 = vpop.f32.mrf.mxu0
    %3048 = vmatprep.mubr.f32.mxu0 0.0
    %3049 = vmatmul.mubr.f32.gmra.mxu0 %v2865
    %v3050 = vpop.f32.mrf.mxu0
    %v3051 = vadd.f32 0.0, %v3050
    %v3052 = vpop.f32.mrf.mxu0
    %3053 = vmatprep.mubr.f32.mxu0 0.0
    %3054 = vmatmul.mubr.f32.gmra.mxu0 %v2868
    %v3055 = vpop.f32.mrf.mxu0
    %v3056 = vadd.f32 0.0, %v3055
    %v3057 = vpop.f32.mrf.mxu0
    %3058 = vmatprep.mubr.f32.mxu0 0.0
    %3059 = vmatmul.mubr.f32.gmra.mxu0 %v2871
    %v3060 = vpop.f32.mrf.mxu0
    %v3061 = vadd.f32 0.0, %v3060
    %v3062 = vpop.f32.mrf.mxu0
    %3063 = vmatprep.mubr.f32.mxu0 0.0
    %3064 = vmatmul.mubr.f32.gmra.mxu0 %v2874
    %v3065 = vpop.f32.mrf.mxu0
    %v3066 = vadd.f32 0.0, %v3065
    %v3067 = vpop.f32.mrf.mxu0
    %3068 = vmatprep.mubr.f32.mxu0 0.0
    %3069 = vmatmul.mubr.f32.gmra.mxu0 %v2877
    %v3070 = vpop.f32.mrf.mxu0
    %v3071 = vadd.f32 0.0, %v3070
    %v3072 = vpop.f32.mrf.mxu0
    %3073 = vmatprep.mubr.f32.mxu0 0.0
    %3074 = vmatmul.mubr.f32.gmra.mxu0 %v2880
    %v3075 = vpop.f32.mrf.mxu0
    %v3076 = vadd.f32 0.0, %v3075
    %v3077 = vpop.f32.mrf.mxu0
    %3078 = vmatprep.mubr.f32.mxu0 0.0
    %3079 = vmatmul.mubr.f32.gmra.mxu0 %v2883
    %v3080 = vpop.f32.mrf.mxu0
    %v3081 = vadd.f32 0.0, %v3080
    %v3082 = vpop.f32.mrf.mxu0
    %3083 = vmatprep.mubr.f32.mxu0 0.0
    %3084 = vmatmul.mubr.f32.gmra.mxu0 %v2886
    %v3085 = vpop.f32.mrf.mxu0
    %v3086 = vadd.f32 0.0, %v3085
    %v3087 = vpop.f32.mrf.mxu0
    %3088 = vmatprep.mubr.f32.mxu0 0.0
    %3089 = vmatmul.mubr.f32.gmra.mxu0 %v2889
    %v3090 = vpop.f32.mrf.mxu0
    %v3091 = vadd.f32 0.0, %v3090
    %v3092 = vpop.f32.mrf.mxu0
    %3093 = vmatprep.mubr.f32.mxu0 0.0
    %3094 = vmatmul.mubr.f32.gmra.mxu0 %v2892
    %v3095 = vpop.f32.mrf.mxu0
    %v3096 = vadd.f32 0.0, %v3095
    %v3097 = vpop.f32.mrf.mxu0
    %3098 = vmatprep.mubr.f32.mxu0 0.0
    %3099 = vmatmul.mubr.f32.gmra.mxu0 %v2895
    %v3100 = vpop.f32.mrf.mxu0
    %v3101 = vadd.f32 0.0, %v3100
    %v3102 = vpop.f32.mrf.mxu0
    %3103 = vmatprep.mubr.f32.mxu0 0.0
    %3104 = vmatmul.mubr.f32.gmra.mxu0 %v2898
    %v3105 = vpop.f32.mrf.mxu0
    %v3106 = vadd.f32 0.0, %v3105
    %v3107 = vpop.f32.mrf.mxu0
    %3108 = vmatprep.mubr.f32.mxu0 0.0
    %3109 = vmatmul.mubr.f32.gmra.mxu0 %v2901
    %v3110 = vpop.f32.mrf.mxu0
    %v3111 = vadd.f32 0.0, %v3110
    %v3112 = vpop.f32.mrf.mxu0
    %3113 = vmatprep.mubr.f32.mxu0 0.0
    %3114 = vmatmul.mubr.f32.gmra.mxu0 %v2904
    %v3115 = vpop.f32.mrf.mxu0
    %v3116 = vadd.f32 0.0, %v3115
    %v3117 = vpop.f32.mrf.mxu0
    %3118 = vmatprep.mubr.f32.mxu0 0.0
    %3119 = vmatmul.mubr.f32.gmra.mxu0 %v2907
    %v3120 = vpop.f32.mrf.mxu0
    %v3121 = vadd.f32 0.0, %v3120
    %v3122 = vpop.f32.mrf.mxu0
    %3123 = vmatprep.mubr.f32.mxu0 0.0
    %3124 = vmatmul.mubr.f32.gmra.mxu0 %v2910
    %v3125 = vpop.f32.mrf.mxu0
    %v3126 = vadd.f32 0.0, %v3125
    %v3127 = vpop.f32.mrf.mxu0
    %3128 = vmatprep.mubr.f32.mxu0 0.0
    %3129 = vmatmul.mubr.f32.gmra.mxu0 %v2913
    %v3130 = vpop.f32.mrf.mxu0
    %v3131 = vadd.f32 0.0, %v3130
    %v3132 = vpop.f32.mrf.mxu0
    %3133 = vmatprep.mubr.f32.mxu0 0.0
    %3134 = vmatmul.mubr.f32.gmra.mxu0 %v2916
    %v3135 = vpop.f32.mrf.mxu0
    %v3136 = vadd.f32 0.0, %v3135
    %v3137 = vpop.f32.mrf.mxu0
    %3138 = vmatprep.mubr.f32.mxu0 0.0
    %3139 = vmatmul.mubr.f32.gmra.mxu0 %v2919
    %v3140 = vpop.f32.mrf.mxu0
    %v3141 = vadd.f32 0.0, %v3140
    %v3142 = vpop.f32.mrf.mxu0
    %3143 = vmatprep.mubr.f32.mxu0 0.0
    %3144 = vmatmul.mubr.f32.gmra.mxu0 %v2922
    %v3145 = vpop.f32.mrf.mxu0
    %v3146 = vadd.f32 0.0, %v3145
    %v3147 = vpop.f32.mrf.mxu0
    %3148 = vmatprep.mubr.f32.mxu0 0.0
    %3149 = vmatmul.mubr.f32.gmra.mxu0 %v2925
    %v3150 = vpop.f32.mrf.mxu0
    %v3151 = vadd.f32 0.0, %v3150
    %v3152 = vpop.f32.mrf.mxu0
    %3153 = vdwg.mxu0
    %v3154 = vadd.f32 %v2758, %v2996
    %v3155 = vadd.f32 %v2759, %v3001
    %v3156 = vadd.f32 %v2760, %v3006
    %v3157 = vadd.f32 %v2761, %v3011
    %v3158 = vadd.f32 %v2762, %v3016
    %v3159 = vadd.f32 %v2763, %v3021
    %v3160 = vadd.f32 %v2764, %v3026
    %v3161 = vadd.f32 %v2765, %v3031
    %v3162 = vadd.f32 %v2766, %v3036
    %v3163 = vadd.f32 %v2767, %v3041
    %v3164 = vadd.f32 %v2768, %v3046
    %v3165 = vadd.f32 %v2769, %v3051
    %v3166 = vadd.f32 %v2770, %v3056
    %v3167 = vadd.f32 %v2771, %v3061
    %v3168 = vadd.f32 %v2772, %v3066
    %v3169 = vadd.f32 %v2773, %v3071
    %v3170 = vadd.f32 %v2774, %v3076
    %v3171 = vadd.f32 %v2775, %v3081
    %v3172 = vadd.f32 %v2776, %v3086
    %v3173 = vadd.f32 %v2777, %v3091
    %v3174 = vadd.f32 %v2778, %v3096
    %v3175 = vadd.f32 %v2779, %v3101
    %v3176 = vadd.f32 %v2780, %v3106
    %v3177 = vadd.f32 %v2781, %v3111
    %v3178 = vadd.f32 %v2782, %v3116
    %v3179 = vadd.f32 %v2783, %v3121
    %v3180 = vadd.f32 %v2784, %v3126
    %v3181 = vadd.f32 %v2785, %v3131
    %v3182 = vadd.f32 %v2786, %v3136
    %v3183 = vadd.f32 %v2787, %v3141
    %v3184 = vadd.f32 %v2788, %v3146
    %v3185 = vadd.f32 %v2789, %v3151
    %s3186 = scalar_lea.vmem %s6, 1280
    %v3187 = vld [vmem:[%s3186] sm:$0xff]
    %v3188 = vld [vmem:[%s3186 + $0x8] sm:$0xff]
    %v3189 = vld [vmem:[%s3186 + $0x10] sm:$0xff]
    %v3190 = vld [vmem:[%s3186 + $0x18] sm:$0xff]
    %v3191 = vld [vmem:[%s3186 + $0x20] sm:$0xff]
    %v3192 = vld [vmem:[%s3186 + $0x28] sm:$0xff]
    %v3193 = vld [vmem:[%s3186 + $0x30] sm:$0xff]
    %v3194 = vld [vmem:[%s3186 + $0x38] sm:$0xff]
    %v3195 = vld [vmem:[%s3186 + $0x40] sm:$0xff]
    %v3196 = vld [vmem:[%s3186 + $0x48] sm:$0xff]
    %v3197 = vld [vmem:[%s3186 + $0x50] sm:$0xff]
    %v3198 = vld [vmem:[%s3186 + $0x58] sm:$0xff]
    %v3199 = vld [vmem:[%s3186 + $0x60] sm:$0xff]
    %v3200 = vld [vmem:[%s3186 + $0x68] sm:$0xff]
    %v3201 = vld [vmem:[%s3186 + $0x70] sm:$0xff]
    %v3202 = vld [vmem:[%s3186 + $0x78] sm:$0xff]
    %v3203 = vld [vmem:[%s3186 + $0x80] sm:$0xff]
    %v3204 = vld [vmem:[%s3186 + $0x88] sm:$0xff]
    %v3205 = vld [vmem:[%s3186 + $0x90] sm:$0xff]
    %v3206 = vld [vmem:[%s3186 + $0x98] sm:$0xff]
    %v3207 = vld [vmem:[%s3186 + $0xa0] sm:$0xff]
    %v3208 = vld [vmem:[%s3186 + $0xa8] sm:$0xff]
    %v3209 = vld [vmem:[%s3186 + $0xb0] sm:$0xff]
    %v3210 = vld [vmem:[%s3186 + $0xb8] sm:$0xff]
    %v3211 = vld [vmem:[%s3186 + $0xc0] sm:$0xff]
    %v3212 = vld [vmem:[%s3186 + $0xc8] sm:$0xff]
    %v3213 = vld [vmem:[%s3186 + $0xd0] sm:$0xff]
    %v3214 = vld [vmem:[%s3186 + $0xd8] sm:$0xff]
    %v3215 = vld [vmem:[%s3186 + $0xe0] sm:$0xff]
    %v3216 = vld [vmem:[%s3186 + $0xe8] sm:$0xff]
    %v3217 = vld [vmem:[%s3186 + $0xf0] sm:$0xff]
    %v3218 = vld [vmem:[%s3186 + $0xf8] sm:$0xff]
    %3219 = vrot.lane.b32.xlu0 %v752, 88
    %v3220 = vpop.permute.xlu0 %3219
    %3221 = vrot.lane.b32.xlu0 %v753, 88
    %v3222 = vpop.permute.xlu0 %3221
    %3223 = vrot.lane.b32.xlu0 %v754, 88
    %v3224 = vpop.permute.xlu0 %3223
    %v3228 = vsel %vm1242, %v3187, 0
    %v3231 = vsel %vm1242, %v3188, 0
    %v3234 = vsel %vm1242, %v3189, 0
    %v3237 = vsel %vm1242, %v3190, 0
    %v3240 = vsel %vm1242, %v3191, 0
    %v3243 = vsel %vm1242, %v3192, 0
    %v3246 = vsel %vm1242, %v3193, 0
    %v3249 = vsel %vm1242, %v3194, 0
    %v3252 = vsel %vm1242, %v3195, 0
    %v3255 = vsel %vm1242, %v3196, 0
    %v3258 = vsel %vm1242, %v3197, 0
    %v3261 = vsel %vm1242, %v3198, 0
    %v3264 = vsel %vm1242, %v3199, 0
    %v3267 = vsel %vm1242, %v3200, 0
    %v3270 = vsel %vm1242, %v3201, 0
    %v3273 = vsel %vm1242, %v3202, 0
    %v3276 = vsel %vm1242, %v3203, 0
    %v3279 = vsel %vm1242, %v3204, 0
    %v3282 = vsel %vm1242, %v3205, 0
    %v3285 = vsel %vm1242, %v3206, 0
    %v3288 = vsel %vm1242, %v3207, 0
    %v3291 = vsel %vm1242, %v3208, 0
    %v3294 = vsel %vm1242, %v3209, 0
    %v3297 = vsel %vm1242, %v3210, 0
    %v3300 = vsel %vm1242, %v3211, 0
    %v3303 = vsel %vm1242, %v3212, 0
    %v3306 = vsel %vm1242, %v3213, 0
    %v3309 = vsel %vm1242, %v3214, 0
    %v3312 = vsel %vm1242, %v3215, 0
    %v3315 = vsel %vm1242, %v3216, 0
    %v3318 = vsel %vm1242, %v3217, 0
    %v3321 = vsel %vm1242, %v3218, 0
    %v3323 = vsel %vm1339, %v3224, 0
    %3325 = vmatprep.subr.mxu0 0.0
    %3326 = vmatpush1.msra.mxu0 0.0
    %3327 = vmatprep.subr.mxu0 0.0
    %3328 = vmatpush1.msra.mxu0 0.0
    %3329 = vmatprep.subr.mxu0 0.0
    %3330 = vmatpush1.msra.mxu0 0.0
    %3331 = vmatprep.subr.mxu0 0.0
    %3332 = vmatpush1.msra.mxu0 0.0
    %3333 = vmatprep.subr.mxu0 0.0
    %3334 = vmatpush1.msra.mxu0 0.0
    %3335 = vmatprep.subr.mxu0 0.0
    %3336 = vmatpush1.msra.mxu0 0.0
    %3337 = vmatprep.subr.mxu0 0.0
    %3338 = vmatpush1.msra.mxu0 0.0
    %3339 = vmatprep.subr.mxu0 0.0
    %3340 = vmatpush1.msra.mxu0 0.0
    %3341 = vmatprep.subr.mxu0 0.0
    %3342 = vmatpush1.msra.mxu0 0.0
    %3343 = vmatprep.subr.mxu0 0.0
    %3344 = vmatpush1.msra.mxu0 0.0
    %3345 = vmatprep.subr.mxu0 0.0
    %3346 = vmatpush1.msra.mxu0 0.0
    %3347 = vmatprep.subr.mxu0 0.0
    %3348 = vmatpush1.msra.mxu0 0.0
    %3349 = vmatprep.subr.mxu0 0.0
    %3350 = vmatpush1.msra.mxu0 0.0
    %3351 = vmatprep.subr.mxu0 0.0
    %3352 = vmatpush1.msra.mxu0 %v3323
    %3353 = vmatprep.subr.mxu0 0.0
    %3354 = vmatpush1.msra.mxu0 %v3222
    %3355 = vmatprep.subr.mxu0 0.0
    %3356 = vmatpush1.msra.mxu0 %v3220
    %3357 = vmatprep.subr.mxu0 0.0
    %3358 = vmatpush2.msra.mxu0 0.0
    %3359 = vmatprep.subr.mxu0 0.0
    %3360 = vmatpush2.msra.mxu0 0.0
    %3361 = vmatprep.subr.mxu0 0.0
    %3362 = vmatpush2.msra.mxu0 0.0
    %3363 = vmatprep.subr.mxu0 0.0
    %3364 = vmatpush2.msra.mxu0 0.0
    %3365 = vmatprep.subr.mxu0 0.0
    %3366 = vmatpush2.msra.mxu0 0.0
    %3367 = vmatprep.subr.mxu0 0.0
    %3368 = vmatpush2.msra.mxu0 0.0
    %3369 = vmatprep.subr.mxu0 0.0
    %3370 = vmatpush2.msra.mxu0 0.0
    %3371 = vmatprep.subr.mxu0 0.0
    %3372 = vmatpush2.msra.mxu0 0.0
    %3373 = vmatprep.subr.mxu0 0.0
    %3374 = vmatpush2.msra.mxu0 0.0
    %3375 = vmatprep.subr.mxu0 0.0
    %3376 = vmatpush2.msra.mxu0 0.0
    %3377 = vmatprep.subr.mxu0 0.0
    %3378 = vmatpush2.msra.mxu0 0.0
    %3379 = vmatprep.subr.mxu0 0.0
    %3380 = vmatpush2.msra.mxu0 0.0
    %3381 = vmatprep.subr.mxu0 0.0
    %3382 = vmatpush2.msra.mxu0 0.0
    %3383 = vmatprep.subr.mxu0 0.0
    %3384 = vmatpush2.msra.mxu0 0.0
    %3385 = vmatprep.subr.mxu0 0.0
    %3386 = vmatpush2.msra.mxu0 0.0
    %3387 = vmatprep.subr.mxu0 0.0
    %3388 = vmatpush2.msra.mxu0 0.0
    %3389 = vmatprep.mubr.f32.mxu0 0.0
    %3390 = vmatmul.mubr.f32.gmra.mxu0 %v3228
    %v3391 = vpop.f32.mrf.mxu0
    %v3392 = vadd.f32 0.0, %v3391
    %v3393 = vpop.f32.mrf.mxu0
    %3394 = vmatprep.mubr.f32.mxu0 0.0
    %3395 = vmatmul.mubr.f32.gmra.mxu0 %v3231
    %v3396 = vpop.f32.mrf.mxu0
    %v3397 = vadd.f32 0.0, %v3396
    %v3398 = vpop.f32.mrf.mxu0
    %3399 = vmatprep.mubr.f32.mxu0 0.0
    %3400 = vmatmul.mubr.f32.gmra.mxu0 %v3234
    %v3401 = vpop.f32.mrf.mxu0
    %v3402 = vadd.f32 0.0, %v3401
    %v3403 = vpop.f32.mrf.mxu0
    %3404 = vmatprep.mubr.f32.mxu0 0.0
    %3405 = vmatmul.mubr.f32.gmra.mxu0 %v3237
    %v3406 = vpop.f32.mrf.mxu0
    %v3407 = vadd.f32 0.0, %v3406
    %v3408 = vpop.f32.mrf.mxu0
    %3409 = vmatprep.mubr.f32.mxu0 0.0
    %3410 = vmatmul.mubr.f32.gmra.mxu0 %v3240
    %v3411 = vpop.f32.mrf.mxu0
    %v3412 = vadd.f32 0.0, %v3411
    %v3413 = vpop.f32.mrf.mxu0
    %3414 = vmatprep.mubr.f32.mxu0 0.0
    %3415 = vmatmul.mubr.f32.gmra.mxu0 %v3243
    %v3416 = vpop.f32.mrf.mxu0
    %v3417 = vadd.f32 0.0, %v3416
    %v3418 = vpop.f32.mrf.mxu0
    %3419 = vmatprep.mubr.f32.mxu0 0.0
    %3420 = vmatmul.mubr.f32.gmra.mxu0 %v3246
    %v3421 = vpop.f32.mrf.mxu0
    %v3422 = vadd.f32 0.0, %v3421
    %v3423 = vpop.f32.mrf.mxu0
    %3424 = vmatprep.mubr.f32.mxu0 0.0
    %3425 = vmatmul.mubr.f32.gmra.mxu0 %v3249
    %v3426 = vpop.f32.mrf.mxu0
    %v3427 = vadd.f32 0.0, %v3426
    %v3428 = vpop.f32.mrf.mxu0
    %3429 = vmatprep.mubr.f32.mxu0 0.0
    %3430 = vmatmul.mubr.f32.gmra.mxu0 %v3252
    %v3431 = vpop.f32.mrf.mxu0
    %v3432 = vadd.f32 0.0, %v3431
    %v3433 = vpop.f32.mrf.mxu0
    %3434 = vmatprep.mubr.f32.mxu0 0.0
    %3435 = vmatmul.mubr.f32.gmra.mxu0 %v3255
    %v3436 = vpop.f32.mrf.mxu0
    %v3437 = vadd.f32 0.0, %v3436
    %v3438 = vpop.f32.mrf.mxu0
    %3439 = vmatprep.mubr.f32.mxu0 0.0
    %3440 = vmatmul.mubr.f32.gmra.mxu0 %v3258
    %v3441 = vpop.f32.mrf.mxu0
    %v3442 = vadd.f32 0.0, %v3441
    %v3443 = vpop.f32.mrf.mxu0
    %3444 = vmatprep.mubr.f32.mxu0 0.0
    %3445 = vmatmul.mubr.f32.gmra.mxu0 %v3261
    %v3446 = vpop.f32.mrf.mxu0
    %v3447 = vadd.f32 0.0, %v3446
    %v3448 = vpop.f32.mrf.mxu0
    %3449 = vmatprep.mubr.f32.mxu0 0.0
    %3450 = vmatmul.mubr.f32.gmra.mxu0 %v3264
    %v3451 = vpop.f32.mrf.mxu0
    %v3452 = vadd.f32 0.0, %v3451
    %v3453 = vpop.f32.mrf.mxu0
    %3454 = vmatprep.mubr.f32.mxu0 0.0
    %3455 = vmatmul.mubr.f32.gmra.mxu0 %v3267
    %v3456 = vpop.f32.mrf.mxu0
    %v3457 = vadd.f32 0.0, %v3456
    %v3458 = vpop.f32.mrf.mxu0
    %3459 = vmatprep.mubr.f32.mxu0 0.0
    %3460 = vmatmul.mubr.f32.gmra.mxu0 %v3270
    %v3461 = vpop.f32.mrf.mxu0
    %v3462 = vadd.f32 0.0, %v3461
    %v3463 = vpop.f32.mrf.mxu0
    %3464 = vmatprep.mubr.f32.mxu0 0.0
    %3465 = vmatmul.mubr.f32.gmra.mxu0 %v3273
    %v3466 = vpop.f32.mrf.mxu0
    %v3467 = vadd.f32 0.0, %v3466
    %v3468 = vpop.f32.mrf.mxu0
    %3469 = vmatprep.mubr.f32.mxu0 0.0
    %3470 = vmatmul.mubr.f32.gmra.mxu0 %v3276
    %v3471 = vpop.f32.mrf.mxu0
    %v3472 = vadd.f32 0.0, %v3471
    %v3473 = vpop.f32.mrf.mxu0
    %3474 = vmatprep.mubr.f32.mxu0 0.0
    %3475 = vmatmul.mubr.f32.gmra.mxu0 %v3279
    %v3476 = vpop.f32.mrf.mxu0
    %v3477 = vadd.f32 0.0, %v3476
    %v3478 = vpop.f32.mrf.mxu0
    %3479 = vmatprep.mubr.f32.mxu0 0.0
    %3480 = vmatmul.mubr.f32.gmra.mxu0 %v3282
    %v3481 = vpop.f32.mrf.mxu0
    %v3482 = vadd.f32 0.0, %v3481
    %v3483 = vpop.f32.mrf.mxu0
    %3484 = vmatprep.mubr.f32.mxu0 0.0
    %3485 = vmatmul.mubr.f32.gmra.mxu0 %v3285
    %v3486 = vpop.f32.mrf.mxu0
    %v3487 = vadd.f32 0.0, %v3486
    %v3488 = vpop.f32.mrf.mxu0
    %3489 = vmatprep.mubr.f32.mxu0 0.0
    %3490 = vmatmul.mubr.f32.gmra.mxu0 %v3288
    %v3491 = vpop.f32.mrf.mxu0
    %v3492 = vadd.f32 0.0, %v3491
    %v3493 = vpop.f32.mrf.mxu0
    %3494 = vmatprep.mubr.f32.mxu0 0.0
    %3495 = vmatmul.mubr.f32.gmra.mxu0 %v3291
    %v3496 = vpop.f32.mrf.mxu0
    %v3497 = vadd.f32 0.0, %v3496
    %v3498 = vpop.f32.mrf.mxu0
    %3499 = vmatprep.mubr.f32.mxu0 0.0
    %3500 = vmatmul.mubr.f32.gmra.mxu0 %v3294
    %v3501 = vpop.f32.mrf.mxu0
    %v3502 = vadd.f32 0.0, %v3501
    %v3503 = vpop.f32.mrf.mxu0
    %3504 = vmatprep.mubr.f32.mxu0 0.0
    %3505 = vmatmul.mubr.f32.gmra.mxu0 %v3297
    %v3506 = vpop.f32.mrf.mxu0
    %v3507 = vadd.f32 0.0, %v3506
    %v3508 = vpop.f32.mrf.mxu0
    %3509 = vmatprep.mubr.f32.mxu0 0.0
    %3510 = vmatmul.mubr.f32.gmra.mxu0 %v3300
    %v3511 = vpop.f32.mrf.mxu0
    %v3512 = vadd.f32 0.0, %v3511
    %v3513 = vpop.f32.mrf.mxu0
    %3514 = vmatprep.mubr.f32.mxu0 0.0
    %3515 = vmatmul.mubr.f32.gmra.mxu0 %v3303
    %v3516 = vpop.f32.mrf.mxu0
    %v3517 = vadd.f32 0.0, %v3516
    %v3518 = vpop.f32.mrf.mxu0
    %3519 = vmatprep.mubr.f32.mxu0 0.0
    %3520 = vmatmul.mubr.f32.gmra.mxu0 %v3306
    %v3521 = vpop.f32.mrf.mxu0
    %v3522 = vadd.f32 0.0, %v3521
    %v3523 = vpop.f32.mrf.mxu0
    %3524 = vmatprep.mubr.f32.mxu0 0.0
    %3525 = vmatmul.mubr.f32.gmra.mxu0 %v3309
    %v3526 = vpop.f32.mrf.mxu0
    %v3527 = vadd.f32 0.0, %v3526
    %v3528 = vpop.f32.mrf.mxu0
    %3529 = vmatprep.mubr.f32.mxu0 0.0
    %3530 = vmatmul.mubr.f32.gmra.mxu0 %v3312
    %v3531 = vpop.f32.mrf.mxu0
    %v3532 = vadd.f32 0.0, %v3531
    %v3533 = vpop.f32.mrf.mxu0
    %3534 = vmatprep.mubr.f32.mxu0 0.0
    %3535 = vmatmul.mubr.f32.gmra.mxu0 %v3315
    %v3536 = vpop.f32.mrf.mxu0
    %v3537 = vadd.f32 0.0, %v3536
    %v3538 = vpop.f32.mrf.mxu0
    %3539 = vmatprep.mubr.f32.mxu0 0.0
    %3540 = vmatmul.mubr.f32.gmra.mxu0 %v3318
    %v3541 = vpop.f32.mrf.mxu0
    %v3542 = vadd.f32 0.0, %v3541
    %v3543 = vpop.f32.mrf.mxu0
    %3544 = vmatprep.mubr.f32.mxu0 0.0
    %3545 = vmatmul.mubr.f32.gmra.mxu0 %v3321
    %v3546 = vpop.f32.mrf.mxu0
    %v3547 = vadd.f32 0.0, %v3546
    %v3548 = vpop.f32.mrf.mxu0
    %3549 = vdwg.mxu0
    %v3550 = vadd.f32 %v3154, %v3392
    %v3551 = vadd.f32 %v3155, %v3397
    %v3552 = vadd.f32 %v3156, %v3402
    %v3553 = vadd.f32 %v3157, %v3407
    %v3554 = vadd.f32 %v3158, %v3412
    %v3555 = vadd.f32 %v3159, %v3417
    %v3556 = vadd.f32 %v3160, %v3422
    %v3557 = vadd.f32 %v3161, %v3427
    %v3558 = vadd.f32 %v3162, %v3432
    %v3559 = vadd.f32 %v3163, %v3437
    %v3560 = vadd.f32 %v3164, %v3442
    %v3561 = vadd.f32 %v3165, %v3447
    %v3562 = vadd.f32 %v3166, %v3452
    %v3563 = vadd.f32 %v3167, %v3457
    %v3564 = vadd.f32 %v3168, %v3462
    %v3565 = vadd.f32 %v3169, %v3467
    %v3566 = vadd.f32 %v3170, %v3472
    %v3567 = vadd.f32 %v3171, %v3477
    %v3568 = vadd.f32 %v3172, %v3482
    %v3569 = vadd.f32 %v3173, %v3487
    %v3570 = vadd.f32 %v3174, %v3492
    %v3571 = vadd.f32 %v3175, %v3497
    %v3572 = vadd.f32 %v3176, %v3502
    %v3573 = vadd.f32 %v3177, %v3507
    %v3574 = vadd.f32 %v3178, %v3512
    %v3575 = vadd.f32 %v3179, %v3517
    %v3576 = vadd.f32 %v3180, %v3522
    %v3577 = vadd.f32 %v3181, %v3527
    %v3578 = vadd.f32 %v3182, %v3532
    %v3579 = vadd.f32 %v3183, %v3537
    %v3580 = vadd.f32 %v3184, %v3542
    %v3581 = vadd.f32 %v3185, %v3547
    %s3582 = scalar_lea.vmem %s6, 1536
    %v3583 = vld [vmem:[%s3582] sm:$0xff]
    %v3584 = vld [vmem:[%s3582 + $0x8] sm:$0xff]
    %v3585 = vld [vmem:[%s3582 + $0x10] sm:$0xff]
    %v3586 = vld [vmem:[%s3582 + $0x18] sm:$0xff]
    %v3587 = vld [vmem:[%s3582 + $0x20] sm:$0xff]
    %v3588 = vld [vmem:[%s3582 + $0x28] sm:$0xff]
    %v3589 = vld [vmem:[%s3582 + $0x30] sm:$0xff]
    %v3590 = vld [vmem:[%s3582 + $0x38] sm:$0xff]
    %v3591 = vld [vmem:[%s3582 + $0x40] sm:$0xff]
    %v3592 = vld [vmem:[%s3582 + $0x48] sm:$0xff]
    %v3593 = vld [vmem:[%s3582 + $0x50] sm:$0xff]
    %v3594 = vld [vmem:[%s3582 + $0x58] sm:$0xff]
    %v3595 = vld [vmem:[%s3582 + $0x60] sm:$0xff]
    %v3596 = vld [vmem:[%s3582 + $0x68] sm:$0xff]
    %v3597 = vld [vmem:[%s3582 + $0x70] sm:$0xff]
    %v3598 = vld [vmem:[%s3582 + $0x78] sm:$0xff]
    %v3599 = vld [vmem:[%s3582 + $0x80] sm:$0xff]
    %v3600 = vld [vmem:[%s3582 + $0x88] sm:$0xff]
    %v3601 = vld [vmem:[%s3582 + $0x90] sm:$0xff]
    %v3602 = vld [vmem:[%s3582 + $0x98] sm:$0xff]
    %v3603 = vld [vmem:[%s3582 + $0xa0] sm:$0xff]
    %v3604 = vld [vmem:[%s3582 + $0xa8] sm:$0xff]
    %v3605 = vld [vmem:[%s3582 + $0xb0] sm:$0xff]
    %v3606 = vld [vmem:[%s3582 + $0xb8] sm:$0xff]
    %v3607 = vld [vmem:[%s3582 + $0xc0] sm:$0xff]
    %v3608 = vld [vmem:[%s3582 + $0xc8] sm:$0xff]
    %v3609 = vld [vmem:[%s3582 + $0xd0] sm:$0xff]
    %v3610 = vld [vmem:[%s3582 + $0xd8] sm:$0xff]
    %v3611 = vld [vmem:[%s3582 + $0xe0] sm:$0xff]
    %v3612 = vld [vmem:[%s3582 + $0xe8] sm:$0xff]
    %v3613 = vld [vmem:[%s3582 + $0xf0] sm:$0xff]
    %v3614 = vld [vmem:[%s3582 + $0xf8] sm:$0xff]
    %3615 = vrot.lane.b32.xlu0 %v752, 80
    %v3616 = vpop.permute.xlu0 %3615
    %3617 = vrot.lane.b32.xlu0 %v753, 80
    %v3618 = vpop.permute.xlu0 %3617
    %3619 = vrot.lane.b32.xlu0 %v754, 80
    %v3620 = vpop.permute.xlu0 %3619
    %v3624 = vsel %vm1242, %v3583, 0
    %v3627 = vsel %vm1242, %v3584, 0
    %v3630 = vsel %vm1242, %v3585, 0
    %v3633 = vsel %vm1242, %v3586, 0
    %v3636 = vsel %vm1242, %v3587, 0
    %v3639 = vsel %vm1242, %v3588, 0
    %v3642 = vsel %vm1242, %v3589, 0
    %v3645 = vsel %vm1242, %v3590, 0
    %v3648 = vsel %vm1242, %v3591, 0
    %v3651 = vsel %vm1242, %v3592, 0
    %v3654 = vsel %vm1242, %v3593, 0
    %v3657 = vsel %vm1242, %v3594, 0
    %v3660 = vsel %vm1242, %v3595, 0
    %v3663 = vsel %vm1242, %v3596, 0
    %v3666 = vsel %vm1242, %v3597, 0
    %v3669 = vsel %vm1242, %v3598, 0
    %v3672 = vsel %vm1242, %v3599, 0
    %v3675 = vsel %vm1242, %v3600, 0
    %v3678 = vsel %vm1242, %v3601, 0
    %v3681 = vsel %vm1242, %v3602, 0
    %v3684 = vsel %vm1242, %v3603, 0
    %v3687 = vsel %vm1242, %v3604, 0
    %v3690 = vsel %vm1242, %v3605, 0
    %v3693 = vsel %vm1242, %v3606, 0
    %v3696 = vsel %vm1242, %v3607, 0
    %v3699 = vsel %vm1242, %v3608, 0
    %v3702 = vsel %vm1242, %v3609, 0
    %v3705 = vsel %vm1242, %v3610, 0
    %v3708 = vsel %vm1242, %v3611, 0
    %v3711 = vsel %vm1242, %v3612, 0
    %v3714 = vsel %vm1242, %v3613, 0
    %v3717 = vsel %vm1242, %v3614, 0
    %v3719 = vsel %vm1339, %v3620, 0
    %3721 = vmatprep.subr.mxu0 0.0
    %3722 = vmatpush1.msra.mxu0 0.0
    %3723 = vmatprep.subr.mxu0 0.0
    %3724 = vmatpush1.msra.mxu0 0.0
    %3725 = vmatprep.subr.mxu0 0.0
    %3726 = vmatpush1.msra.mxu0 0.0
    %3727 = vmatprep.subr.mxu0 0.0
    %3728 = vmatpush1.msra.mxu0 0.0
    %3729 = vmatprep.subr.mxu0 0.0
    %3730 = vmatpush1.msra.mxu0 0.0
    %3731 = vmatprep.subr.mxu0 0.0
    %3732 = vmatpush1.msra.mxu0 0.0
    %3733 = vmatprep.subr.mxu0 0.0
    %3734 = vmatpush1.msra.mxu0 0.0
    %3735 = vmatprep.subr.mxu0 0.0
    %3736 = vmatpush1.msra.mxu0 0.0
    %3737 = vmatprep.subr.mxu0 0.0
    %3738 = vmatpush1.msra.mxu0 0.0
    %3739 = vmatprep.subr.mxu0 0.0
    %3740 = vmatpush1.msra.mxu0 0.0
    %3741 = vmatprep.subr.mxu0 0.0
    %3742 = vmatpush1.msra.mxu0 0.0
    %3743 = vmatprep.subr.mxu0 0.0
    %3744 = vmatpush1.msra.mxu0 0.0
    %3745 = vmatprep.subr.mxu0 0.0
    %3746 = vmatpush1.msra.mxu0 0.0
    %3747 = vmatprep.subr.mxu0 0.0
    %3748 = vmatpush1.msra.mxu0 %v3719
    %3749 = vmatprep.subr.mxu0 0.0
    %3750 = vmatpush1.msra.mxu0 %v3618
    %3751 = vmatprep.subr.mxu0 0.0
    %3752 = vmatpush1.msra.mxu0 %v3616
    %3753 = vmatprep.subr.mxu0 0.0
    %3754 = vmatpush2.msra.mxu0 0.0
    %3755 = vmatprep.subr.mxu0 0.0
    %3756 = vmatpush2.msra.mxu0 0.0
    %3757 = vmatprep.subr.mxu0 0.0
    %3758 = vmatpush2.msra.mxu0 0.0
    %3759 = vmatprep.subr.mxu0 0.0
    %3760 = vmatpush2.msra.mxu0 0.0
    %3761 = vmatprep.subr.mxu0 0.0
    %3762 = vmatpush2.msra.mxu0 0.0
    %3763 = vmatprep.subr.mxu0 0.0
    %3764 = vmatpush2.msra.mxu0 0.0
    %3765 = vmatprep.subr.mxu0 0.0
    %3766 = vmatpush2.msra.mxu0 0.0
    %3767 = vmatprep.subr.mxu0 0.0
    %3768 = vmatpush2.msra.mxu0 0.0
    %3769 = vmatprep.subr.mxu0 0.0
    %3770 = vmatpush2.msra.mxu0 0.0
    %3771 = vmatprep.subr.mxu0 0.0
    %3772 = vmatpush2.msra.mxu0 0.0
    %3773 = vmatprep.subr.mxu0 0.0
    %3774 = vmatpush2.msra.mxu0 0.0
    %3775 = vmatprep.subr.mxu0 0.0
    %3776 = vmatpush2.msra.mxu0 0.0
    %3777 = vmatprep.subr.mxu0 0.0
    %3778 = vmatpush2.msra.mxu0 0.0
    %3779 = vmatprep.subr.mxu0 0.0
    %3780 = vmatpush2.msra.mxu0 0.0
    %3781 = vmatprep.subr.mxu0 0.0
    %3782 = vmatpush2.msra.mxu0 0.0
    %3783 = vmatprep.subr.mxu0 0.0
    %3784 = vmatpush2.msra.mxu0 0.0
    %3785 = vmatprep.mubr.f32.mxu0 0.0
    %3786 = vmatmul.mubr.f32.gmra.mxu0 %v3624
    %v3787 = vpop.f32.mrf.mxu0
    %v3788 = vadd.f32 0.0, %v3787
    %v3789 = vpop.f32.mrf.mxu0
    %3790 = vmatprep.mubr.f32.mxu0 0.0
    %3791 = vmatmul.mubr.f32.gmra.mxu0 %v3627
    %v3792 = vpop.f32.mrf.mxu0
    %v3793 = vadd.f32 0.0, %v3792
    %v3794 = vpop.f32.mrf.mxu0
    %3795 = vmatprep.mubr.f32.mxu0 0.0
    %3796 = vmatmul.mubr.f32.gmra.mxu0 %v3630
    %v3797 = vpop.f32.mrf.mxu0
    %v3798 = vadd.f32 0.0, %v3797
    %v3799 = vpop.f32.mrf.mxu0
    %3800 = vmatprep.mubr.f32.mxu0 0.0
    %3801 = vmatmul.mubr.f32.gmra.mxu0 %v3633
    %v3802 = vpop.f32.mrf.mxu0
    %v3803 = vadd.f32 0.0, %v3802
    %v3804 = vpop.f32.mrf.mxu0
    %3805 = vmatprep.mubr.f32.mxu0 0.0
    %3806 = vmatmul.mubr.f32.gmra.mxu0 %v3636
    %v3807 = vpop.f32.mrf.mxu0
    %v3808 = vadd.f32 0.0, %v3807
    %v3809 = vpop.f32.mrf.mxu0
    %3810 = vmatprep.mubr.f32.mxu0 0.0
    %3811 = vmatmul.mubr.f32.gmra.mxu0 %v3639
    %v3812 = vpop.f32.mrf.mxu0
    %v3813 = vadd.f32 0.0, %v3812
    %v3814 = vpop.f32.mrf.mxu0
    %3815 = vmatprep.mubr.f32.mxu0 0.0
    %3816 = vmatmul.mubr.f32.gmra.mxu0 %v3642
    %v3817 = vpop.f32.mrf.mxu0
    %v3818 = vadd.f32 0.0, %v3817
    %v3819 = vpop.f32.mrf.mxu0
    %3820 = vmatprep.mubr.f32.mxu0 0.0
    %3821 = vmatmul.mubr.f32.gmra.mxu0 %v3645
    %v3822 = vpop.f32.mrf.mxu0
    %v3823 = vadd.f32 0.0, %v3822
    %v3824 = vpop.f32.mrf.mxu0
    %3825 = vmatprep.mubr.f32.mxu0 0.0
    %3826 = vmatmul.mubr.f32.gmra.mxu0 %v3648
    %v3827 = vpop.f32.mrf.mxu0
    %v3828 = vadd.f32 0.0, %v3827
    %v3829 = vpop.f32.mrf.mxu0
    %3830 = vmatprep.mubr.f32.mxu0 0.0
    %3831 = vmatmul.mubr.f32.gmra.mxu0 %v3651
    %v3832 = vpop.f32.mrf.mxu0
    %v3833 = vadd.f32 0.0, %v3832
    %v3834 = vpop.f32.mrf.mxu0
    %3835 = vmatprep.mubr.f32.mxu0 0.0
    %3836 = vmatmul.mubr.f32.gmra.mxu0 %v3654
    %v3837 = vpop.f32.mrf.mxu0
    %v3838 = vadd.f32 0.0, %v3837
    %v3839 = vpop.f32.mrf.mxu0
    %3840 = vmatprep.mubr.f32.mxu0 0.0
    %3841 = vmatmul.mubr.f32.gmra.mxu0 %v3657
    %v3842 = vpop.f32.mrf.mxu0
    %v3843 = vadd.f32 0.0, %v3842
    %v3844 = vpop.f32.mrf.mxu0
    %3845 = vmatprep.mubr.f32.mxu0 0.0
    %3846 = vmatmul.mubr.f32.gmra.mxu0 %v3660
    %v3847 = vpop.f32.mrf.mxu0
    %v3848 = vadd.f32 0.0, %v3847
    %v3849 = vpop.f32.mrf.mxu0
    %3850 = vmatprep.mubr.f32.mxu0 0.0
    %3851 = vmatmul.mubr.f32.gmra.mxu0 %v3663
    %v3852 = vpop.f32.mrf.mxu0
    %v3853 = vadd.f32 0.0, %v3852
    %v3854 = vpop.f32.mrf.mxu0
    %3855 = vmatprep.mubr.f32.mxu0 0.0
    %3856 = vmatmul.mubr.f32.gmra.mxu0 %v3666
    %v3857 = vpop.f32.mrf.mxu0
    %v3858 = vadd.f32 0.0, %v3857
    %v3859 = vpop.f32.mrf.mxu0
    %3860 = vmatprep.mubr.f32.mxu0 0.0
    %3861 = vmatmul.mubr.f32.gmra.mxu0 %v3669
    %v3862 = vpop.f32.mrf.mxu0
    %v3863 = vadd.f32 0.0, %v3862
    %v3864 = vpop.f32.mrf.mxu0
    %3865 = vmatprep.mubr.f32.mxu0 0.0
    %3866 = vmatmul.mubr.f32.gmra.mxu0 %v3672
    %v3867 = vpop.f32.mrf.mxu0
    %v3868 = vadd.f32 0.0, %v3867
    %v3869 = vpop.f32.mrf.mxu0
    %3870 = vmatprep.mubr.f32.mxu0 0.0
    %3871 = vmatmul.mubr.f32.gmra.mxu0 %v3675
    %v3872 = vpop.f32.mrf.mxu0
    %v3873 = vadd.f32 0.0, %v3872
    %v3874 = vpop.f32.mrf.mxu0
    %3875 = vmatprep.mubr.f32.mxu0 0.0
    %3876 = vmatmul.mubr.f32.gmra.mxu0 %v3678
    %v3877 = vpop.f32.mrf.mxu0
    %v3878 = vadd.f32 0.0, %v3877
    %v3879 = vpop.f32.mrf.mxu0
    %3880 = vmatprep.mubr.f32.mxu0 0.0
    %3881 = vmatmul.mubr.f32.gmra.mxu0 %v3681
    %v3882 = vpop.f32.mrf.mxu0
    %v3883 = vadd.f32 0.0, %v3882
    %v3884 = vpop.f32.mrf.mxu0
    %3885 = vmatprep.mubr.f32.mxu0 0.0
    %3886 = vmatmul.mubr.f32.gmra.mxu0 %v3684
    %v3887 = vpop.f32.mrf.mxu0
    %v3888 = vadd.f32 0.0, %v3887
    %v3889 = vpop.f32.mrf.mxu0
    %3890 = vmatprep.mubr.f32.mxu0 0.0
    %3891 = vmatmul.mubr.f32.gmra.mxu0 %v3687
    %v3892 = vpop.f32.mrf.mxu0
    %v3893 = vadd.f32 0.0, %v3892
    %v3894 = vpop.f32.mrf.mxu0
    %3895 = vmatprep.mubr.f32.mxu0 0.0
    %3896 = vmatmul.mubr.f32.gmra.mxu0 %v3690
    %v3897 = vpop.f32.mrf.mxu0
    %v3898 = vadd.f32 0.0, %v3897
    %v3899 = vpop.f32.mrf.mxu0
    %3900 = vmatprep.mubr.f32.mxu0 0.0
    %3901 = vmatmul.mubr.f32.gmra.mxu0 %v3693
    %v3902 = vpop.f32.mrf.mxu0
    %v3903 = vadd.f32 0.0, %v3902
    %v3904 = vpop.f32.mrf.mxu0
    %3905 = vmatprep.mubr.f32.mxu0 0.0
    %3906 = vmatmul.mubr.f32.gmra.mxu0 %v3696
    %v3907 = vpop.f32.mrf.mxu0
    %v3908 = vadd.f32 0.0, %v3907
    %v3909 = vpop.f32.mrf.mxu0
    %3910 = vmatprep.mubr.f32.mxu0 0.0
    %3911 = vmatmul.mubr.f32.gmra.mxu0 %v3699
    %v3912 = vpop.f32.mrf.mxu0
    %v3913 = vadd.f32 0.0, %v3912
    %v3914 = vpop.f32.mrf.mxu0
    %3915 = vmatprep.mubr.f32.mxu0 0.0
    %3916 = vmatmul.mubr.f32.gmra.mxu0 %v3702
    %v3917 = vpop.f32.mrf.mxu0
    %v3918 = vadd.f32 0.0, %v3917
    %v3919 = vpop.f32.mrf.mxu0
    %3920 = vmatprep.mubr.f32.mxu0 0.0
    %3921 = vmatmul.mubr.f32.gmra.mxu0 %v3705
    %v3922 = vpop.f32.mrf.mxu0
    %v3923 = vadd.f32 0.0, %v3922
    %v3924 = vpop.f32.mrf.mxu0
    %3925 = vmatprep.mubr.f32.mxu0 0.0
    %3926 = vmatmul.mubr.f32.gmra.mxu0 %v3708
    %v3927 = vpop.f32.mrf.mxu0
    %v3928 = vadd.f32 0.0, %v3927
    %v3929 = vpop.f32.mrf.mxu0
    %3930 = vmatprep.mubr.f32.mxu0 0.0
    %3931 = vmatmul.mubr.f32.gmra.mxu0 %v3711
    %v3932 = vpop.f32.mrf.mxu0
    %v3933 = vadd.f32 0.0, %v3932
    %v3934 = vpop.f32.mrf.mxu0
    %3935 = vmatprep.mubr.f32.mxu0 0.0
    %3936 = vmatmul.mubr.f32.gmra.mxu0 %v3714
    %v3937 = vpop.f32.mrf.mxu0
    %v3938 = vadd.f32 0.0, %v3937
    %v3939 = vpop.f32.mrf.mxu0
    %3940 = vmatprep.mubr.f32.mxu0 0.0
    %3941 = vmatmul.mubr.f32.gmra.mxu0 %v3717
    %v3942 = vpop.f32.mrf.mxu0
    %v3943 = vadd.f32 0.0, %v3942
    %v3944 = vpop.f32.mrf.mxu0
    %3945 = vdwg.mxu0
    %v3946 = vadd.f32 %v3550, %v3788
    %v3947 = vadd.f32 %v3551, %v3793
    %v3948 = vadd.f32 %v3552, %v3798
    %v3949 = vadd.f32 %v3553, %v3803
    %v3950 = vadd.f32 %v3554, %v3808
    %v3951 = vadd.f32 %v3555, %v3813
    %v3952 = vadd.f32 %v3556, %v3818
    %v3953 = vadd.f32 %v3557, %v3823
    %v3954 = vadd.f32 %v3558, %v3828
    %v3955 = vadd.f32 %v3559, %v3833
    %v3956 = vadd.f32 %v3560, %v3838
    %v3957 = vadd.f32 %v3561, %v3843
    %v3958 = vadd.f32 %v3562, %v3848
    %v3959 = vadd.f32 %v3563, %v3853
    %v3960 = vadd.f32 %v3564, %v3858
    %v3961 = vadd.f32 %v3565, %v3863
    %v3962 = vadd.f32 %v3566, %v3868
    %v3963 = vadd.f32 %v3567, %v3873
    %v3964 = vadd.f32 %v3568, %v3878
    %v3965 = vadd.f32 %v3569, %v3883
    %v3966 = vadd.f32 %v3570, %v3888
    %v3967 = vadd.f32 %v3571, %v3893
    %v3968 = vadd.f32 %v3572, %v3898
    %v3969 = vadd.f32 %v3573, %v3903
    %v3970 = vadd.f32 %v3574, %v3908
    %v3971 = vadd.f32 %v3575, %v3913
    %v3972 = vadd.f32 %v3576, %v3918
    %v3973 = vadd.f32 %v3577, %v3923
    %v3974 = vadd.f32 %v3578, %v3928
    %v3975 = vadd.f32 %v3579, %v3933
    %v3976 = vadd.f32 %v3580, %v3938
    %v3977 = vadd.f32 %v3581, %v3943
    %s3978 = scalar_lea.vmem %s6, 1792
    %v3979 = vld [vmem:[%s3978] sm:$0xff]
    %v3980 = vld [vmem:[%s3978 + $0x8] sm:$0xff]
    %v3981 = vld [vmem:[%s3978 + $0x10] sm:$0xff]
    %v3982 = vld [vmem:[%s3978 + $0x18] sm:$0xff]
    %v3983 = vld [vmem:[%s3978 + $0x20] sm:$0xff]
    %v3984 = vld [vmem:[%s3978 + $0x28] sm:$0xff]
    %v3985 = vld [vmem:[%s3978 + $0x30] sm:$0xff]
    %v3986 = vld [vmem:[%s3978 + $0x38] sm:$0xff]
    %v3987 = vld [vmem:[%s3978 + $0x40] sm:$0xff]
    %v3988 = vld [vmem:[%s3978 + $0x48] sm:$0xff]
    %v3989 = vld [vmem:[%s3978 + $0x50] sm:$0xff]
    %v3990 = vld [vmem:[%s3978 + $0x58] sm:$0xff]
    %v3991 = vld [vmem:[%s3978 + $0x60] sm:$0xff]
    %v3992 = vld [vmem:[%s3978 + $0x68] sm:$0xff]
    %v3993 = vld [vmem:[%s3978 + $0x70] sm:$0xff]
    %v3994 = vld [vmem:[%s3978 + $0x78] sm:$0xff]
    %v3995 = vld [vmem:[%s3978 + $0x80] sm:$0xff]
    %v3996 = vld [vmem:[%s3978 + $0x88] sm:$0xff]
    %v3997 = vld [vmem:[%s3978 + $0x90] sm:$0xff]
    %v3998 = vld [vmem:[%s3978 + $0x98] sm:$0xff]
    %v3999 = vld [vmem:[%s3978 + $0xa0] sm:$0xff]
    %v4000 = vld [vmem:[%s3978 + $0xa8] sm:$0xff]
    %v4001 = vld [vmem:[%s3978 + $0xb0] sm:$0xff]
    %v4002 = vld [vmem:[%s3978 + $0xb8] sm:$0xff]
    %v4003 = vld [vmem:[%s3978 + $0xc0] sm:$0xff]
    %v4004 = vld [vmem:[%s3978 + $0xc8] sm:$0xff]
    %v4005 = vld [vmem:[%s3978 + $0xd0] sm:$0xff]
    %v4006 = vld [vmem:[%s3978 + $0xd8] sm:$0xff]
    %v4007 = vld [vmem:[%s3978 + $0xe0] sm:$0xff]
    %v4008 = vld [vmem:[%s3978 + $0xe8] sm:$0xff]
    %v4009 = vld [vmem:[%s3978 + $0xf0] sm:$0xff]
    %v4010 = vld [vmem:[%s3978 + $0xf8] sm:$0xff]
    %4011 = vrot.lane.b32.xlu0 %v752, 72
    %v4012 = vpop.permute.xlu0 %4011
    %4013 = vrot.lane.b32.xlu0 %v753, 72
    %v4014 = vpop.permute.xlu0 %4013
    %4015 = vrot.lane.b32.xlu0 %v754, 72
    %v4016 = vpop.permute.xlu0 %4015
    %v4020 = vsel %vm1242, %v3979, 0
    %v4023 = vsel %vm1242, %v3980, 0
    %v4026 = vsel %vm1242, %v3981, 0
    %v4029 = vsel %vm1242, %v3982, 0
    %v4032 = vsel %vm1242, %v3983, 0
    %v4035 = vsel %vm1242, %v3984, 0
    %v4038 = vsel %vm1242, %v3985, 0
    %v4041 = vsel %vm1242, %v3986, 0
    %v4044 = vsel %vm1242, %v3987, 0
    %v4047 = vsel %vm1242, %v3988, 0
    %v4050 = vsel %vm1242, %v3989, 0
    %v4053 = vsel %vm1242, %v3990, 0
    %v4056 = vsel %vm1242, %v3991, 0
    %v4059 = vsel %vm1242, %v3992, 0
    %v4062 = vsel %vm1242, %v3993, 0
    %v4065 = vsel %vm1242, %v3994, 0
    %v4068 = vsel %vm1242, %v3995, 0
    %v4071 = vsel %vm1242, %v3996, 0
    %v4074 = vsel %vm1242, %v3997, 0
    %v4077 = vsel %vm1242, %v3998, 0
    %v4080 = vsel %vm1242, %v3999, 0
    %v4083 = vsel %vm1242, %v4000, 0
    %v4086 = vsel %vm1242, %v4001, 0
    %v4089 = vsel %vm1242, %v4002, 0
    %v4092 = vsel %vm1242, %v4003, 0
    %v4095 = vsel %vm1242, %v4004, 0
    %v4098 = vsel %vm1242, %v4005, 0
    %v4101 = vsel %vm1242, %v4006, 0
    %v4104 = vsel %vm1242, %v4007, 0
    %v4107 = vsel %vm1242, %v4008, 0
    %v4110 = vsel %vm1242, %v4009, 0
    %v4113 = vsel %vm1242, %v4010, 0
    %v4115 = vsel %vm1339, %v4016, 0
    %4117 = vmatprep.subr.mxu0 0.0
    %4118 = vmatpush1.msra.mxu0 0.0
    %4119 = vmatprep.subr.mxu0 0.0
    %4120 = vmatpush1.msra.mxu0 0.0
    %4121 = vmatprep.subr.mxu0 0.0
    %4122 = vmatpush1.msra.mxu0 0.0
    %4123 = vmatprep.subr.mxu0 0.0
    %4124 = vmatpush1.msra.mxu0 0.0
    %4125 = vmatprep.subr.mxu0 0.0
    %4126 = vmatpush1.msra.mxu0 0.0
    %4127 = vmatprep.subr.mxu0 0.0
    %4128 = vmatpush1.msra.mxu0 0.0
    %4129 = vmatprep.subr.mxu0 0.0
    %4130 = vmatpush1.msra.mxu0 0.0
    %4131 = vmatprep.subr.mxu0 0.0
    %4132 = vmatpush1.msra.mxu0 0.0
    %4133 = vmatprep.subr.mxu0 0.0
    %4134 = vmatpush1.msra.mxu0 0.0
    %4135 = vmatprep.subr.mxu0 0.0
    %4136 = vmatpush1.msra.mxu0 0.0
    %4137 = vmatprep.subr.mxu0 0.0
    %4138 = vmatpush1.msra.mxu0 0.0
    %4139 = vmatprep.subr.mxu0 0.0
    %4140 = vmatpush1.msra.mxu0 0.0
    %4141 = vmatprep.subr.mxu0 0.0
    %4142 = vmatpush1.msra.mxu0 0.0
    %4143 = vmatprep.subr.mxu0 0.0
    %4144 = vmatpush1.msra.mxu0 %v4115
    %4145 = vmatprep.subr.mxu0 0.0
    %4146 = vmatpush1.msra.mxu0 %v4014
    %4147 = vmatprep.subr.mxu0 0.0
    %4148 = vmatpush1.msra.mxu0 %v4012
    %4149 = vmatprep.subr.mxu0 0.0
    %4150 = vmatpush2.msra.mxu0 0.0
    %4151 = vmatprep.subr.mxu0 0.0
    %4152 = vmatpush2.msra.mxu0 0.0
    %4153 = vmatprep.subr.mxu0 0.0
    %4154 = vmatpush2.msra.mxu0 0.0
    %4155 = vmatprep.subr.mxu0 0.0
    %4156 = vmatpush2.msra.mxu0 0.0
    %4157 = vmatprep.subr.mxu0 0.0
    %4158 = vmatpush2.msra.mxu0 0.0
    %4159 = vmatprep.subr.mxu0 0.0
    %4160 = vmatpush2.msra.mxu0 0.0
    %4161 = vmatprep.subr.mxu0 0.0
    %4162 = vmatpush2.msra.mxu0 0.0
    %4163 = vmatprep.subr.mxu0 0.0
    %4164 = vmatpush2.msra.mxu0 0.0
    %4165 = vmatprep.subr.mxu0 0.0
    %4166 = vmatpush2.msra.mxu0 0.0
    %4167 = vmatprep.subr.mxu0 0.0
    %4168 = vmatpush2.msra.mxu0 0.0
    %4169 = vmatprep.subr.mxu0 0.0
    %4170 = vmatpush2.msra.mxu0 0.0
    %4171 = vmatprep.subr.mxu0 0.0
    %4172 = vmatpush2.msra.mxu0 0.0
    %4173 = vmatprep.subr.mxu0 0.0
    %4174 = vmatpush2.msra.mxu0 0.0
    %4175 = vmatprep.subr.mxu0 0.0
    %4176 = vmatpush2.msra.mxu0 0.0
    %4177 = vmatprep.subr.mxu0 0.0
    %4178 = vmatpush2.msra.mxu0 0.0
    %4179 = vmatprep.subr.mxu0 0.0
    %4180 = vmatpush2.msra.mxu0 0.0
    %4181 = vmatprep.mubr.f32.mxu0 0.0
    %4182 = vmatmul.mubr.f32.gmra.mxu0 %v4020
    %v4183 = vpop.f32.mrf.mxu0
    %v4184 = vadd.f32 0.0, %v4183
    %v4185 = vpop.f32.mrf.mxu0
    %4186 = vmatprep.mubr.f32.mxu0 0.0
    %4187 = vmatmul.mubr.f32.gmra.mxu0 %v4023
    %v4188 = vpop.f32.mrf.mxu0
    %v4189 = vadd.f32 0.0, %v4188
    %v4190 = vpop.f32.mrf.mxu0
    %4191 = vmatprep.mubr.f32.mxu0 0.0
    %4192 = vmatmul.mubr.f32.gmra.mxu0 %v4026
    %v4193 = vpop.f32.mrf.mxu0
    %v4194 = vadd.f32 0.0, %v4193
    %v4195 = vpop.f32.mrf.mxu0
    %4196 = vmatprep.mubr.f32.mxu0 0.0
    %4197 = vmatmul.mubr.f32.gmra.mxu0 %v4029
    %v4198 = vpop.f32.mrf.mxu0
    %v4199 = vadd.f32 0.0, %v4198
    %v4200 = vpop.f32.mrf.mxu0
    %4201 = vmatprep.mubr.f32.mxu0 0.0
    %4202 = vmatmul.mubr.f32.gmra.mxu0 %v4032
    %v4203 = vpop.f32.mrf.mxu0
    %v4204 = vadd.f32 0.0, %v4203
    %v4205 = vpop.f32.mrf.mxu0
    %4206 = vmatprep.mubr.f32.mxu0 0.0
    %4207 = vmatmul.mubr.f32.gmra.mxu0 %v4035
    %v4208 = vpop.f32.mrf.mxu0
    %v4209 = vadd.f32 0.0, %v4208
    %v4210 = vpop.f32.mrf.mxu0
    %4211 = vmatprep.mubr.f32.mxu0 0.0
    %4212 = vmatmul.mubr.f32.gmra.mxu0 %v4038
    %v4213 = vpop.f32.mrf.mxu0
    %v4214 = vadd.f32 0.0, %v4213
    %v4215 = vpop.f32.mrf.mxu0
    %4216 = vmatprep.mubr.f32.mxu0 0.0
    %4217 = vmatmul.mubr.f32.gmra.mxu0 %v4041
    %v4218 = vpop.f32.mrf.mxu0
    %v4219 = vadd.f32 0.0, %v4218
    %v4220 = vpop.f32.mrf.mxu0
    %4221 = vmatprep.mubr.f32.mxu0 0.0
    %4222 = vmatmul.mubr.f32.gmra.mxu0 %v4044
    %v4223 = vpop.f32.mrf.mxu0
    %v4224 = vadd.f32 0.0, %v4223
    %v4225 = vpop.f32.mrf.mxu0
    %4226 = vmatprep.mubr.f32.mxu0 0.0
    %4227 = vmatmul.mubr.f32.gmra.mxu0 %v4047
    %v4228 = vpop.f32.mrf.mxu0
    %v4229 = vadd.f32 0.0, %v4228
    %v4230 = vpop.f32.mrf.mxu0
    %4231 = vmatprep.mubr.f32.mxu0 0.0
    %4232 = vmatmul.mubr.f32.gmra.mxu0 %v4050
    %v4233 = vpop.f32.mrf.mxu0
    %v4234 = vadd.f32 0.0, %v4233
    %v4235 = vpop.f32.mrf.mxu0
    %4236 = vmatprep.mubr.f32.mxu0 0.0
    %4237 = vmatmul.mubr.f32.gmra.mxu0 %v4053
    %v4238 = vpop.f32.mrf.mxu0
    %v4239 = vadd.f32 0.0, %v4238
    %v4240 = vpop.f32.mrf.mxu0
    %4241 = vmatprep.mubr.f32.mxu0 0.0
    %4242 = vmatmul.mubr.f32.gmra.mxu0 %v4056
    %v4243 = vpop.f32.mrf.mxu0
    %v4244 = vadd.f32 0.0, %v4243
    %v4245 = vpop.f32.mrf.mxu0
    %4246 = vmatprep.mubr.f32.mxu0 0.0
    %4247 = vmatmul.mubr.f32.gmra.mxu0 %v4059
    %v4248 = vpop.f32.mrf.mxu0
    %v4249 = vadd.f32 0.0, %v4248
    %v4250 = vpop.f32.mrf.mxu0
    %4251 = vmatprep.mubr.f32.mxu0 0.0
    %4252 = vmatmul.mubr.f32.gmra.mxu0 %v4062
    %v4253 = vpop.f32.mrf.mxu0
    %v4254 = vadd.f32 0.0, %v4253
    %v4255 = vpop.f32.mrf.mxu0
    %4256 = vmatprep.mubr.f32.mxu0 0.0
    %4257 = vmatmul.mubr.f32.gmra.mxu0 %v4065
    %v4258 = vpop.f32.mrf.mxu0
    %v4259 = vadd.f32 0.0, %v4258
    %v4260 = vpop.f32.mrf.mxu0
    %4261 = vmatprep.mubr.f32.mxu0 0.0
    %4262 = vmatmul.mubr.f32.gmra.mxu0 %v4068
    %v4263 = vpop.f32.mrf.mxu0
    %v4264 = vadd.f32 0.0, %v4263
    %v4265 = vpop.f32.mrf.mxu0
    %4266 = vmatprep.mubr.f32.mxu0 0.0
    %4267 = vmatmul.mubr.f32.gmra.mxu0 %v4071
    %v4268 = vpop.f32.mrf.mxu0
    %v4269 = vadd.f32 0.0, %v4268
    %v4270 = vpop.f32.mrf.mxu0
    %4271 = vmatprep.mubr.f32.mxu0 0.0
    %4272 = vmatmul.mubr.f32.gmra.mxu0 %v4074
    %v4273 = vpop.f32.mrf.mxu0
    %v4274 = vadd.f32 0.0, %v4273
    %v4275 = vpop.f32.mrf.mxu0
    %4276 = vmatprep.mubr.f32.mxu0 0.0
    %4277 = vmatmul.mubr.f32.gmra.mxu0 %v4077
    %v4278 = vpop.f32.mrf.mxu0
    %v4279 = vadd.f32 0.0, %v4278
    %v4280 = vpop.f32.mrf.mxu0
    %4281 = vmatprep.mubr.f32.mxu0 0.0
    %4282 = vmatmul.mubr.f32.gmra.mxu0 %v4080
    %v4283 = vpop.f32.mrf.mxu0
    %v4284 = vadd.f32 0.0, %v4283
    %v4285 = vpop.f32.mrf.mxu0
    %4286 = vmatprep.mubr.f32.mxu0 0.0
    %4287 = vmatmul.mubr.f32.gmra.mxu0 %v4083
    %v4288 = vpop.f32.mrf.mxu0
    %v4289 = vadd.f32 0.0, %v4288
    %v4290 = vpop.f32.mrf.mxu0
    %4291 = vmatprep.mubr.f32.mxu0 0.0
    %4292 = vmatmul.mubr.f32.gmra.mxu0 %v4086
    %v4293 = vpop.f32.mrf.mxu0
    %v4294 = vadd.f32 0.0, %v4293
    %v4295 = vpop.f32.mrf.mxu0
    %4296 = vmatprep.mubr.f32.mxu0 0.0
    %4297 = vmatmul.mubr.f32.gmra.mxu0 %v4089
    %v4298 = vpop.f32.mrf.mxu0
    %v4299 = vadd.f32 0.0, %v4298
    %v4300 = vpop.f32.mrf.mxu0
    %4301 = vmatprep.mubr.f32.mxu0 0.0
    %4302 = vmatmul.mubr.f32.gmra.mxu0 %v4092
    %v4303 = vpop.f32.mrf.mxu0
    %v4304 = vadd.f32 0.0, %v4303
    %v4305 = vpop.f32.mrf.mxu0
    %4306 = vmatprep.mubr.f32.mxu0 0.0
    %4307 = vmatmul.mubr.f32.gmra.mxu0 %v4095
    %v4308 = vpop.f32.mrf.mxu0
    %v4309 = vadd.f32 0.0, %v4308
    %v4310 = vpop.f32.mrf.mxu0
    %4311 = vmatprep.mubr.f32.mxu0 0.0
    %4312 = vmatmul.mubr.f32.gmra.mxu0 %v4098
    %v4313 = vpop.f32.mrf.mxu0
    %v4314 = vadd.f32 0.0, %v4313
    %v4315 = vpop.f32.mrf.mxu0
    %4316 = vmatprep.mubr.f32.mxu0 0.0
    %4317 = vmatmul.mubr.f32.gmra.mxu0 %v4101
    %v4318 = vpop.f32.mrf.mxu0
    %v4319 = vadd.f32 0.0, %v4318
    %v4320 = vpop.f32.mrf.mxu0
    %4321 = vmatprep.mubr.f32.mxu0 0.0
    %4322 = vmatmul.mubr.f32.gmra.mxu0 %v4104
    %v4323 = vpop.f32.mrf.mxu0
    %v4324 = vadd.f32 0.0, %v4323
    %v4325 = vpop.f32.mrf.mxu0
    %4326 = vmatprep.mubr.f32.mxu0 0.0
    %4327 = vmatmul.mubr.f32.gmra.mxu0 %v4107
    %v4328 = vpop.f32.mrf.mxu0
    %v4329 = vadd.f32 0.0, %v4328
    %v4330 = vpop.f32.mrf.mxu0
    %4331 = vmatprep.mubr.f32.mxu0 0.0
    %4332 = vmatmul.mubr.f32.gmra.mxu0 %v4110
    %v4333 = vpop.f32.mrf.mxu0
    %v4334 = vadd.f32 0.0, %v4333
    %v4335 = vpop.f32.mrf.mxu0
    %4336 = vmatprep.mubr.f32.mxu0 0.0
    %4337 = vmatmul.mubr.f32.gmra.mxu0 %v4113
    %v4338 = vpop.f32.mrf.mxu0
    %v4339 = vadd.f32 0.0, %v4338
    %v4340 = vpop.f32.mrf.mxu0
    %4341 = vdwg.mxu0
    %v4342 = vadd.f32 %v3946, %v4184
    %v4343 = vadd.f32 %v3947, %v4189
    %v4344 = vadd.f32 %v3948, %v4194
    %v4345 = vadd.f32 %v3949, %v4199
    %v4346 = vadd.f32 %v3950, %v4204
    %v4347 = vadd.f32 %v3951, %v4209
    %v4348 = vadd.f32 %v3952, %v4214
    %v4349 = vadd.f32 %v3953, %v4219
    %v4350 = vadd.f32 %v3954, %v4224
    %v4351 = vadd.f32 %v3955, %v4229
    %v4352 = vadd.f32 %v3956, %v4234
    %v4353 = vadd.f32 %v3957, %v4239
    %v4354 = vadd.f32 %v3958, %v4244
    %v4355 = vadd.f32 %v3959, %v4249
    %v4356 = vadd.f32 %v3960, %v4254
    %v4357 = vadd.f32 %v3961, %v4259
    %v4358 = vadd.f32 %v3962, %v4264
    %v4359 = vadd.f32 %v3963, %v4269
    %v4360 = vadd.f32 %v3964, %v4274
    %v4361 = vadd.f32 %v3965, %v4279
    %v4362 = vadd.f32 %v3966, %v4284
    %v4363 = vadd.f32 %v3967, %v4289
    %v4364 = vadd.f32 %v3968, %v4294
    %v4365 = vadd.f32 %v3969, %v4299
    %v4366 = vadd.f32 %v3970, %v4304
    %v4367 = vadd.f32 %v3971, %v4309
    %v4368 = vadd.f32 %v3972, %v4314
    %v4369 = vadd.f32 %v3973, %v4319
    %v4370 = vadd.f32 %v3974, %v4324
    %v4371 = vadd.f32 %v3975, %v4329
    %v4372 = vadd.f32 %v3976, %v4334
    %v4373 = vadd.f32 %v3977, %v4339
    %v4374 = vmax.f32 %v4342, 0.0
    %v4375 = vmax.f32 %v4343, 0.0
    %v4376 = vmax.f32 %v4344, 0.0
    %v4377 = vmax.f32 %v4345, 0.0
    %v4378 = vmax.f32 %v4346, 0.0
    %v4379 = vmax.f32 %v4347, 0.0
    %v4380 = vmax.f32 %v4348, 0.0
    %v4381 = vmax.f32 %v4349, 0.0
    %v4382 = vmax.f32 %v4350, 0.0
    %v4383 = vmax.f32 %v4351, 0.0
    %v4384 = vmax.f32 %v4352, 0.0
    %v4385 = vmax.f32 %v4353, 0.0
    %v4386 = vmax.f32 %v4354, 0.0
    %v4387 = vmax.f32 %v4355, 0.0
    %v4388 = vmax.f32 %v4356, 0.0
    %v4389 = vmax.f32 %v4357, 0.0
    %v4390 = vmax.f32 %v4358, 0.0
    %v4391 = vmax.f32 %v4359, 0.0
    %v4392 = vmax.f32 %v4360, 0.0
    %v4393 = vmax.f32 %v4361, 0.0
    %v4394 = vmax.f32 %v4362, 0.0
    %v4395 = vmax.f32 %v4363, 0.0
    %v4396 = vmax.f32 %v4364, 0.0
    %v4397 = vmax.f32 %v4365, 0.0
    %v4398 = vmax.f32 %v4366, 0.0
    %v4399 = vmax.f32 %v4367, 0.0
    %v4400 = vmax.f32 %v4368, 0.0
    %v4401 = vmax.f32 %v4369, 0.0
    %v4402 = vmax.f32 %v4370, 0.0
    %v4403 = vmax.f32 %v4371, 0.0
    %v4404 = vmax.f32 %v4372, 0.0
    %v4405 = vmax.f32 %v4373, 0.0
    %v4406 = vld [vmem:[%s9] sm:$0xff]
    %v4407 = vld [vmem:[%s10] sm:$0xf]
    %4409 = vset.pattern.permute.xlu0 0
    %4410 = vperm.xlu0 %4409, %v4407
    %v4411 = vpop.permute.xlu0 %4410
    %v4414 = vcombine.high %v4406, %v4406
    %4416 = vmatprep.subr.mxu0 0.0
    %4417 = vmatpush1.msra.mxu0 %v4389
    %4418 = vmatprep.subr.mxu0 0.0
    %4419 = vmatpush1.msra.mxu0 %v4388
    %4420 = vmatprep.subr.mxu0 0.0
    %4421 = vmatpush1.msra.mxu0 %v4387
    %4422 = vmatprep.subr.mxu0 0.0
    %4423 = vmatpush1.msra.mxu0 %v4386
    %4424 = vmatprep.subr.mxu0 0.0
    %4425 = vmatpush1.msra.mxu0 %v4385
    %4426 = vmatprep.subr.mxu0 0.0
    %4427 = vmatpush1.msra.mxu0 %v4384
    %4428 = vmatprep.subr.mxu0 0.0
    %4429 = vmatpush1.msra.mxu0 %v4383
    %4430 = vmatprep.subr.mxu0 0.0
    %4431 = vmatpush1.msra.mxu0 %v4382
    %4432 = vmatprep.subr.mxu0 0.0
    %4433 = vmatpush1.msra.mxu0 %v4381
    %4434 = vmatprep.subr.mxu0 0.0
    %4435 = vmatpush1.msra.mxu0 %v4380
    %4436 = vmatprep.subr.mxu0 0.0
    %4437 = vmatpush1.msra.mxu0 %v4379
    %4438 = vmatprep.subr.mxu0 0.0
    %4439 = vmatpush1.msra.mxu0 %v4378
    %4440 = vmatprep.subr.mxu0 0.0
    %4441 = vmatpush1.msra.mxu0 %v4377
    %4442 = vmatprep.subr.mxu0 0.0
    %4443 = vmatpush1.msra.mxu0 %v4376
    %4444 = vmatprep.subr.mxu0 0.0
    %4445 = vmatpush1.msra.mxu0 %v4375
    %4446 = vmatprep.subr.mxu0 0.0
    %4447 = vmatpush1.msra.mxu0 %v4374
    %4448 = vmatprep.subr.mxu0 0.0
    %4449 = vmatpush2.msra.mxu0 %v4405
    %4450 = vmatprep.subr.mxu0 0.0
    %4451 = vmatpush2.msra.mxu0 %v4404
    %4452 = vmatprep.subr.mxu0 0.0
    %4453 = vmatpush2.msra.mxu0 %v4403
    %4454 = vmatprep.subr.mxu0 0.0
    %4455 = vmatpush2.msra.mxu0 %v4402
    %4456 = vmatprep.subr.mxu0 0.0
    %4457 = vmatpush2.msra.mxu0 %v4401
    %4458 = vmatprep.subr.mxu0 0.0
    %4459 = vmatpush2.msra.mxu0 %v4400
    %4460 = vmatprep.subr.mxu0 0.0
    %4461 = vmatpush2.msra.mxu0 %v4399
    %4462 = vmatprep.subr.mxu0 0.0
    %4463 = vmatpush2.msra.mxu0 %v4398
    %4464 = vmatprep.subr.mxu0 0.0
    %4465 = vmatpush2.msra.mxu0 %v4397
    %4466 = vmatprep.subr.mxu0 0.0
    %4467 = vmatpush2.msra.mxu0 %v4396
    %4468 = vmatprep.subr.mxu0 0.0
    %4469 = vmatpush2.msra.mxu0 %v4395
    %4470 = vmatprep.subr.mxu0 0.0
    %4471 = vmatpush2.msra.mxu0 %v4394
    %4472 = vmatprep.subr.mxu0 0.0
    %4473 = vmatpush2.msra.mxu0 %v4393
    %4474 = vmatprep.subr.mxu0 0.0
    %4475 = vmatpush2.msra.mxu0 %v4392
    %4476 = vmatprep.subr.mxu0 0.0
    %4477 = vmatpush2.msra.mxu0 %v4391
    %4478 = vmatprep.subr.mxu0 0.0
    %4479 = vmatpush2.msra.mxu0 %v4390
    %4480 = vmatprep.mubr.f32.mxu0 %v4414
    %4481 = vmatmul.mubr.f32.gmra.mxu0 %v4406
    %v4482 = vpop.f32.mrf.mxu0
    %v4483 = vadd.f32 %v4411, %v4482
    %v4484 = vpop.f32.mrf.mxu0
    %4485 = vdwg.mxu0
    %vm4486 = vcmask 60416
    %4487 = vst.msk [vmem:[#allocation2] sm:$0xf] %vm4486, %v4483
    // Predicated region
    $region46: #{net_cnn_3_channels_forward.1} parent=1 // pred_check
      _
    $region47: #{net_cnn_3_channels_forward.1} parent=1 // pred_check_branch
      %4489 = sbr.rel (0) target = $region49
    $region48: #{net_cnn_3_channels_forward.1} parent=1 // pred_region
      %s4491 = ssub.s32 64, 64
      %4492 = vsyncadd [#allocation3], %s4491
      %s4494 = sshll.u32 [#allocation2], 4
      %s4495 = int_to_ptr.vmem [resolvable:$true] %s4494
      %4497 = dma.vmem_to_hbm [thread:$0]  %s4495, 64, %s11, [#allocation3]
    $region49: #{net_cnn_3_channels_forward.1} parent=1 // pred_fallthru
      _
    // Predicated region
    $region50: #{net_cnn_3_channels_forward.1} parent=1 // pred_check
      _
    $region51: #{net_cnn_3_channels_forward.1} parent=1 // pred_check_branch
      %4499 = sbr.rel (0) target = $region53
    $region52: #{net_cnn_3_channels_forward.1} parent=1 // pred_region
      %4500 = dma.done [#allocation3], 64
    $region53: #{net_cnn_3_channels_forward.1} parent=1 // pred_fallthru
      _
    %4501 = vsyncpa [#allocation3], 1

</llo_original>
